<compile_context>
chip_gen: v5e
topology: v5e:2x2
jax: 0.10.0
libtpu: 0.0.40
codegen_flags: <defaults>
</compile_context>

<pallas_src>
import functools

import jax
import jax.numpy as jnp
from jax.experimental import pallas as pl
from jax.experimental.pallas import tpu as pltpu

_TILE_M_TARGET = 512                    # ~512-row tiles reach ~85% of HBM roofline
_VMEM_LIMIT = 32 * 1024 * 1024          # scoped-VMEM budget (fits v5e/v6e/v7x)
_FUSED_Y_MAX_BYTES = 20 * 1024 * 1024   # VMEM budget for the resident f32 y scratch
_BN_EPS = 1e-5


def _round_up(x, m):
    return (x + m - 1) // m * m


def _cdiv(a, b):
    return (a + b - 1) // b


def _m_tiling(m):
    """(tile_m, num_tiles, padded_M).

    tile_m is a multiple of 16 (bf16 sublane packing).  Prefer a tile that
    divides M exactly (no pad rows, no post-kernel row slice) near the ~512-row
    target; fall back to a rounded-up ragged tiling otherwise.
    """
    if m <= _TILE_M_TARGET + 128:
        tile_m = _round_up(m, 16)
        return tile_m, 1, tile_m
    base = _cdiv(m, _TILE_M_TARGET)
    for num_m in range(max(1, base - 1), base + 8):
        tile_m = m // num_m
        if m % num_m == 0 and tile_m % 16 == 0 and tile_m <= 2 * _TILE_M_TARGET:
            return tile_m, num_m, m
    num_m = base
    tile_m = _round_up(_cdiv(m, num_m), 16)
    return tile_m, num_m, tile_m * num_m


# --------------------------------- kernels ----------------------------------
def _matmul_bias_leaky_kernel(a_ref, b_ref, bias_ref, o_ref):
    """One M-tile of LeakyReLU(A @ B + bias). bf16 operands, f32 accumulate."""
    y = jnp.dot(a_ref[...], b_ref[...], preferred_element_type=jnp.float32)
    y = y + bias_ref[...]                          # (1, Np) broadcasts over rows
    y = jnp.where(y >= 0.0, y, 0.2 * y)
    o_ref[...] = y.astype(o_ref.dtype)


def _fused_matmul_bn_leaky_kernel(a_ref, b_ref, gamma_ref, beta_ref, o_ref,
                                  y_scr, sum_scr, ssq_scr, *, inv_count):
    """Fused conv-matmul + training-mode BatchNorm + LeakyReLU.

    grid = (2, num_m):
      phase 0: matmul each M tile, park f32 result in VMEM scratch, accumulate
               per-column sum / sum-of-squares;
      phase 1: normalize each tile from the VMEM-resident y and store to HBM.
    """
    phase = pl.program_id(0)
    i = pl.program_id(1)

    @pl.when((phase == 0) & (i == 0))
    def _init():
        sum_scr[...] = jnp.zeros_like(sum_scr)
        ssq_scr[...] = jnp.zeros_like(ssq_scr)

    @pl.when(phase == 0)
    def _matmul_stats():
        y = jnp.dot(a_ref[...], b_ref[...], preferred_element_type=jnp.float32)
        y_scr[i] = y
        sum_scr[...] += jnp.sum(y, axis=0, keepdims=True)
        ssq_scr[...] += jnp.sum(y * y, axis=0, keepdims=True)

    @pl.when(phase == 1)
    def _normalize():
        mean = sum_scr[...] * inv_count
        var = jnp.maximum(ssq_scr[...] * inv_count - mean * mean, 0.0)
        scale = jax.lax.rsqrt(var + _BN_EPS) * gamma_ref[...]
        shift = beta_ref[...] - mean * scale
        y = y_scr[i] * scale + shift
        o_ref[...] = jnp.where(y >= 0.0, y, 0.2 * y).astype(o_ref.dtype)


# -------- two-pass fallback kernels (only used if y won't fit in VMEM) -------
def _matmul_stats_kernel(a_ref, b_ref, y_ref, sum_ref, ssq_ref):
    @pl.when(pl.program_id(0) == 0)
    def _init():
        sum_ref[...] = jnp.zeros_like(sum_ref)
        ssq_ref[...] = jnp.zeros_like(ssq_ref)

    y = jnp.dot(a_ref[...], b_ref[...], preferred_element_type=jnp.float32)
    y_ref[...] = y
    sum_ref[...] += jnp.sum(y, axis=0, keepdims=True)
    ssq_ref[...] += jnp.sum(y * y, axis=0, keepdims=True)


def _bn_leaky_kernel(y_ref, sum_ref, ssq_ref, gamma_ref, beta_ref, o_ref, *, inv_count):
    mean = sum_ref[...] * inv_count
    var = jnp.maximum(ssq_ref[...] * inv_count - mean * mean, 0.0)
    scale = jax.lax.rsqrt(var + _BN_EPS) * gamma_ref[...]
    shift = beta_ref[...] - mean * scale
    y = y_ref[...] * scale + shift
    o_ref[...] = jnp.where(y >= 0.0, y, 0.2 * y).astype(o_ref.dtype)


# ------------------------------ pallas wrappers ------------------------------
def _pad_row(v, n_pad):
    return jnp.pad(v.reshape(1, -1).astype(jnp.float32), ((0, 0), (0, n_pad)))


def _pad_operands(a, b, Mp, Kp, Np):
    """Pad to tile-aligned shapes; keep everything bf16 (MXU-native)."""
    M, K = a.shape
    _, N = b.shape
    a_p = a if (M == Mp and K == Kp) else jnp.pad(a, ((0, Mp - M), (0, Kp - K)))
    a_p = a_p.astype(jnp.bfloat16)
    b_p = jnp.pad(b, ((0, Kp - K), (0, Np - N))).astype(jnp.bfloat16)
    return a_p, b_p


def _maybe_unpad(out, M, N, Mp, Np):
    if Mp != M or Np != N:
        out = out[:M, :N]
    return out


def _matmul_bias_leaky(a, b, bias, out_dtype):
    """LeakyReLU(a @ b + bias).  a:(M,K) bf16   b:(K,N) f32   bias:(N,)."""
    M, K = a.shape
    _, N = b.shape
    Kp, Np = _round_up(K, 128), _round_up(N, 128)
    tile_m, num_m, Mp = _m_tiling(M)
    a_p, b_p = _pad_operands(a, b, Mp, Kp, Np)
    bias_p = _pad_row(bias, Np - N)

    out = pl.pallas_call(
        _matmul_bias_leaky_kernel,
        out_shape=jax.ShapeDtypeStruct((Mp, Np), out_dtype),
        grid=(num_m,),
        in_specs=[
            pl.BlockSpec((tile_m, Kp), lambda i: (i, 0)),
            pl.BlockSpec((Kp, Np), lambda i: (0, 0)),
            pl.BlockSpec((1, Np), lambda i: (0, 0)),
        ],
        out_specs=pl.BlockSpec((tile_m, Np), lambda i: (i, 0)),
        compiler_params=pltpu.CompilerParams(
            dimension_semantics=("parallel",),
            vmem_limit_bytes=_VMEM_LIMIT),
    )(a_p, b_p, bias_p)
    return _maybe_unpad(out, M, N, Mp, Np)


def _matmul_bn_leaky(a, b, gamma, beta, out_dtype):
    """LeakyReLU(BatchNorm(a @ b)) with training-mode batch statistics."""
    M, K = a.shape
    _, N = b.shape
    Kp, Np = _round_up(K, 128), _round_up(N, 128)
    tile_m, num_m, Mp = _m_tiling(M)
    a_p, b_p = _pad_operands(a, b, Mp, Kp, Np)
    gamma_p = _pad_row(gamma, Np - N)
    beta_p = _pad_row(beta, Np - N)
    inv_count = 1.0 / M        # true-M divisor; zero pad rows add nothing to stats

    if Mp * Np * 4 <= _FUSED_Y_MAX_BYTES:
        # Single fused kernel; y never round-trips to HBM.
        # Index-map tricks: during phase 1 the A block is pinned to its last
        # phase-0 index (no re-fetch); during phase 0 the output block is
        # pinned to block 0 and never written (no garbage writebacks).
        out = pl.pallas_call(
            functools.partial(_fused_matmul_bn_leaky_kernel, inv_count=inv_count),
            out_shape=jax.ShapeDtypeStruct((Mp, Np), out_dtype),
            grid=(2, num_m),
            in_specs=[
                pl.BlockSpec((tile_m, Kp),
                             lambda p, i: (i * (1 - p) + (num_m - 1) * p, 0)),
                pl.BlockSpec((Kp, Np), lambda p, i: (0, 0)),
                pl.BlockSpec((1, Np), lambda p, i: (0, 0)),
                pl.BlockSpec((1, Np), lambda p, i: (0, 0)),
            ],
            out_specs=pl.BlockSpec((tile_m, Np), lambda p, i: (i * p, 0)),
            scratch_shapes=[
                pltpu.VMEM((num_m, tile_m, Np), jnp.float32),   # resident y
                pltpu.VMEM((1, Np), jnp.float32),               # column sum
                pltpu.VMEM((1, Np), jnp.float32),               # column sum-of-squares
            ],
            compiler_params=pltpu.CompilerParams(
                dimension_semantics=("arbitrary", "arbitrary"),
                vmem_limit_bytes=_VMEM_LIMIT),
        )(a_p, b_p, gamma_p, beta_p)
        return _maybe_unpad(out, M, N, Mp, Np)

    # Fallback (very large M*N): two-pass BN with y staged through HBM.
    y, col_sum, col_ssq = pl.pallas_call(
        _matmul_stats_kernel,
        out_shape=(jax.ShapeDtypeStruct((Mp, Np), jnp.float32),
                   jax.ShapeDtypeStruct((1, Np), jnp.float32),
                   jax.ShapeDtypeStruct((1, Np), jnp.float32)),
        grid=(num_m,),
        in_specs=[
            pl.BlockSpec((tile_m, Kp), lambda i: (i, 0)),
            pl.BlockSpec((Kp, Np), lambda i: (0, 0)),
        ],
        out_specs=(pl.BlockSpec((tile_m, Np), lambda i: (i, 0)),
                   pl.BlockSpec((1, Np), lambda i: (0, 0)),
                   pl.BlockSpec((1, Np), lambda i: (0, 0))),
        compiler_params=pltpu.CompilerParams(
            dimension_semantics=("arbitrary",),
            vmem_limit_bytes=_VMEM_LIMIT),
    )(a_p, b_p)

    out = pl.pallas_call(
        functools.partial(_bn_leaky_kernel, inv_count=inv_count),
        out_shape=jax.ShapeDtypeStruct((Mp, Np), out_dtype),
        grid=(num_m,),
        in_specs=[
            pl.BlockSpec((tile_m, Np), lambda i: (i, 0)),
            pl.BlockSpec((1, Np), lambda i: (0, 0)),
            pl.BlockSpec((1, Np), lambda i: (0, 0)),
            pl.BlockSpec((1, Np), lambda i: (0, 0)),
            pl.BlockSpec((1, Np), lambda i: (0, 0)),
        ],
        out_specs=pl.BlockSpec((tile_m, Np), lambda i: (i, 0)),
        compiler_params=pltpu.CompilerParams(
            dimension_semantics=("parallel",),
            vmem_limit_bytes=_VMEM_LIMIT),
    )(y, col_sum, col_ssq, gamma_p, beta_p)
    return _maybe_unpad(out, M, N, Mp, Np)


# ------------------------------- conv building -------------------------------
def _im2col(x_nhwc, kh, kw, stride, pad):
    """XLA data-movement glue: (N,H,W,C) -> (N*OH*OW, kh*kw*C)."""
    N, H, W, C = x_nhwc.shape
    xp = jnp.pad(x_nhwc, ((0, 0), (pad, pad), (pad, pad), (0, 0)))
    OH = (H + 2 * pad - kh) // stride + 1
    OW = (W + 2 * pad - kw) // stride + 1
    cols = []
    for i in range(kh):
        for j in range(kw):
            cols.append(xp[:, i:i + stride * OH:stride, j:j + stride * OW:stride, :])
    patches = jnp.stack(cols, axis=3)                     # (N, OH, OW, kh*kw, C)
    return patches.reshape(N * OH * OW, kh * kw * C), OH, OW


def conv_block(x_nhwc, w_oihw, bias, stride, pad, use_bn, gamma, beta, out_dtype):
    Cout, Cin, KH, KW = w_oihw.shape
    # bf16 BEFORE im2col: the kh*kw-amplified patch matrix is materialized at
    # half width (dominant HBM read term of the forward pass).
    patches, OH, OW = _im2col(x_nhwc.astype(jnp.bfloat16), KH, KW, stride, pad)
    w2 = jnp.transpose(w_oihw, (2, 3, 1, 0)).reshape(KH * KW * Cin, Cout)
    if use_bn:
        # conv bias cancels exactly under training-mode BatchNorm -> dropped.
        y = _matmul_bn_leaky(patches, w2, gamma, beta, out_dtype)
    else:
        y = _matmul_bias_leaky(patches, w2, bias, out_dtype)
    return y.reshape(x_nhwc.shape[0], OH, OW, Cout)


def conv_sigmoid_xla(x_nhwc, w_oihw, bias, stride, pad):
    """Tiny 1-channel head: Pallas launch + 128-lane padding > the op itself."""
    Cout, Cin, KH, KW = w_oihw.shape
    patches, OH, OW = _im2col(x_nhwc.astype(jnp.bfloat16), KH, KW, stride, pad)
    w2 = jnp.transpose(w_oihw, (2, 3, 1, 0)).reshape(KH * KW * Cin, Cout)
    y = jnp.dot(patches, w2.astype(jnp.bfloat16),
                preferred_element_type=jnp.float32) + bias
    y = jax.nn.sigmoid(y)
    return y.reshape(x_nhwc.shape[0], OH, OW, Cout)


# ---------------------------------- model ------------------------------------
def init_params(key, light_num, lp_dim, ndf):
    ks = jax.random.split(key, 16)
    n = lambda k, s: (jax.random.normal(k, s, jnp.float32) * 0.05)
    p = {
        "lin_w": n(ks[0], (lp_dim, light_num)),
        "lin_b": n(ks[1], (lp_dim,)),
        "w1": n(ks[2], (ndf, lp_dim + 3, 4, 4)), "b1": n(ks[3], (ndf,)),
        "w2": n(ks[4], (ndf * 2, ndf, 4, 4)), "b2": n(ks[5], (ndf * 2,)),
        "g2": 1.0 + 0.1 * jax.random.normal(ks[6], (ndf * 2,), jnp.float32),
        "be2": 0.1 * jax.random.normal(ks[7], (ndf * 2,), jnp.float32),
        "w3": n(ks[8], (ndf * 4, ndf * 2, 4, 4)), "b3": n(ks[9], (ndf * 4,)),
        "g3": 1.0 + 0.1 * jax.random.normal(ks[10], (ndf * 4,), jnp.float32),
        "be3": 0.1 * jax.random.normal(ks[11], (ndf * 4,), jnp.float32),
        "w4": n(ks[12], (ndf * 8, ndf * 4, 4, 4)), "b4": n(ks[13], (ndf * 8,)),
        "g4": jnp.ones((ndf * 8,), jnp.float32),
        "be4": jnp.zeros((ndf * 8,), jnp.float32),
        "w5": n(ks[14], (1, ndf * 8, 4, 4)), "b5": n(ks[15], (1,)),
    }
    return p


def lp_discriminator_forward(params, lp, x_nchw):
    N, _, H, W = x_nchw.shape
    # Tiny Linear (light_num -> lp_dim): plain XLA matmul (a Pallas launch plus
    # 128-lane padding would dwarf the op itself).
    out_lp = lp @ params["lin_w"].T + params["lin_b"]                   # (N, lp_dim)
    # .view(N, lp_dim, 1, 1).repeat(1,1,H,W) then cat((x, out_lp), dim=1)
    lp_map = jnp.broadcast_to(out_lp[:, None, None, :], (N, H, W, out_lp.shape[1]))
    x_nhwc = jnp.transpose(x_nchw, (0, 2, 3, 1))
    ipt = jnp.concatenate([x_nhwc, lp_map], axis=-1)      # channels: [x(3), lp_dim]

    # out1 / out4 only feed the next conv -> bf16; out2 / out3 are returned
    # discriminator features -> keep f32.
    out1 = conv_block(ipt, params["w1"], params["b1"], 2, 1, False, None, None,
                      jnp.bfloat16)
    out2 = conv_block(out1, params["w2"], params["b2"], 2, 1, True,
                      params["g2"], params["be2"], jnp.float32)
    out3 = conv_block(out2, params["w3"], params["b3"], 2, 1, True,
                      params["g3"], params["be3"], jnp.float32)
    out4 = conv_block(out3, params["w4"], params["b4"], 1, 1, True,
                      params["g4"], params["be4"], jnp.bfloat16)
    out5 = conv_sigmoid_xla(out4, params["w5"], params["b5"], 1, 1)

    to_nchw = lambda t: jnp.transpose(t, (0, 3, 1, 2))
    return [to_nchw(out2), to_nchw(out3)], to_nchw(out5)


# ----------------------- pure-JAX reference (sanity check) -------------------
def _ref_conv(x_nhwc, w_oihw, b, stride, pad):
    w_hwio = jnp.transpose(w_oihw, (2, 3, 1, 0))
    y = jax.lax.conv_general_dilated(
        x_nhwc, w_hwio, (stride, stride), [(pad, pad), (pad, pad)],
        dimension_numbers=("NHWC", "HWIO", "NHWC"))
    return y + b


def _ref_bn(y, g, b):
    mean = jnp.mean(y, axis=(0, 1, 2), keepdims=True)
    var = jnp.mean(jnp.square(y - mean), axis=(0, 1, 2), keepdims=True)
    return (y - mean) * jax.lax.rsqrt(var + _BN_EPS) * g + b


def _leaky(y):
    return jnp.where(y >= 0.0, y, 0.2 * y)


def reference_forward(params, lp, x_nchw):
    N, _, H, W = x_nchw.shape
    out_lp = lp @ params["lin_w"].T + params["lin_b"]
    lp_map = jnp.broadcast_to(out_lp[:, None, None, :], (N, H, W, out_lp.shape[1]))
    x_nhwc = jnp.transpose(x_nchw, (0, 2, 3, 1))
    ipt = jnp.concatenate([x_nhwc, lp_map], axis=-1)
    o1 = _leaky(_ref_conv(ipt, params["w1"], params["b1"], 2, 1))
    o2 = _leaky(_ref_bn(_ref_conv(o1, params["w2"], params["b2"], 2, 1), params["g2"], params["be2"]))
    o3 = _leaky(_ref_bn(_ref_conv(o2, params["w3"], params["b3"], 2, 1), params["g3"], params["be3"]))
    o4 = _leaky(_ref_bn(_ref_conv(o3, params["w4"], params["b4"], 1, 1), params["g4"], params["be4"]))
    o5 = jax.nn.sigmoid(_ref_conv(o4, params["w5"], params["b5"], 1, 1))
    to_nchw = lambda t: jnp.transpose(t, (0, 3, 1, 2))
    return [to_nchw(o2), to_nchw(o3)], to_nchw(o5)


if __name__ == "__main__":
    light_num, lp_dim, ndf = 16, 5, 8
    # Large enough that conv1 (8 x 576-row tiles) and the fused BN conv2
    # (2 x 576-row tiles) exercise multi-tile grids; conv4 exercises M padding.
    B, H, W = 2, 96, 96

    key = jax.random.PRNGKey(0)
    kp, klp, kx = jax.random.split(key, 3)
    params = init_params(kp, light_num, lp_dim, ndf)
    lp_in = jax.random.normal(klp, (B, light_num), jnp.float32)
    x_in = jax.random.normal(kx, (B, 3, H, W), jnp.float32)

    fwd = jax.jit(functools.partial(lp_discriminator_forward, params))
    (out2, out3), out5 = fwd(lp_in, x_in)
    jax.block_until_ready(out5)

    # three stride-2 k4p1 convs (-> H/8), then two stride-1 k4p1 convs (-1 each)
    assert out2.shape == (B, ndf * 2, H // 4, W // 4), out2.shape
    assert out3.shape == (B, ndf * 4, H // 8, W // 8), out3.shape
    assert out5.shape == (B, 1, H // 8 - 2, W // 8 - 2), out5.shape

    (r2, r3), r5 = reference_forward(params, lp_in, x_in)
    for got, ref in ((out2, r2), (out3, r3), (out5, r5)):
        err = jnp.max(jnp.abs(got.astype(jnp.float32) - ref))
        assert err < 5e-2, f"mismatch vs reference: {err}"

    print("KERNEL_OK")
</pallas_src>

<mosaic_0001>
module attributes {stable_mosaic.version = 11 : i64} {
  func.func @_matmul_bias_leaky_kernel(%arg0: i32, %arg1: memref<576x128xbf16, #tpu.memory_space<vmem>>, %arg2: memref<128x128xbf16, #tpu.memory_space<vmem>>, %arg3: memref<1x128xf32, #tpu.memory_space<vmem>>, %arg4: memref<576x128xbf16, #tpu.memory_space<vmem>>) attributes {dimension_semantics = [#tpu.dimension_semantics<parallel>], iteration_bounds = array<i64: 8>, scalar_prefetch = 0 : i64, scratch_operands = 0 : i64, tpu.core_type = #tpu.core_type<tc>, window_params = [{transform_indices = @transform_0, window_bounds = array<i64: 576, 128>}, {pipeline_mode = #tpu.pipeline_mode<synchronous>, transform_indices = @transform_1, window_bounds = array<i64: 128, 128>}, {pipeline_mode = #tpu.pipeline_mode<synchronous>, transform_indices = @transform_2, window_bounds = array<i64: 1, 128>}, {transform_indices = @transform_3, window_bounds = array<i64: 576, 128>}]} {
    %c0 = arith.constant 0 : index
    %c0_0 = arith.constant 0 : index
    %0 = vector.load %arg1[%c0, %c0_0] : memref<576x128xbf16, #tpu.memory_space<vmem>>, vector<576x128xbf16>
    %c0_1 = arith.constant 0 : index
    %c0_2 = arith.constant 0 : index
    %1 = vector.load %arg2[%c0_1, %c0_2] : memref<128x128xbf16, #tpu.memory_space<vmem>>, vector<128x128xbf16>
    %cst = arith.constant dense<0.000000e+00> : vector<576x128xf32>
    %2 = tpu.matmul %0, %1, %cst {dimension_numbers = #tpu.dot_dimension_numbers<[1], [0], [0], [1], [0, 0, 1, 1], [], []>} : vector<576x128xbf16>, vector<128x128xbf16>, vector<576x128xf32> -> vector<576x128xf32>
    %c0_3 = arith.constant 0 : index
    %c0_4 = arith.constant 0 : index
    %3 = vector.load %arg3[%c0_3, %c0_4] : memref<1x128xf32, #tpu.memory_space<vmem>>, vector<1x128xf32>
    %4 = vector.broadcast %3 : vector<1x128xf32> to vector<576x128xf32>
    %5 = arith.addf %2, %4 : vector<576x128xf32>
    %cst_5 = arith.constant 0.000000e+00 : f32
    %6 = vector.broadcast %cst_5 : f32 to vector<576x128xf32>
    %7 = arith.cmpf oge, %5, %6 : vector<576x128xf32>
    %cst_6 = arith.constant 2.000000e-01 : f32
    %8 = vector.broadcast %cst_6 : f32 to vector<576x128xf32>
    %9 = arith.mulf %8, %5 : vector<576x128xf32>
    %10 = arith.select %7, %5, %9 : vector<576x128xi1>, vector<576x128xf32>
    %11 = arith.truncf %10 : vector<576x128xf32> to vector<576x128xbf16>
    %c0_7 = arith.constant 0 : index
    %c0_8 = arith.constant 0 : index
    %12 = vector.load %arg4[%c0_7, %c0_8] : memref<576x128xbf16, #tpu.memory_space<vmem>>, vector<576x128xbf16>
    tpu.vector_store %arg4[%c0_7, %c0_8], %11 {strides = array<i32>} : memref<576x128xbf16, #tpu.memory_space<vmem>>, vector<576x128xbf16>,
    return
  }
  func.func @transform_0(%arg0: i32) -> (i32, i32) {
    %c0_i32 = arith.constant 0 : i32
    %c0_i32_0 = arith.constant 0 : i32
    return %arg0, %c0_i32 : i32, i32
  }
  func.func @transform_1(%arg0: i32) -> (i32, i32) {
    %c0_i32 = arith.constant 0 : i32
    %c0_i32_0 = arith.constant 0 : i32
    %c0_i32_1 = arith.constant 0 : i32
    return %c0_i32, %c0_i32_0 : i32, i32
  }
  func.func @transform_2(%arg0: i32) -> (i32, i32) {
    %c0_i32 = arith.constant 0 : i32
    %c0_i32_0 = arith.constant 0 : i32
    %c0_i32_1 = arith.constant 0 : i32
    return %c0_i32, %c0_i32_0 : i32, i32
  }
  func.func @transform_3(%arg0: i32) -> (i32, i32) {
    %c0_i32 = arith.constant 0 : i32
    %c0_i32_0 = arith.constant 0 : i32
    return %arg0, %c0_i32 : i32, i32
  }
}

module attributes {stable_mosaic.version = 11 : i64} {
  func.func @_fused_matmul_bn_leaky_kernel(%arg0: i32, %arg1: i32, %arg2: memref<576x128xbf16, #tpu.memory_space<vmem>>, %arg3: memref<128x128xbf16, #tpu.memory_space<vmem>>, %arg4: memref<1x128xf32, #tpu.memory_space<vmem>>, %arg5: memref<1x128xf32, #tpu.memory_space<vmem>>, %arg6: memref<576x128xf32, #tpu.memory_space<vmem>>, %arg7: memref<2x576x128xf32, #tpu.memory_space<vmem>>, %arg8: memref<1x128xf32, #tpu.memory_space<vmem>>, %arg9: memref<1x128xf32, #tpu.memory_space<vmem>>) attributes {dimension_semantics = [#tpu.dimension_semantics<arbitrary>, #tpu.dimension_semantics<arbitrary>], iteration_bounds = array<i64: 2, 2>, scalar_prefetch = 0 : i64, scratch_operands = 3 : i64, tpu.core_type = #tpu.core_type<tc>, window_params = [{transform_indices = @transform_0, window_bounds = array<i64: 576, 128>}, {pipeline_mode = #tpu.pipeline_mode<synchronous>, transform_indices = @transform_1, window_bounds = array<i64: 128, 128>}, {pipeline_mode = #tpu.pipeline_mode<synchronous>, transform_indices = @transform_2, window_bounds = array<i64: 1, 128>}, {pipeline_mode = #tpu.pipeline_mode<synchronous>, transform_indices = @transform_3, window_bounds = array<i64: 1, 128>}, {transform_indices = @transform_4, window_bounds = array<i64: 576, 128>}]} {
    %c0_i32 = arith.constant 0 : i32
    %0 = arith.cmpi eq, %arg0, %c0_i32 : i32
    %c0_i32_0 = arith.constant 0 : i32
    %1 = arith.cmpi eq, %arg1, %c0_i32_0 : i32
    %2 = arith.andi %0, %1 : i1
    %3 = arith.extui %2 : i1 to i32
    %c0_i32_1 = arith.constant 0 : i32
    %4 = arith.cmpi ne, %3, %c0_i32_1 : i32
    scf.if %4 {
      %cst = arith.constant 0.000000e+00 : f32
      %11 = vector.broadcast %cst : f32 to vector<1x128xf32>
      %c0 = arith.constant 0 : index
      %c0_5 = arith.constant 0 : index
      %12 = vector.load %arg8[%c0, %c0_5] : memref<1x128xf32, #tpu.memory_space<vmem>>, vector<1x128xf32>
      tpu.vector_store %arg8[%c0, %c0_5], %11 {strides = array<i32>} : memref<1x128xf32, #tpu.memory_space<vmem>>, vector<1x128xf32>,
      %cst_6 = arith.constant 0.000000e+00 : f32
      %13 = vector.broadcast %cst_6 : f32 to vector<1x128xf32>
      %c0_7 = arith.constant 0 : index
      %c0_8 = arith.constant 0 : index
      %14 = vector.load %arg9[%c0_7, %c0_8] : memref<1x128xf32, #tpu.memory_space<vmem>>, vector<1x128xf32>
      tpu.vector_store %arg9[%c0_7, %c0_8], %13 {strides = array<i32>} : memref<1x128xf32, #tpu.memory_space<vmem>>, vector<1x128xf32>,
    } else {
    }
    %c0_i32_2 = arith.constant 0 : i32
    %5 = arith.cmpi eq, %arg0, %c0_i32_2 : i32
    %6 = arith.extui %5 : i1 to i32
    %c0_i32_3 = arith.constant 0 : i32
    %7 = arith.cmpi ne, %6, %c0_i32_3 : i32
    scf.if %7 {
      %c0 = arith.constant 0 : index
      %c0_5 = arith.constant 0 : index
      %11 = vector.load %arg2[%c0, %c0_5] : memref<576x128xbf16, #tpu.memory_space<vmem>>, vector<576x128xbf16>
      %c0_6 = arith.constant 0 : index
      %c0_7 = arith.constant 0 : index
      %12 = vector.load %arg3[%c0_6, %c0_7] : memref<128x128xbf16, #tpu.memory_space<vmem>>, vector<128x128xbf16>
      %cst = arith.constant dense<0.000000e+00> : vector<576x128xf32>
      %13 = tpu.matmul %11, %12, %cst {dimension_numbers = #tpu.dot_dimension_numbers<[1], [0], [0], [1], [0, 0, 1, 1], [], []>} : vector<576x128xbf16>, vector<128x128xbf16>, vector<576x128xf32> -> vector<576x128xf32>
      %14 = arith.index_cast %arg1 : i32 to index
      %c0_8 = arith.constant 0 : index
      %c0_9 = arith.constant 0 : index
      %15 = vector.load %arg7[%14, %c0_8, %c0_9] : memref<2x576x128xf32, #tpu.memory_space<vmem>>, vector<1x576x128xf32>
      %16 = vector.shape_cast %15 : vector<1x576x128xf32> to vector<576x128xf32>
      %17 = vector.shape_cast %13 : vector<576x128xf32> to vector<1x576x128xf32>
      tpu.vector_store %arg7[%14, %c0_8, %c0_9], %17 {strides = array<i32>} : memref<2x576x128xf32, #tpu.memory_space<vmem>>, vector<1x576x128xf32>,
      %c0_10 = arith.constant 0 : index
      %c0_11 = arith.constant 0 : index
      %18 = vector.load %arg8[%c0_10, %c0_11] : memref<1x128xf32, #tpu.memory_space<vmem>>, vector<1x128xf32>
      %cst_12 = arith.constant dense<0.000000e+00> : vector<128xf32>
      %19 = vector.multi_reduction <add>, %13, %cst_12 [0] : vector<576x128xf32> to vector<128xf32>
      %20 = vector.shape_cast %19 : vector<128xf32> to vector<1x128xf32>
      %21 = arith.addf %18, %20 : vector<1x128xf32>
      %c0_13 = arith.constant 0 : index
      %c0_14 = arith.constant 0 : index
      %22 = vector.load %arg8[%c0_13, %c0_14] : memref<1x128xf32, #tpu.memory_space<vmem>>, vector<1x128xf32>
      tpu.vector_store %arg8[%c0_13, %c0_14], %21 {strides = array<i32>} : memref<1x128xf32, #tpu.memory_space<vmem>>, vector<1x128xf32>,
      %c0_15 = arith.constant 0 : index
      %c0_16 = arith.constant 0 : index
      %23 = vector.load %arg9[%c0_15, %c0_16] : memref<1x128xf32, #tpu.memory_space<vmem>>, vector<1x128xf32>
      %24 = arith.mulf %13, %13 : vector<576x128xf32>
      %cst_17 = arith.constant dense<0.000000e+00> : vector<128xf32>
      %25 = vector.multi_reduction <add>, %24, %cst_17 [0] : vector<576x128xf32> to vector<128xf32>
      %26 = vector.shape_cast %25 : vector<128xf32> to vector<1x128xf32>
      %27 = arith.addf %23, %26 : vector<1x128xf32>
      %c0_18 = arith.constant 0 : index
      %c0_19 = arith.constant 0 : index
      %28 = vector.load %arg9[%c0_18, %c0_19] : memref<1x128xf32, #tpu.memory_space<vmem>>, vector<1x128xf32>
      tpu.vector_store %arg9[%c0_18, %c0_19], %27 {strides = array<i32>} : memref<1x128xf32, #tpu.memory_space<vmem>>, vector<1x128xf32>,
    } else {
    }
    %c1_i32 = arith.constant 1 : i32
    %8 = arith.cmpi eq, %arg0, %c1_i32 : i32
    %9 = arith.extui %8 : i1 to i32
    %c0_i32_4 = arith.constant 0 : i32
    %10 = arith.cmpi ne, %9, %c0_i32_4 : i32
    scf.if %10 {
      %c0 = arith.constant 0 : index
      %c0_5 = arith.constant 0 : index
      %11 = vector.load %arg8[%c0, %c0_5] : memref<1x128xf32, #tpu.memory_space<vmem>>, vector<1x128xf32>
      %cst = arith.constant 8.68055562E-4 : f32
      %12 = vector.broadcast %cst : f32 to vector<1x128xf32>
      %13 = arith.mulf %11, %12 : vector<1x128xf32>
      %c0_6 = arith.constant 0 : index
      %c0_7 = arith.constant 0 : index
      %14 = vector.load %arg9[%c0_6, %c0_7] : memref<1x128xf32, #tpu.memory_space<vmem>>, vector<1x128xf32>
      %cst_8 = arith.constant 8.68055562E-4 : f32
      %15 = vector.broadcast %cst_8 : f32 to vector<1x128xf32>
      %16 = arith.mulf %14, %15 : vector<1x128xf32>
      %17 = arith.mulf %13, %13 : vector<1x128xf32>
      %18 = arith.subf %16, %17 : vector<1x128xf32>
      %cst_9 = arith.constant 0.000000e+00 : f32
      %19 = vector.broadcast %cst_9 : f32 to vector<1x128xf32>
      %20 = arith.maximumf %18, %19 : vector<1x128xf32>
      %cst_10 = arith.constant 9.99999974E-6 : f32
      %21 = vector.broadcast %cst_10 : f32 to vector<1x128xf32>
      %22 = arith.addf %20, %21 : vector<1x128xf32>
      %23 = math.rsqrt %22 : vector<1x128xf32>
      %c0_11 = arith.constant 0 : index
      %c0_12 = arith.constant 0 : index
      %24 = vector.load %arg4[%c0_11, %c0_12] : memref<1x128xf32, #tpu.memory_space<vmem>>, vector<1x128xf32>
      %25 = arith.mulf %23, %24 : vector<1x128xf32>
      %c0_13 = arith.constant 0 : index
      %c0_14 = arith.constant 0 : index
      %26 = vector.load %arg5[%c0_13, %c0_14] : memref<1x128xf32, #tpu.memory_space<vmem>>, vector<1x128xf32>
      %27 = arith.mulf %13, %25 : vector<1x128xf32>
      %28 = arith.subf %26, %27 : vector<1x128xf32>
      %29 = arith.index_cast %arg1 : i32 to index
      %c0_15 = arith.constant 0 : index
      %c0_16 = arith.constant 0 : index
      %30 = vector.load %arg7[%29, %c0_15, %c0_16] : memref<2x576x128xf32, #tpu.memory_space<vmem>>, vector<1x576x128xf32>
      %31 = vector.shape_cast %30 : vector<1x576x128xf32> to vector<576x128xf32>
      %32 = vector.broadcast %25 : vector<1x128xf32> to vector<576x128xf32>
      %33 = arith.mulf %31, %32 : vector<576x128xf32>
      %34 = vector.broadcast %28 : vector<1x128xf32> to vector<576x128xf32>
      %35 = arith.addf %33, %34 : vector<576x128xf32>
      %cst_17 = arith.constant 0.000000e+00 : f32
      %36 = vector.broadcast %cst_17 : f32 to vector<576x128xf32>
      %37 = arith.cmpf oge, %35, %36 : vector<576x128xf32>
      %cst_18 = arith.constant 2.000000e-01 : f32
      %38 = vector.broadcast %cst_18 : f32 to vector<576x128xf32>
      %39 = arith.mulf %38, %35 : vector<576x128xf32>
      %40 = arith.select %37, %35, %39 : vector<576x128xi1>, vector<576x128xf32>
      %c0_19 = arith.constant 0 : index
      %c0_20 = arith.constant 0 : index
      %41 = vector.load %arg6[%c0_19, %c0_20] : memref<576x128xf32, #tpu.memory_space<vmem>>, vector<576x128xf32>
      tpu.vector_store %arg6[%c0_19, %c0_20], %40 {strides = array<i32>} : memref<576x128xf32, #tpu.memory_space<vmem>>, vector<576x128xf32>,
    } else {
    }
    return
  }
  func.func @transform_0(%arg0: i32, %arg1: i32) -> (i32, i32) {
    %c1_i32 = arith.constant 1 : i32
    %0 = arith.subi %c1_i32, %arg0 : i32
    %1 = arith.muli %arg1, %0 : i32
    %c1_i32_0 = arith.constant 1 : i32
    %2 = arith.muli %c1_i32_0, %arg0 : i32
    %3 = arith.addi %1, %2 : i32
    %c0_i32 = arith.constant 0 : i32
    %c0_i32_1 = arith.constant 0 : i32
    return %3, %c0_i32 : i32, i32
  }
  func.func @transform_1(%arg0: i32, %arg1: i32) -> (i32, i32) {
    %c0_i32 = arith.constant 0 : i32
    %c0_i32_0 = arith.constant 0 : i32
    %c0_i32_1 = arith.constant 0 : i32
    return %c0_i32, %c0_i32_0 : i32, i32
  }
  func.func @transform_2(%arg0: i32, %arg1: i32) -> (i32, i32) {
    %c0_i32 = arith.constant 0 : i32
    %c0_i32_0 = arith.constant 0 : i32
    %c0_i32_1 = arith.constant 0 : i32
    return %c0_i32, %c0_i32_0 : i32, i32
  }
  func.func @transform_3(%arg0: i32, %arg1: i32) -> (i32, i32) {
    %c0_i32 = arith.constant 0 : i32
    %c0_i32_0 = arith.constant 0 : i32
    %c0_i32_1 = arith.constant 0 : i32
    return %c0_i32, %c0_i32_0 : i32, i32
  }
  func.func @transform_4(%arg0: i32, %arg1: i32) -> (i32, i32) {
    %0 = arith.muli %arg1, %arg0 : i32
    %c0_i32 = arith.constant 0 : i32
    %c0_i32_0 = arith.constant 0 : i32
    return %0, %c0_i32 : i32, i32
  }
}

module attributes {stable_mosaic.version = 11 : i64} {
  func.func @_fused_matmul_bn_leaky_kernel(%arg0: i32, %arg1: i32, %arg2: memref<288x256xbf16, #tpu.memory_space<vmem>>, %arg3: memref<256x128xbf16, #tpu.memory_space<vmem>>, %arg4: memref<1x128xf32, #tpu.memory_space<vmem>>, %arg5: memref<1x128xf32, #tpu.memory_space<vmem>>, %arg6: memref<288x128xf32, #tpu.memory_space<vmem>>, %arg7: memref<1x288x128xf32, #tpu.memory_space<vmem>>, %arg8: memref<1x128xf32, #tpu.memory_space<vmem>>, %arg9: memref<1x128xf32, #tpu.memory_space<vmem>>) attributes {dimension_semantics = [#tpu.dimension_semantics<arbitrary>, #tpu.dimension_semantics<arbitrary>], iteration_bounds = array<i64: 2, 1>, scalar_prefetch = 0 : i64, scratch_operands = 3 : i64, tpu.core_type = #tpu.core_type<tc>, window_params = [{transform_indices = @transform_0, window_bounds = array<i64: 288, 256>}, {pipeline_mode = #tpu.pipeline_mode<synchronous>, transform_indices = @transform_1, window_bounds = array<i64: 256, 128>}, {pipeline_mode = #tpu.pipeline_mode<synchronous>, transform_indices = @transform_2, window_bounds = array<i64: 1, 128>}, {pipeline_mode = #tpu.pipeline_mode<synchronous>, transform_indices = @transform_3, window_bounds = array<i64: 1, 128>}, {transform_indices = @transform_4, window_bounds = array<i64: 288, 128>}]} {
    %c0_i32 = arith.constant 0 : i32
    %0 = arith.cmpi eq, %arg0, %c0_i32 : i32
    %c0_i32_0 = arith.constant 0 : i32
    %1 = arith.cmpi eq, %arg1, %c0_i32_0 : i32
    %2 = arith.andi %0, %1 : i1
    %3 = arith.extui %2 : i1 to i32
    %c0_i32_1 = arith.constant 0 : i32
    %4 = arith.cmpi ne, %3, %c0_i32_1 : i32
    scf.if %4 {
      %cst = arith.constant 0.000000e+00 : f32
      %11 = vector.broadcast %cst : f32 to vector<1x128xf32>
      %c0 = arith.constant 0 : index
      %c0_5 = arith.constant 0 : index
      %12 = vector.load %arg8[%c0, %c0_5] : memref<1x128xf32, #tpu.memory_space<vmem>>, vector<1x128xf32>
      tpu.vector_store %arg8[%c0, %c0_5], %11 {strides = array<i32>} : memref<1x128xf32, #tpu.memory_space<vmem>>, vector<1x128xf32>,
      %cst_6 = arith.constant 0.000000e+00 : f32
      %13 = vector.broadcast %cst_6 : f32 to vector<1x128xf32>
      %c0_7 = arith.constant 0 : index
      %c0_8 = arith.constant 0 : index
      %14 = vector.load %arg9[%c0_7, %c0_8] : memref<1x128xf32, #tpu.memory_space<vmem>>, vector<1x128xf32>
      tpu.vector_store %arg9[%c0_7, %c0_8], %13 {strides = array<i32>} : memref<1x128xf32, #tpu.memory_space<vmem>>, vector<1x128xf32>,
    } else {
    }
    %c0_i32_2 = arith.constant 0 : i32
    %5 = arith.cmpi eq, %arg0, %c0_i32_2 : i32
    %6 = arith.extui %5 : i1 to i32
    %c0_i32_3 = arith.constant 0 : i32
    %7 = arith.cmpi ne, %6, %c0_i32_3 : i32
    scf.if %7 {
      %c0 = arith.constant 0 : index
      %c0_5 = arith.constant 0 : index
      %11 = vector.load %arg2[%c0, %c0_5] : memref<288x256xbf16, #tpu.memory_space<vmem>>, vector<288x256xbf16>
      %c0_6 = arith.constant 0 : index
      %c0_7 = arith.constant 0 : index
      %12 = vector.load %arg3[%c0_6, %c0_7] : memref<256x128xbf16, #tpu.memory_space<vmem>>, vector<256x128xbf16>
      %cst = arith.constant dense<0.000000e+00> : vector<288x128xf32>
      %13 = tpu.matmul %11, %12, %cst {dimension_numbers = #tpu.dot_dimension_numbers<[1], [0], [0], [1], [0, 0, 1, 1], [], []>} : vector<288x256xbf16>, vector<256x128xbf16>, vector<288x128xf32> -> vector<288x128xf32>
      %14 = arith.index_cast %arg1 : i32 to index
      %c0_8 = arith.constant 0 : index
      %c0_9 = arith.constant 0 : index
      %15 = vector.load %arg7[%14, %c0_8, %c0_9] : memref<1x288x128xf32, #tpu.memory_space<vmem>>, vector<1x288x128xf32>
      %16 = vector.shape_cast %15 : vector<1x288x128xf32> to vector<288x128xf32>
      %17 = vector.shape_cast %13 : vector<288x128xf32> to vector<1x288x128xf32>
      tpu.vector_store %arg7[%14, %c0_8, %c0_9], %17 {strides = array<i32>} : memref<1x288x128xf32, #tpu.memory_space<vmem>>, vector<1x288x128xf32>,
      %c0_10 = arith.constant 0 : index
      %c0_11 = arith.constant 0 : index
      %18 = vector.load %arg8[%c0_10, %c0_11] : memref<1x128xf32, #tpu.memory_space<vmem>>, vector<1x128xf32>
      %cst_12 = arith.constant dense<0.000000e+00> : vector<128xf32>
      %19 = vector.multi_reduction <add>, %13, %cst_12 [0] : vector<288x128xf32> to vector<128xf32>
      %20 = vector.shape_cast %19 : vector<128xf32> to vector<1x128xf32>
      %21 = arith.addf %18, %20 : vector<1x128xf32>
      %c0_13 = arith.constant 0 : index
      %c0_14 = arith.constant 0 : index
      %22 = vector.load %arg8[%c0_13, %c0_14] : memref<1x128xf32, #tpu.memory_space<vmem>>, vector<1x128xf32>
      tpu.vector_store %arg8[%c0_13, %c0_14], %21 {strides = array<i32>} : memref<1x128xf32, #tpu.memory_space<vmem>>, vector<1x128xf32>,
      %c0_15 = arith.constant 0 : index
      %c0_16 = arith.constant 0 : index
      %23 = vector.load %arg9[%c0_15, %c0_16] : memref<1x128xf32, #tpu.memory_space<vmem>>, vector<1x128xf32>
      %24 = arith.mulf %13, %13 : vector<288x128xf32>
      %cst_17 = arith.constant dense<0.000000e+00> : vector<128xf32>
      %25 = vector.multi_reduction <add>, %24, %cst_17 [0] : vector<288x128xf32> to vector<128xf32>
      %26 = vector.shape_cast %25 : vector<128xf32> to vector<1x128xf32>
      %27 = arith.addf %23, %26 : vector<1x128xf32>
      %c0_18 = arith.constant 0 : index
      %c0_19 = arith.constant 0 : index
      %28 = vector.load %arg9[%c0_18, %c0_19] : memref<1x128xf32, #tpu.memory_space<vmem>>, vector<1x128xf32>
      tpu.vector_store %arg9[%c0_18, %c0_19], %27 {strides = array<i32>} : memref<1x128xf32, #tpu.memory_space<vmem>>, vector<1x128xf32>,
    } else {
    }
    %c1_i32 = arith.constant 1 : i32
    %8 = arith.cmpi eq, %arg0, %c1_i32 : i32
    %9 = arith.extui %8 : i1 to i32
    %c0_i32_4 = arith.constant 0 : i32
    %10 = arith.cmpi ne, %9, %c0_i32_4 : i32
    scf.if %10 {
      %c0 = arith.constant 0 : index
      %c0_5 = arith.constant 0 : index
      %11 = vector.load %arg8[%c0, %c0_5] : memref<1x128xf32, #tpu.memory_space<vmem>>, vector<1x128xf32>
      %cst = arith.constant 0.00347222225 : f32
      %12 = vector.broadcast %cst : f32 to vector<1x128xf32>
      %13 = arith.mulf %11, %12 : vector<1x128xf32>
      %c0_6 = arith.constant 0 : index
      %c0_7 = arith.constant 0 : index
      %14 = vector.load %arg9[%c0_6, %c0_7] : memref<1x128xf32, #tpu.memory_space<vmem>>, vector<1x128xf32>
      %cst_8 = arith.constant 0.00347222225 : f32
      %15 = vector.broadcast %cst_8 : f32 to vector<1x128xf32>
      %16 = arith.mulf %14, %15 : vector<1x128xf32>
      %17 = arith.mulf %13, %13 : vector<1x128xf32>
      %18 = arith.subf %16, %17 : vector<1x128xf32>
      %cst_9 = arith.constant 0.000000e+00 : f32
      %19 = vector.broadcast %cst_9 : f32 to vector<1x128xf32>
      %20 = arith.maximumf %18, %19 : vector<1x128xf32>
      %cst_10 = arith.constant 9.99999974E-6 : f32
      %21 = vector.broadcast %cst_10 : f32 to vector<1x128xf32>
      %22 = arith.addf %20, %21 : vector<1x128xf32>
      %23 = math.rsqrt %22 : vector<1x128xf32>
      %c0_11 = arith.constant 0 : index
      %c0_12 = arith.constant 0 : index
      %24 = vector.load %arg4[%c0_11, %c0_12] : memref<1x128xf32, #tpu.memory_space<vmem>>, vector<1x128xf32>
      %25 = arith.mulf %23, %24 : vector<1x128xf32>
      %c0_13 = arith.constant 0 : index
      %c0_14 = arith.constant 0 : index
      %26 = vector.load %arg5[%c0_13, %c0_14] : memref<1x128xf32, #tpu.memory_space<vmem>>, vector<1x128xf32>
      %27 = arith.mulf %13, %25 : vector<1x128xf32>
      %28 = arith.subf %26, %27 : vector<1x128xf32>
      %29 = arith.index_cast %arg1 : i32 to index
      %c0_15 = arith.constant 0 : index
      %c0_16 = arith.constant 0 : index
      %30 = vector.load %arg7[%29, %c0_15, %c0_16] : memref<1x288x128xf32, #tpu.memory_space<vmem>>, vector<1x288x128xf32>
      %31 = vector.shape_cast %30 : vector<1x288x128xf32> to vector<288x128xf32>
      %32 = vector.broadcast %25 : vector<1x128xf32> to vector<288x128xf32>
      %33 = arith.mulf %31, %32 : vector<288x128xf32>
      %34 = vector.broadcast %28 : vector<1x128xf32> to vector<288x128xf32>
      %35 = arith.addf %33, %34 : vector<288x128xf32>
      %cst_17 = arith.constant 0.000000e+00 : f32
      %36 = vector.broadcast %cst_17 : f32 to vector<288x128xf32>
      %37 = arith.cmpf oge, %35, %36 : vector<288x128xf32>
      %cst_18 = arith.constant 2.000000e-01 : f32
      %38 = vector.broadcast %cst_18 : f32 to vector<288x128xf32>
      %39 = arith.mulf %38, %35 : vector<288x128xf32>
      %40 = arith.select %37, %35, %39 : vector<288x128xi1>, vector<288x128xf32>
      %c0_19 = arith.constant 0 : index
      %c0_20 = arith.constant 0 : index
      %41 = vector.load %arg6[%c0_19, %c0_20] : memref<288x128xf32, #tpu.memory_space<vmem>>, vector<288x128xf32>
      tpu.vector_store %arg6[%c0_19, %c0_20], %40 {strides = array<i32>} : memref<288x128xf32, #tpu.memory_space<vmem>>, vector<288x128xf32>,
    } else {
    }
    return
  }
  func.func @transform_0(%arg0: i32, %arg1: i32) -> (i32, i32) {
    %c1_i32 = arith.constant 1 : i32
    %0 = arith.subi %c1_i32, %arg0 : i32
    %1 = arith.muli %arg1, %0 : i32
    %c0_i32 = arith.constant 0 : i32
    %2 = arith.muli %c0_i32, %arg0 : i32
    %3 = arith.addi %1, %2 : i32
    %c0_i32_0 = arith.constant 0 : i32
    %c0_i32_1 = arith.constant 0 : i32
    return %3, %c0_i32_0 : i32, i32
  }
  func.func @transform_1(%arg0: i32, %arg1: i32) -> (i32, i32) {
    %c0_i32 = arith.constant 0 : i32
    %c0_i32_0 = arith.constant 0 : i32
    %c0_i32_1 = arith.constant 0 : i32
    return %c0_i32, %c0_i32_0 : i32, i32
  }
  func.func @transform_2(%arg0: i32, %arg1: i32) -> (i32, i32) {
    %c0_i32 = arith.constant 0 : i32
    %c0_i32_0 = arith.constant 0 : i32
    %c0_i32_1 = arith.constant 0 : i32
    return %c0_i32, %c0_i32_0 : i32, i32
  }
  func.func @transform_3(%arg0: i32, %arg1: i32) -> (i32, i32) {
    %c0_i32 = arith.constant 0 : i32
    %c0_i32_0 = arith.constant 0 : i32
    %c0_i32_1 = arith.constant 0 : i32
    return %c0_i32, %c0_i32_0 : i32, i32
  }
  func.func @transform_4(%arg0: i32, %arg1: i32) -> (i32, i32) {
    %0 = arith.muli %arg1, %arg0 : i32
    %c0_i32 = arith.constant 0 : i32
    %c0_i32_0 = arith.constant 0 : i32
    return %0, %c0_i32 : i32, i32
  }
}

module attributes {stable_mosaic.version = 11 : i64} {
  func.func @_fused_matmul_bn_leaky_kernel(%arg0: i32, %arg1: i32, %arg2: memref<256x512xbf16, #tpu.memory_space<vmem>>, %arg3: memref<512x128xbf16, #tpu.memory_space<vmem>>, %arg4: memref<1x128xf32, #tpu.memory_space<vmem>>, %arg5: memref<1x128xf32, #tpu.memory_space<vmem>>, %arg6: memref<256x128xbf16, #tpu.memory_space<vmem>>, %arg7: memref<1x256x128xf32, #tpu.memory_space<vmem>>, %arg8: memref<1x128xf32, #tpu.memory_space<vmem>>, %arg9: memref<1x128xf32, #tpu.memory_space<vmem>>) attributes {dimension_semantics = [#tpu.dimension_semantics<arbitrary>, #tpu.dimension_semantics<arbitrary>], iteration_bounds = array<i64: 2, 1>, scalar_prefetch = 0 : i64, scratch_operands = 3 : i64, tpu.core_type = #tpu.core_type<tc>, window_params = [{transform_indices = @transform_0, window_bounds = array<i64: 256, 512>}, {pipeline_mode = #tpu.pipeline_mode<synchronous>, transform_indices = @transform_1, window_bounds = array<i64: 512, 128>}, {pipeline_mode = #tpu.pipeline_mode<synchronous>, transform_indices = @transform_2, window_bounds = array<i64: 1, 128>}, {pipeline_mode = #tpu.pipeline_mode<synchronous>, transform_indices = @transform_3, window_bounds = array<i64: 1, 128>}, {transform_indices = @transform_4, window_bounds = array<i64: 256, 128>}]} {
    %c0_i32 = arith.constant 0 : i32
    %0 = arith.cmpi eq, %arg0, %c0_i32 : i32
    %c0_i32_0 = arith.constant 0 : i32
    %1 = arith.cmpi eq, %arg1, %c0_i32_0 : i32
    %2 = arith.andi %0, %1 : i1
    %3 = arith.extui %2 : i1 to i32
    %c0_i32_1 = arith.constant 0 : i32
    %4 = arith.cmpi ne, %3, %c0_i32_1 : i32
    scf.if %4 {
      %cst = arith.constant 0.000000e+00 : f32
      %11 = vector.broadcast %cst : f32 to vector<1x128xf32>
      %c0 = arith.constant 0 : index
      %c0_5 = arith.constant 0 : index
      %12 = vector.load %arg8[%c0, %c0_5] : memref<1x128xf32, #tpu.memory_space<vmem>>, vector<1x128xf32>
      tpu.vector_store %arg8[%c0, %c0_5], %11 {strides = array<i32>} : memref<1x128xf32, #tpu.memory_space<vmem>>, vector<1x128xf32>,
      %cst_6 = arith.constant 0.000000e+00 : f32
      %13 = vector.broadcast %cst_6 : f32 to vector<1x128xf32>
      %c0_7 = arith.constant 0 : index
      %c0_8 = arith.constant 0 : index
      %14 = vector.load %arg9[%c0_7, %c0_8] : memref<1x128xf32, #tpu.memory_space<vmem>>, vector<1x128xf32>
      tpu.vector_store %arg9[%c0_7, %c0_8], %13 {strides = array<i32>} : memref<1x128xf32, #tpu.memory_space<vmem>>, vector<1x128xf32>,
    } else {
    }
    %c0_i32_2 = arith.constant 0 : i32
    %5 = arith.cmpi eq, %arg0, %c0_i32_2 : i32
    %6 = arith.extui %5 : i1 to i32
    %c0_i32_3 = arith.constant 0 : i32
    %7 = arith.cmpi ne, %6, %c0_i32_3 : i32
    scf.if %7 {
      %c0 = arith.constant 0 : index
      %c0_5 = arith.constant 0 : index
      %11 = vector.load %arg2[%c0, %c0_5] : memref<256x512xbf16, #tpu.memory_space<vmem>>, vector<256x512xbf16>
      %c0_6 = arith.constant 0 : index
      %c0_7 = arith.constant 0 : index
      %12 = vector.load %arg3[%c0_6, %c0_7] : memref<512x128xbf16, #tpu.memory_space<vmem>>, vector<512x128xbf16>
      %cst = arith.constant dense<0.000000e+00> : vector<256x128xf32>
      %13 = tpu.matmul %11, %12, %cst {dimension_numbers = #tpu.dot_dimension_numbers<[1], [0], [0], [1], [0, 0, 1, 1], [], []>} : vector<256x512xbf16>, vector<512x128xbf16>, vector<256x128xf32> -> vector<256x128xf32>
      %14 = arith.index_cast %arg1 : i32 to index
      %c0_8 = arith.constant 0 : index
      %c0_9 = arith.constant 0 : index
      %15 = vector.load %arg7[%14, %c0_8, %c0_9] : memref<1x256x128xf32, #tpu.memory_space<vmem>>, vector<1x256x128xf32>
      %16 = vector.shape_cast %15 : vector<1x256x128xf32> to vector<256x128xf32>
      %17 = vector.shape_cast %13 : vector<256x128xf32> to vector<1x256x128xf32>
      tpu.vector_store %arg7[%14, %c0_8, %c0_9], %17 {strides = array<i32>} : memref<1x256x128xf32, #tpu.memory_space<vmem>>, vector<1x256x128xf32>,
      %c0_10 = arith.constant 0 : index
      %c0_11 = arith.constant 0 : index
      %18 = vector.load %arg8[%c0_10, %c0_11] : memref<1x128xf32, #tpu.memory_space<vmem>>, vector<1x128xf32>
      %cst_12 = arith.constant dense<0.000000e+00> : vector<128xf32>
      %19 = vector.multi_reduction <add>, %13, %cst_12 [0] : vector<256x128xf32> to vector<128xf32>
      %20 = vector.shape_cast %19 : vector<128xf32> to vector<1x128xf32>
      %21 = arith.addf %18, %20 : vector<1x128xf32>
      %c0_13 = arith.constant 0 : index
      %c0_14 = arith.constant 0 : index
      %22 = vector.load %arg8[%c0_13, %c0_14] : memref<1x128xf32, #tpu.memory_space<vmem>>, vector<1x128xf32>
      tpu.vector_store %arg8[%c0_13, %c0_14], %21 {strides = array<i32>} : memref<1x128xf32, #tpu.memory_space<vmem>>, vector<1x128xf32>,
      %c0_15 = arith.constant 0 : index
      %c0_16 = arith.constant 0 : index
      %23 = vector.load %arg9[%c0_15, %c0_16] : memref<1x128xf32, #tpu.memory_space<vmem>>, vector<1x128xf32>
      %24 = arith.mulf %13, %13 : vector<256x128xf32>
      %cst_17 = arith.constant dense<0.000000e+00> : vector<128xf32>
      %25 = vector.multi_reduction <add>, %24, %cst_17 [0] : vector<256x128xf32> to vector<128xf32>
      %26 = vector.shape_cast %25 : vector<128xf32> to vector<1x128xf32>
      %27 = arith.addf %23, %26 : vector<1x128xf32>
      %c0_18 = arith.constant 0 : index
      %c0_19 = arith.constant 0 : index
      %28 = vector.load %arg9[%c0_18, %c0_19] : memref<1x128xf32, #tpu.memory_space<vmem>>, vector<1x128xf32>
      tpu.vector_store %arg9[%c0_18, %c0_19], %27 {strides = array<i32>} : memref<1x128xf32, #tpu.memory_space<vmem>>, vector<1x128xf32>,
    } else {
    }
    %c1_i32 = arith.constant 1 : i32
    %8 = arith.cmpi eq, %arg0, %c1_i32 : i32
    %9 = arith.extui %8 : i1 to i32
    %c0_i32_4 = arith.constant 0 : i32
    %10 = arith.cmpi ne, %9, %c0_i32_4 : i32
    scf.if %10 {
      %c0 = arith.constant 0 : index
      %c0_5 = arith.constant 0 : index
      %11 = vector.load %arg8[%c0, %c0_5] : memref<1x128xf32, #tpu.memory_space<vmem>>, vector<1x128xf32>
      %cst = arith.constant 0.00413223123 : f32
      %12 = vector.broadcast %cst : f32 to vector<1x128xf32>
      %13 = arith.mulf %11, %12 : vector<1x128xf32>
      %c0_6 = arith.constant 0 : index
      %c0_7 = arith.constant 0 : index
      %14 = vector.load %arg9[%c0_6, %c0_7] : memref<1x128xf32, #tpu.memory_space<vmem>>, vector<1x128xf32>
      %cst_8 = arith.constant 0.00413223123 : f32
      %15 = vector.broadcast %cst_8 : f32 to vector<1x128xf32>
      %16 = arith.mulf %14, %15 : vector<1x128xf32>
      %17 = arith.mulf %13, %13 : vector<1x128xf32>
      %18 = arith.subf %16, %17 : vector<1x128xf32>
      %cst_9 = arith.constant 0.000000e+00 : f32
      %19 = vector.broadcast %cst_9 : f32 to vector<1x128xf32>
      %20 = arith.maximumf %18, %19 : vector<1x128xf32>
      %cst_10 = arith.constant 9.99999974E-6 : f32
      %21 = vector.broadcast %cst_10 : f32 to vector<1x128xf32>
      %22 = arith.addf %20, %21 : vector<1x128xf32>
      %23 = math.rsqrt %22 : vector<1x128xf32>
      %c0_11 = arith.constant 0 : index
      %c0_12 = arith.constant 0 : index
      %24 = vector.load %arg4[%c0_11, %c0_12] : memref<1x128xf32, #tpu.memory_space<vmem>>, vector<1x128xf32>
      %25 = arith.mulf %23, %24 : vector<1x128xf32>
      %c0_13 = arith.constant 0 : index
      %c0_14 = arith.constant 0 : index
      %26 = vector.load %arg5[%c0_13, %c0_14] : memref<1x128xf32, #tpu.memory_space<vmem>>, vector<1x128xf32>
      %27 = arith.mulf %13, %25 : vector<1x128xf32>
      %28 = arith.subf %26, %27 : vector<1x128xf32>
      %29 = arith.index_cast %arg1 : i32 to index
      %c0_15 = arith.constant 0 : index
      %c0_16 = arith.constant 0 : index
      %30 = vector.load %arg7[%29, %c0_15, %c0_16] : memref<1x256x128xf32, #tpu.memory_space<vmem>>, vector<1x256x128xf32>
      %31 = vector.shape_cast %30 : vector<1x256x128xf32> to vector<256x128xf32>
      %32 = vector.broadcast %25 : vector<1x128xf32> to vector<256x128xf32>
      %33 = arith.mulf %31, %32 : vector<256x128xf32>
      %34 = vector.broadcast %28 : vector<1x128xf32> to vector<256x128xf32>
      %35 = arith.addf %33, %34 : vector<256x128xf32>
      %cst_17 = arith.constant 0.000000e+00 : f32
      %36 = vector.broadcast %cst_17 : f32 to vector<256x128xf32>
      %37 = arith.cmpf oge, %35, %36 : vector<256x128xf32>
      %cst_18 = arith.constant 2.000000e-01 : f32
      %38 = vector.broadcast %cst_18 : f32 to vector<256x128xf32>
      %39 = arith.mulf %38, %35 : vector<256x128xf32>
      %40 = arith.select %37, %35, %39 : vector<256x128xi1>, vector<256x128xf32>
      %41 = arith.truncf %40 : vector<256x128xf32> to vector<256x128xbf16>
      %c0_19 = arith.constant 0 : index
      %c0_20 = arith.constant 0 : index
      %42 = vector.load %arg6[%c0_19, %c0_20] : memref<256x128xbf16, #tpu.memory_space<vmem>>, vector<256x128xbf16>
      tpu.vector_store %arg6[%c0_19, %c0_20], %41 {strides = array<i32>} : memref<256x128xbf16, #tpu.memory_space<vmem>>, vector<256x128xbf16>,
    } else {
    }
    return
  }
  func.func @transform_0(%arg0: i32, %arg1: i32) -> (i32, i32) {
    %c1_i32 = arith.constant 1 : i32
    %0 = arith.subi %c1_i32, %arg0 : i32
    %1 = arith.muli %arg1, %0 : i32
    %c0_i32 = arith.constant 0 : i32
    %2 = arith.muli %c0_i32, %arg0 : i32
    %3 = arith.addi %1, %2 : i32
    %c0_i32_0 = arith.constant 0 : i32
    %c0_i32_1 = arith.constant 0 : i32
    return %3, %c0_i32_0 : i32, i32
  }
  func.func @transform_1(%arg0: i32, %arg1: i32) -> (i32, i32) {
    %c0_i32 = arith.constant 0 : i32
    %c0_i32_0 = arith.constant 0 : i32
    %c0_i32_1 = arith.constant 0 : i32
    return %c0_i32, %c0_i32_0 : i32, i32
  }
  func.func @transform_2(%arg0: i32, %arg1: i32) -> (i32, i32) {
    %c0_i32 = arith.constant 0 : i32
    %c0_i32_0 = arith.constant 0 : i32
    %c0_i32_1 = arith.constant 0 : i32
    return %c0_i32, %c0_i32_0 : i32, i32
  }
  func.func @transform_3(%arg0: i32, %arg1: i32) -> (i32, i32) {
    %c0_i32 = arith.constant 0 : i32
    %c0_i32_0 = arith.constant 0 : i32
    %c0_i32_1 = arith.constant 0 : i32
    return %c0_i32, %c0_i32_0 : i32, i32
  }
  func.func @transform_4(%arg0: i32, %arg1: i32) -> (i32, i32) {
    %0 = arith.muli %arg1, %arg0 : i32
    %c0_i32 = arith.constant 0 : i32
    %c0_i32_0 = arith.constant 0 : i32
    return %0, %c0_i32 : i32, i32
  }
}

</mosaic_0001>

<llo_original>
// kernel: lp_discriminator_forward.4
$region0: #{lp_discriminator_forward.4}
  #allocation0 [shape = 'u32[]', space=smem, size = 0x4, offset = 0x4, fixed_abs, tag = 'smem constant byte address 0x4 - core index']
  #allocation1 [shape = 'u32[72,128]{1,0:T(1,128)}', space=vmem, size = 0x9000, scoped, tag = 'internal scratch']
  %s0 = inlined_call_operand.vmem [shape: bf16[4608,128], index: 0, kind: input, shape index: {}]
  %s1 = inlined_call_operand.vmem [shape: bf16[128,128], index: 1, kind: input, shape index: {}]
  %s2 = inlined_call_operand.vmem [shape: f32[1,128], index: 2, kind: input, shape index: {}]
  %s3 = inlined_call_operand.vmem [shape: bf16[4608,128], index: 3, kind: output, shape index: {}]
  %s4 = sld [smem:[#allocation0]]
  $region45: #{lp_discriminator_forward.4} parent=0
    _
  %s6 = ssub.s32 1, %s4
  %s7 = scalar_select 0, %s6, %s4
  loop: start=0, step=1, limit=10
  $region2: #{lp_discriminator_forward.4} parent=0 // loop_pre_header
    _
  $region3: #{lp_discriminator_forward.4} parent=0 // loop_header
    %s9 = sphi 0, %s13
    %p10 = scmp.ge.s32.totalorder %s9, 10
    %s19 = sphi 0, %s21
    %s22 = sphi 0, %s19
    %s23 = sphi 0, %s22
    %s39 = sphi 0, %s23
    %s43 = sphi 0, %s43
    %s45 = sphi 0, %s43
    %s46 = sphi 0, %s45
    %s60 = sphi 0, %s46
    %s64 = sphi 0, %s64
    %s66 = sphi 0, %s64
    %s67 = sphi 0, %s66
    %s81 = sphi 0, %s67
    %s87 = sphi 0, %s89
    %s90 = sphi 0, %s87
    %s91 = sphi 0, %s90
    %s107 = sphi 0, %s91
  $region4: #{lp_discriminator_forward.4} parent=0 // loop_header_branch
    %12 = sbr.rel (%p10) target = $region8
  $region5: #{lp_discriminator_forward.4} parent=0 // loop_body
    %s14 = ssub.s32 %s9, 1
    %s15 = ssub.s32 %s9, 2
    %s16 = sadd.s32 %s9, 1
    %s17 = ssub.s32 %s9, %s16
    %p18 = scmp.eq.s32.totalorder %s17, 0
    %s20 = sadd.s32 %s19, 1
    %s21 = scalar_select %p18, %s19, %s20
    %p24 = pneg %p18
    %p25 = scmp.eq.s32.totalorder %s9, 7
    %p26 = por %p24, %p25
    %p27 = scmp.ne.s32.totalorder %s19, %s22
    %p28 = scmp.eq.s32.totalorder %s9, 0
    %p29 = por %p27, %p28
    %p30 = scmp.ne.s32.totalorder %s19, %s22
    %p31 = scmp.eq.s32.totalorder %s14, 7
    %p32 = por %p30, %p31
    %p33 = scmp.ne.s32.totalorder %s22, %s23
    %p34 = scmp.eq.s32.totalorder %s14, 0
    %p35 = por %p33, %p34
    %p36 = scmp.ne.s32.totalorder %s22, %s23
    %p37 = scmp.eq.s32.totalorder %s15, 7
    %p38 = por %p36, %p37
    %p40 = scmp.ne.s32.totalorder %s23, %s39
    %p41 = scmp.eq.s32.totalorder %s15, 0
    %p42 = por %p40, %p41
    %s44 = sadd.s32 %s43, 1
    %p47 = scmp.eq.s32.totalorder %s9, 7
    %p48 = scmp.ne.s32.totalorder %s43, %s45
    %p49 = scmp.eq.s32.totalorder %s9, 0
    %p50 = por %p48, %p49
    %p51 = scmp.ne.s32.totalorder %s43, %s45
    %p52 = scmp.eq.s32.totalorder %s14, 7
    %p53 = por %p51, %p52
    %p54 = scmp.ne.s32.totalorder %s45, %s46
    %p55 = scmp.eq.s32.totalorder %s14, 0
    %p56 = por %p54, %p55
    %p57 = scmp.ne.s32.totalorder %s45, %s46
    %p58 = scmp.eq.s32.totalorder %s15, 7
    %p59 = por %p57, %p58
    %p61 = scmp.ne.s32.totalorder %s46, %s60
    %p62 = scmp.eq.s32.totalorder %s15, 0
    %p63 = por %p61, %p62
    %s65 = sadd.s32 %s64, 1
    %p68 = scmp.eq.s32.totalorder %s9, 7
    %p69 = scmp.ne.s32.totalorder %s64, %s66
    %p70 = scmp.eq.s32.totalorder %s9, 0
    %p71 = por %p69, %p70
    %p72 = scmp.ne.s32.totalorder %s64, %s66
    %p73 = scmp.eq.s32.totalorder %s14, 7
    %p74 = por %p72, %p73
    %p75 = scmp.ne.s32.totalorder %s66, %s67
    %p76 = scmp.eq.s32.totalorder %s14, 0
    %p77 = por %p75, %p76
    %p78 = scmp.ne.s32.totalorder %s66, %s67
    %p79 = scmp.eq.s32.totalorder %s15, 7
    %p80 = por %p78, %p79
    %p82 = scmp.ne.s32.totalorder %s67, %s81
    %p83 = scmp.eq.s32.totalorder %s15, 0
    %p84 = por %p82, %p83
    %s85 = ssub.s32 %s9, %s16
    %p86 = scmp.eq.s32.totalorder %s85, 0
    %s88 = sadd.s32 %s87, 1
    %s89 = scalar_select %p86, %s87, %s88
    %p92 = pneg %p86
    %p93 = scmp.eq.s32.totalorder %s9, 7
    %p94 = por %p92, %p93
    %p95 = scmp.ne.s32.totalorder %s87, %s90
    %p96 = scmp.eq.s32.totalorder %s9, 0
    %p97 = por %p95, %p96
    %p98 = scmp.ne.s32.totalorder %s87, %s90
    %p99 = scmp.eq.s32.totalorder %s14, 7
    %p100 = por %p98, %p99
    %p101 = scmp.ne.s32.totalorder %s90, %s91
    %p102 = scmp.eq.s32.totalorder %s14, 0
    %p103 = por %p101, %p102
    %p104 = scmp.ne.s32.totalorder %s90, %s91
    %p105 = scmp.eq.s32.totalorder %s15, 7
    %p106 = por %p104, %p105
    %p108 = scmp.ne.s32.totalorder %s91, %s107
    %p109 = scmp.eq.s32.totalorder %s15, 0
    %p110 = por %p108, %p109
    %p111 = scmp.le.s32.totalorder 1, %s9
    %p112 = scmp.lt.s32.totalorder %s9, 9
    %p113 = pnand %p111, %p112
    %p114 = pneg %p113
    // Predicated region
    $region9: #{lp_discriminator_forward.4} parent=5 // pred_check
      _
    $region10: #{lp_discriminator_forward.4} parent=5 // pred_check_branch
      %116 = sbr.rel (%p113) target = $region12
    $region11: #{lp_discriminator_forward.4} parent=5 // pred_region
      %s117 = ssub.s32 %s9, 1
      // Predicated region
      $region13: #{lp_discriminator_forward.4} parent=11 // pred_check
        %p118 = pneg %p56
      $region14: #{lp_discriminator_forward.4} parent=11 // pred_check_branch
        %120 = sbr.rel (%p118) target = $region16
      $region15: #{lp_discriminator_forward.4} parent=11 // pred_region
        _
      $region16: #{lp_discriminator_forward.4} parent=11 // pred_fallthru
        _
      // Predicated region
      $region17: #{lp_discriminator_forward.4} parent=11 // pred_check
        %p121 = pneg %p77
      $region18: #{lp_discriminator_forward.4} parent=11 // pred_check_branch
        %123 = sbr.rel (%p121) target = $region20
      $region19: #{lp_discriminator_forward.4} parent=11 // pred_region
        _
      $region20: #{lp_discriminator_forward.4} parent=11 // pred_fallthru
        _
    $region12: #{lp_discriminator_forward.4} parent=5 // pred_fallthru
      _
    %p124 = scmp.lt.s32.totalorder %s9, 8
    // Predicated region
    $region21: #{lp_discriminator_forward.4} parent=5 // pred_check
      %p125 = pneg %p124
    $region22: #{lp_discriminator_forward.4} parent=5 // pred_check_branch
      %127 = sbr.rel (%p125) target = $region24
    $region23: #{lp_discriminator_forward.4} parent=5 // pred_region
      // Predicated region
      $region25: #{lp_discriminator_forward.4} parent=23 // pred_check
        %p128 = pneg %p29
      $region26: #{lp_discriminator_forward.4} parent=23 // pred_check_branch
        %130 = sbr.rel (%p128) target = $region28
      $region27: #{lp_discriminator_forward.4} parent=23 // pred_region
        %s131 = smul.u32 72, %s9
        %p132 = scmp.lt.s32.totalorder %s131, 575
        %s133 = scalar_select %p132, %s131, 575
        %s134 = smul.addr %s133, 4
        %s135 = scalar_lea.vmem %s0, %s134
        %s136 = smul.u32 72, %s9
      $region28: #{lp_discriminator_forward.4} parent=23 // pred_fallthru
        _
    $region24: #{lp_discriminator_forward.4} parent=5 // pred_fallthru
      _
    %p137 = scmp.le.s32.totalorder 1, %s9
    %p138 = scmp.lt.s32.totalorder %s9, 9
    %p139 = pnand %p137, %p138
    %p140 = pneg %p139
    // Predicated region
    $region29: #{lp_discriminator_forward.4} parent=5 // pred_check
      _
    $region30: #{lp_discriminator_forward.4} parent=5 // pred_check_branch
      %142 = sbr.rel (%p139) target = $region32
    $region31: #{lp_discriminator_forward.4} parent=5 // pred_region
      %s143 = ssub.s32 %s9, 1
      %s144 = smul.u32 72, %s14
      %p145 = scmp.lt.s32.totalorder %s144, 575
      %s146 = scalar_select %p145, %s144, 575
      %s147 = smul.addr %s146, 4
      %s148 = scalar_lea.vmem %s0, %s147
      %p149 = pneg %p35
      %p150 = pneg %p32
      %p151 = pneg %p56
      %p152 = pneg %p53
      %p153 = pneg %p77
      %p154 = pneg %p74
      %p155 = pneg %p103
      %p156 = pneg %p100
      %s157 = smul.u32 72, %s14
      %p158 = scmp.lt.s32.totalorder %s157, 575
      %s159 = scalar_select %p158, %s157, 575
      %s160 = smul.addr %s159, 4
      %s161 = scalar_lea.vmem %s3, %s160
      %s162 = smul.u32 72, %s14
      %p163 = scmp.lt.s32.totalorder %s162, 575
      %s164 = scalar_select %p163, %s162, 575
      %s165 = smul.addr %s164, 4
      %s166 = scalar_lea.vmem %s0, %s165
      %s167 = smul.u32 72, %s14
      %s168 = smul.u32 72, %s14
      %p169 = scmp.lt.s32.totalorder %s168, 575
      %s170 = scalar_select %p169, %s168, 575
      %s171 = smul.addr %s170, 4
      %s172 = scalar_lea.vmem %s3, %s171
      %s173 = smul.u32 72, %s14
      %v174 = vld [vmem:[%s166] sm:$0xf]
      %v175 = vld [vmem:[%s166 + $0x4] sm:$0xf]
      %v176 = vld [vmem:[%s166 + $0x8] sm:$0xf]
      %v177 = vld [vmem:[%s166 + $0xc] sm:$0xf]
      %v178 = vld [vmem:[%s166 + $0x10] sm:$0xf]
      %v179 = vld [vmem:[%s166 + $0x14] sm:$0xf]
      %v180 = vld [vmem:[%s166 + $0x18] sm:$0xf]
      %v181 = vld [vmem:[%s166 + $0x1c] sm:$0xf]
      %v182 = vld [vmem:[%s166 + $0x20] sm:$0xf]
      %v183 = vld [vmem:[%s166 + $0x24] sm:$0xf]
      %v184 = vld [vmem:[%s166 + $0x28] sm:$0xf]
      %v185 = vld [vmem:[%s166 + $0x2c] sm:$0xf]
      %v186 = vld [vmem:[%s166 + $0x30] sm:$0xf]
      %v187 = vld [vmem:[%s166 + $0x34] sm:$0xf]
      %v188 = vld [vmem:[%s166 + $0x38] sm:$0xf]
      %v189 = vld [vmem:[%s166 + $0x3c] sm:$0xf]
      %v190 = vld [vmem:[%s166 + $0x40] sm:$0xf]
      %v191 = vld [vmem:[%s166 + $0x44] sm:$0xf]
      %v192 = vld [vmem:[%s166 + $0x48] sm:$0xf]
      %v193 = vld [vmem:[%s166 + $0x4c] sm:$0xf]
      %v194 = vld [vmem:[%s166 + $0x50] sm:$0xf]
      %v195 = vld [vmem:[%s166 + $0x54] sm:$0xf]
      %v196 = vld [vmem:[%s166 + $0x58] sm:$0xf]
      %v197 = vld [vmem:[%s166 + $0x5c] sm:$0xf]
      %v198 = vld [vmem:[%s166 + $0x60] sm:$0xf]
      %v199 = vld [vmem:[%s166 + $0x64] sm:$0xf]
      %v200 = vld [vmem:[%s166 + $0x68] sm:$0xf]
      %v201 = vld [vmem:[%s166 + $0x6c] sm:$0xf]
      %v202 = vld [vmem:[%s166 + $0x70] sm:$0xf]
      %v203 = vld [vmem:[%s166 + $0x74] sm:$0xf]
      %v204 = vld [vmem:[%s166 + $0x78] sm:$0xf]
      %v205 = vld [vmem:[%s166 + $0x7c] sm:$0xf]
      %v206 = vld [vmem:[%s166 + $0x80] sm:$0xf]
      %v207 = vld [vmem:[%s166 + $0x84] sm:$0xf]
      %v208 = vld [vmem:[%s166 + $0x88] sm:$0xf]
      %v209 = vld [vmem:[%s166 + $0x8c] sm:$0xf]
      %v210 = vld [vmem:[%s166 + $0x90] sm:$0xf]
      %v211 = vld [vmem:[%s166 + $0x94] sm:$0xf]
      %v212 = vld [vmem:[%s166 + $0x98] sm:$0xf]
      %v213 = vld [vmem:[%s166 + $0x9c] sm:$0xf]
      %v214 = vld [vmem:[%s166 + $0xa0] sm:$0xf]
      %v215 = vld [vmem:[%s166 + $0xa4] sm:$0xf]
      %v216 = vld [vmem:[%s166 + $0xa8] sm:$0xf]
      %v217 = vld [vmem:[%s166 + $0xac] sm:$0xf]
      %v218 = vld [vmem:[%s166 + $0xb0] sm:$0xf]
      %v219 = vld [vmem:[%s166 + $0xb4] sm:$0xf]
      %v220 = vld [vmem:[%s166 + $0xb8] sm:$0xf]
      %v221 = vld [vmem:[%s166 + $0xbc] sm:$0xf]
      %v222 = vld [vmem:[%s166 + $0xc0] sm:$0xf]
      %v223 = vld [vmem:[%s166 + $0xc4] sm:$0xf]
      %v224 = vld [vmem:[%s166 + $0xc8] sm:$0xf]
      %v225 = vld [vmem:[%s166 + $0xcc] sm:$0xf]
      %v226 = vld [vmem:[%s166 + $0xd0] sm:$0xf]
      %v227 = vld [vmem:[%s166 + $0xd4] sm:$0xf]
      %v228 = vld [vmem:[%s166 + $0xd8] sm:$0xf]
      %v229 = vld [vmem:[%s166 + $0xdc] sm:$0xf]
      %v230 = vld [vmem:[%s166 + $0xe0] sm:$0xf]
      %v231 = vld [vmem:[%s166 + $0xe4] sm:$0xf]
      %v232 = vld [vmem:[%s166 + $0xe8] sm:$0xf]
      %v233 = vld [vmem:[%s166 + $0xec] sm:$0xf]
      %v234 = vld [vmem:[%s166 + $0xf0] sm:$0xf]
      %v235 = vld [vmem:[%s166 + $0xf4] sm:$0xf]
      %v236 = vld [vmem:[%s166 + $0xf8] sm:$0xf]
      %v237 = vld [vmem:[%s166 + $0xfc] sm:$0xf]
      %v238 = vld [vmem:[%s166 + $0x100] sm:$0xf]
      %v239 = vld [vmem:[%s166 + $0x104] sm:$0xf]
      %v240 = vld [vmem:[%s166 + $0x108] sm:$0xf]
      %v241 = vld [vmem:[%s166 + $0x10c] sm:$0xf]
      %v242 = vld [vmem:[%s166 + $0x110] sm:$0xf]
      %v243 = vld [vmem:[%s166 + $0x114] sm:$0xf]
      %v244 = vld [vmem:[%s166 + $0x118] sm:$0xf]
      %v245 = vld [vmem:[%s166 + $0x11c] sm:$0xf]
      %v246 = vld [vmem:[%s1] sm:$0xf]
      %v247 = vld [vmem:[%s1 + $0x4] sm:$0xf]
      %v248 = vld [vmem:[%s1 + $0x8] sm:$0xf]
      %v249 = vld [vmem:[%s1 + $0xc] sm:$0xf]
      %v250 = vld [vmem:[%s1 + $0x10] sm:$0xf]
      %v251 = vld [vmem:[%s1 + $0x14] sm:$0xf]
      %v252 = vld [vmem:[%s1 + $0x18] sm:$0xf]
      %v253 = vld [vmem:[%s1 + $0x1c] sm:$0xf]
      %v254 = vld [vmem:[%s1 + $0x20] sm:$0xf]
      %v255 = vld [vmem:[%s1 + $0x24] sm:$0xf]
      %v256 = vld [vmem:[%s1 + $0x28] sm:$0xf]
      %v257 = vld [vmem:[%s1 + $0x2c] sm:$0xf]
      %v258 = vld [vmem:[%s1 + $0x30] sm:$0xf]
      %v259 = vld [vmem:[%s1 + $0x34] sm:$0xf]
      %v260 = vld [vmem:[%s1 + $0x38] sm:$0xf]
      %v261 = vld [vmem:[%s1 + $0x3c] sm:$0xf]
      %v262 = vld [vmem:[%s2] sm:$0x1]
      %v264 = vperm.slane %v262, 0
      %v338 = vunpack.c.l.b16 %v174
      %v339 = vunpack.c.l.b16 %v175
      %v340 = vunpack.c.l.b16 %v176
      %v341 = vunpack.c.l.b16 %v177
      %v342 = vunpack.c.l.b16 %v178
      %v343 = vunpack.c.l.b16 %v179
      %v344 = vunpack.c.l.b16 %v180
      %v345 = vunpack.c.l.b16 %v181
      %v346 = vunpack.c.l.b16 %v182
      %v347 = vunpack.c.l.b16 %v183
      %v348 = vunpack.c.l.b16 %v184
      %v349 = vunpack.c.l.b16 %v185
      %v350 = vunpack.c.l.b16 %v186
      %v351 = vunpack.c.l.b16 %v187
      %v352 = vunpack.c.l.b16 %v188
      %v353 = vunpack.c.l.b16 %v189
      %v354 = vunpack.c.l.b16 %v190
      %v355 = vunpack.c.l.b16 %v191
      %v356 = vunpack.c.l.b16 %v192
      %v357 = vunpack.c.l.b16 %v193
      %v358 = vunpack.c.l.b16 %v194
      %v359 = vunpack.c.l.b16 %v195
      %v360 = vunpack.c.l.b16 %v196
      %v361 = vunpack.c.l.b16 %v197
      %v362 = vunpack.c.l.b16 %v198
      %v363 = vunpack.c.l.b16 %v199
      %v364 = vunpack.c.l.b16 %v200
      %v365 = vunpack.c.l.b16 %v201
      %v366 = vunpack.c.l.b16 %v202
      %v367 = vunpack.c.l.b16 %v203
      %v368 = vunpack.c.l.b16 %v204
      %v369 = vunpack.c.l.b16 %v205
      %v370 = vunpack.c.l.b16 %v206
      %v371 = vunpack.c.l.b16 %v207
      %v372 = vunpack.c.l.b16 %v208
      %v373 = vunpack.c.l.b16 %v209
      %v374 = vunpack.c.l.b16 %v210
      %v375 = vunpack.c.l.b16 %v211
      %v376 = vunpack.c.l.b16 %v212
      %v377 = vunpack.c.l.b16 %v213
      %v378 = vunpack.c.l.b16 %v214
      %v379 = vunpack.c.l.b16 %v215
      %v380 = vunpack.c.l.b16 %v216
      %v381 = vunpack.c.l.b16 %v217
      %v382 = vunpack.c.l.b16 %v218
      %v383 = vunpack.c.l.b16 %v219
      %v384 = vunpack.c.l.b16 %v220
      %v385 = vunpack.c.l.b16 %v221
      %v386 = vunpack.c.l.b16 %v222
      %v387 = vunpack.c.l.b16 %v223
      %v388 = vunpack.c.l.b16 %v224
      %v389 = vunpack.c.l.b16 %v225
      %v390 = vunpack.c.l.b16 %v226
      %v391 = vunpack.c.l.b16 %v227
      %v392 = vunpack.c.l.b16 %v228
      %v393 = vunpack.c.l.b16 %v229
      %v394 = vunpack.c.l.b16 %v230
      %v395 = vunpack.c.l.b16 %v231
      %v396 = vunpack.c.l.b16 %v232
      %v397 = vunpack.c.l.b16 %v233
      %v398 = vunpack.c.l.b16 %v234
      %v399 = vunpack.c.l.b16 %v235
      %v400 = vunpack.c.l.b16 %v236
      %v401 = vunpack.c.l.b16 %v237
      %v402 = vunpack.c.l.b16 %v238
      %v403 = vunpack.c.l.b16 %v239
      %v404 = vunpack.c.l.b16 %v240
      %v405 = vunpack.c.l.b16 %v241
      %v406 = vunpack.c.l.b16 %v242
      %v407 = vunpack.c.l.b16 %v243
      %v408 = vunpack.c.l.b16 %v244
      %v409 = vunpack.c.l.b16 %v245
      %v410 = vpack.c.b16 %v339, %v338
      %v411 = vpack.c.b16 %v341, %v340
      %v412 = vpack.c.b16 %v343, %v342
      %v413 = vpack.c.b16 %v345, %v344
      %v414 = vpack.c.b16 %v347, %v346
      %v415 = vpack.c.b16 %v349, %v348
      %v416 = vpack.c.b16 %v351, %v350
      %v417 = vpack.c.b16 %v353, %v352
      %v418 = vpack.c.b16 %v355, %v354
      %v419 = vpack.c.b16 %v357, %v356
      %v420 = vpack.c.b16 %v359, %v358
      %v421 = vpack.c.b16 %v361, %v360
      %v422 = vpack.c.b16 %v363, %v362
      %v423 = vpack.c.b16 %v365, %v364
      %v424 = vpack.c.b16 %v367, %v366
      %v425 = vpack.c.b16 %v369, %v368
      %v426 = vpack.c.b16 %v371, %v370
      %v427 = vpack.c.b16 %v373, %v372
      %v428 = vpack.c.b16 %v375, %v374
      %v429 = vpack.c.b16 %v377, %v376
      %v430 = vpack.c.b16 %v379, %v378
      %v431 = vpack.c.b16 %v381, %v380
      %v432 = vpack.c.b16 %v383, %v382
      %v433 = vpack.c.b16 %v385, %v384
      %v434 = vpack.c.b16 %v387, %v386
      %v435 = vpack.c.b16 %v389, %v388
      %v436 = vpack.c.b16 %v391, %v390
      %v437 = vpack.c.b16 %v393, %v392
      %v438 = vpack.c.b16 %v395, %v394
      %v439 = vpack.c.b16 %v397, %v396
      %v440 = vpack.c.b16 %v399, %v398
      %v441 = vpack.c.b16 %v401, %v400
      %v442 = vpack.c.b16 %v403, %v402
      %v443 = vpack.c.b16 %v405, %v404
      %v444 = vpack.c.b16 %v407, %v406
      %v445 = vpack.c.b16 %v409, %v408
      %v498 = vunpack.c.l.b16 %v246
      %v499 = vunpack.c.l.b16 %v247
      %v500 = vunpack.c.l.b16 %v248
      %v501 = vunpack.c.l.b16 %v249
      %v502 = vunpack.c.l.b16 %v250
      %v503 = vunpack.c.l.b16 %v251
      %v504 = vunpack.c.l.b16 %v252
      %v505 = vunpack.c.l.b16 %v253
      %v506 = vunpack.c.l.b16 %v254
      %v507 = vunpack.c.l.b16 %v255
      %v508 = vunpack.c.l.b16 %v256
      %v509 = vunpack.c.l.b16 %v257
      %v510 = vunpack.c.l.b16 %v258
      %v511 = vunpack.c.l.b16 %v259
      %v512 = vunpack.c.l.b16 %v260
      %v513 = vunpack.c.l.b16 %v261
      %v514 = vpack.c.b16 %v499, %v498
      %v515 = vpack.c.b16 %v501, %v500
      %v516 = vpack.c.b16 %v503, %v502
      %v517 = vpack.c.b16 %v505, %v504
      %v518 = vpack.c.b16 %v507, %v506
      %v519 = vpack.c.b16 %v509, %v508
      %v520 = vpack.c.b16 %v511, %v510
      %v521 = vpack.c.b16 %v513, %v512
      %530 = vmatpush.bf16.msra.mxu0 %v521
      %531 = vmatpush.bf16.msra.mxu0 %v520
      %532 = vmatpush.bf16.msra.mxu0 %v519
      %533 = vmatpush.bf16.msra.mxu0 %v518
      %534 = vmatpush.bf16.msra.mxu0 %v517
      %535 = vmatpush.bf16.msra.mxu0 %v516
      %536 = vmatpush.bf16.msra.mxu0 %v515
      %537 = vmatpush.bf16.msra.mxu0 %v514
      %538 = vmatmul.bf16.gmra.mxu0 %v410
      %v539 = vpop.f32.mrf.mxu0
      %v540 = vadd.f32 %v264, %v539
      %v541 = vpop.f32.mrf.mxu0
      %v542 = vadd.f32 %v264, %v541
      %543 = vmatmul.bf16.gmra.mxu0 %v411
      %v544 = vpop.f32.mrf.mxu0
      %v545 = vadd.f32 %v264, %v544
      %v546 = vpop.f32.mrf.mxu0
      %v547 = vadd.f32 %v264, %v546
      %548 = vmatmul.bf16.gmra.mxu0 %v412
      %v549 = vpop.f32.mrf.mxu0
      %v550 = vadd.f32 %v264, %v549
      %v551 = vpop.f32.mrf.mxu0
      %v552 = vadd.f32 %v264, %v551
      %553 = vmatmul.bf16.gmra.mxu0 %v413
      %v554 = vpop.f32.mrf.mxu0
      %v555 = vadd.f32 %v264, %v554
      %v556 = vpop.f32.mrf.mxu0
      %v557 = vadd.f32 %v264, %v556
      %558 = vmatmul.bf16.gmra.mxu0 %v414
      %v559 = vpop.f32.mrf.mxu0
      %v560 = vadd.f32 %v264, %v559
      %v561 = vpop.f32.mrf.mxu0
      %v562 = vadd.f32 %v264, %v561
      %563 = vmatmul.bf16.gmra.mxu0 %v415
      %v564 = vpop.f32.mrf.mxu0
      %v565 = vadd.f32 %v264, %v564
      %v566 = vpop.f32.mrf.mxu0
      %v567 = vadd.f32 %v264, %v566
      %568 = vmatmul.bf16.gmra.mxu0 %v416
      %v569 = vpop.f32.mrf.mxu0
      %v570 = vadd.f32 %v264, %v569
      %v571 = vpop.f32.mrf.mxu0
      %v572 = vadd.f32 %v264, %v571
      %573 = vmatmul.bf16.gmra.mxu0 %v417
      %v574 = vpop.f32.mrf.mxu0
      %v575 = vadd.f32 %v264, %v574
      %v576 = vpop.f32.mrf.mxu0
      %v577 = vadd.f32 %v264, %v576
      %578 = vmatmul.bf16.gmra.mxu0 %v418
      %v579 = vpop.f32.mrf.mxu0
      %v580 = vadd.f32 %v264, %v579
      %v581 = vpop.f32.mrf.mxu0
      %v582 = vadd.f32 %v264, %v581
      %583 = vmatmul.bf16.gmra.mxu0 %v419
      %v584 = vpop.f32.mrf.mxu0
      %v585 = vadd.f32 %v264, %v584
      %v586 = vpop.f32.mrf.mxu0
      %v587 = vadd.f32 %v264, %v586
      %588 = vmatmul.bf16.gmra.mxu0 %v420
      %v589 = vpop.f32.mrf.mxu0
      %v590 = vadd.f32 %v264, %v589
      %v591 = vpop.f32.mrf.mxu0
      %v592 = vadd.f32 %v264, %v591
      %593 = vmatmul.bf16.gmra.mxu0 %v421
      %v594 = vpop.f32.mrf.mxu0
      %v595 = vadd.f32 %v264, %v594
      %v596 = vpop.f32.mrf.mxu0
      %v597 = vadd.f32 %v264, %v596
      %598 = vmatmul.bf16.gmra.mxu0 %v422
      %v599 = vpop.f32.mrf.mxu0
      %v600 = vadd.f32 %v264, %v599
      %v601 = vpop.f32.mrf.mxu0
      %v602 = vadd.f32 %v264, %v601
      %603 = vmatmul.bf16.gmra.mxu0 %v423
      %v604 = vpop.f32.mrf.mxu0
      %v605 = vadd.f32 %v264, %v604
      %v606 = vpop.f32.mrf.mxu0
      %v607 = vadd.f32 %v264, %v606
      %608 = vmatmul.bf16.gmra.mxu0 %v424
      %v609 = vpop.f32.mrf.mxu0
      %v610 = vadd.f32 %v264, %v609
      %v611 = vpop.f32.mrf.mxu0
      %v612 = vadd.f32 %v264, %v611
      %613 = vmatmul.bf16.gmra.mxu0 %v425
      %v614 = vpop.f32.mrf.mxu0
      %v615 = vadd.f32 %v264, %v614
      %v616 = vpop.f32.mrf.mxu0
      %v617 = vadd.f32 %v264, %v616
      %618 = vmatmul.bf16.gmra.mxu0 %v426
      %v619 = vpop.f32.mrf.mxu0
      %v620 = vadd.f32 %v264, %v619
      %v621 = vpop.f32.mrf.mxu0
      %v622 = vadd.f32 %v264, %v621
      %623 = vmatmul.bf16.gmra.mxu0 %v427
      %v624 = vpop.f32.mrf.mxu0
      %v625 = vadd.f32 %v264, %v624
      %v626 = vpop.f32.mrf.mxu0
      %v627 = vadd.f32 %v264, %v626
      %628 = vmatmul.bf16.gmra.mxu0 %v428
      %v629 = vpop.f32.mrf.mxu0
      %v630 = vadd.f32 %v264, %v629
      %v631 = vpop.f32.mrf.mxu0
      %v632 = vadd.f32 %v264, %v631
      %633 = vmatmul.bf16.gmra.mxu0 %v429
      %v634 = vpop.f32.mrf.mxu0
      %v635 = vadd.f32 %v264, %v634
      %v636 = vpop.f32.mrf.mxu0
      %v637 = vadd.f32 %v264, %v636
      %638 = vmatmul.bf16.gmra.mxu0 %v430
      %v639 = vpop.f32.mrf.mxu0
      %v640 = vadd.f32 %v264, %v639
      %v641 = vpop.f32.mrf.mxu0
      %v642 = vadd.f32 %v264, %v641
      %643 = vmatmul.bf16.gmra.mxu0 %v431
      %v644 = vpop.f32.mrf.mxu0
      %v645 = vadd.f32 %v264, %v644
      %v646 = vpop.f32.mrf.mxu0
      %v647 = vadd.f32 %v264, %v646
      %648 = vmatmul.bf16.gmra.mxu0 %v432
      %v649 = vpop.f32.mrf.mxu0
      %v650 = vadd.f32 %v264, %v649
      %v651 = vpop.f32.mrf.mxu0
      %v652 = vadd.f32 %v264, %v651
      %653 = vmatmul.bf16.gmra.mxu0 %v433
      %v654 = vpop.f32.mrf.mxu0
      %v655 = vadd.f32 %v264, %v654
      %v656 = vpop.f32.mrf.mxu0
      %v657 = vadd.f32 %v264, %v656
      %658 = vmatmul.bf16.gmra.mxu0 %v434
      %v659 = vpop.f32.mrf.mxu0
      %v660 = vadd.f32 %v264, %v659
      %v661 = vpop.f32.mrf.mxu0
      %v662 = vadd.f32 %v264, %v661
      %663 = vmatmul.bf16.gmra.mxu0 %v435
      %v664 = vpop.f32.mrf.mxu0
      %v665 = vadd.f32 %v264, %v664
      %v666 = vpop.f32.mrf.mxu0
      %v667 = vadd.f32 %v264, %v666
      %668 = vmatmul.bf16.gmra.mxu0 %v436
      %v669 = vpop.f32.mrf.mxu0
      %v670 = vadd.f32 %v264, %v669
      %v671 = vpop.f32.mrf.mxu0
      %v672 = vadd.f32 %v264, %v671
      %673 = vmatmul.bf16.gmra.mxu0 %v437
      %v674 = vpop.f32.mrf.mxu0
      %v675 = vadd.f32 %v264, %v674
      %v676 = vpop.f32.mrf.mxu0
      %v677 = vadd.f32 %v264, %v676
      %678 = vmatmul.bf16.gmra.mxu0 %v438
      %v679 = vpop.f32.mrf.mxu0
      %v680 = vadd.f32 %v264, %v679
      %v681 = vpop.f32.mrf.mxu0
      %v682 = vadd.f32 %v264, %v681
      %683 = vmatmul.bf16.gmra.mxu0 %v439
      %v684 = vpop.f32.mrf.mxu0
      %v685 = vadd.f32 %v264, %v684
      %v686 = vpop.f32.mrf.mxu0
      %v687 = vadd.f32 %v264, %v686
      %688 = vmatmul.bf16.gmra.mxu0 %v440
      %v689 = vpop.f32.mrf.mxu0
      %v690 = vadd.f32 %v264, %v689
      %v691 = vpop.f32.mrf.mxu0
      %v692 = vadd.f32 %v264, %v691
      %693 = vmatmul.bf16.gmra.mxu0 %v441
      %v694 = vpop.f32.mrf.mxu0
      %v695 = vadd.f32 %v264, %v694
      %v696 = vpop.f32.mrf.mxu0
      %v697 = vadd.f32 %v264, %v696
      %698 = vmatmul.bf16.gmra.mxu0 %v442
      %v699 = vpop.f32.mrf.mxu0
      %v700 = vadd.f32 %v264, %v699
      %v701 = vpop.f32.mrf.mxu0
      %v702 = vadd.f32 %v264, %v701
      %703 = vmatmul.bf16.gmra.mxu0 %v443
      %v704 = vpop.f32.mrf.mxu0
      %v705 = vadd.f32 %v264, %v704
      %v706 = vpop.f32.mrf.mxu0
      %v707 = vadd.f32 %v264, %v706
      %708 = vmatmul.bf16.gmra.mxu0 %v444
      %v709 = vpop.f32.mrf.mxu0
      %v710 = vadd.f32 %v264, %v709
      %v711 = vpop.f32.mrf.mxu0
      %v712 = vadd.f32 %v264, %v711
      %713 = vmatmul.bf16.gmra.mxu0 %v445
      %v714 = vpop.f32.mrf.mxu0
      %v715 = vadd.f32 %v264, %v714
      %v716 = vpop.f32.mrf.mxu0
      %v717 = vadd.f32 %v264, %v716
      %718 = vdwg.mxu0
      %vm719 = vcmp.ge.f32.partialorder %v540, 0.0
      %vm720 = vcmp.ge.f32.partialorder %v542, 0.0
      %vm721 = vcmp.ge.f32.partialorder %v545, 0.0
      %vm722 = vcmp.ge.f32.partialorder %v547, 0.0
      %vm723 = vcmp.ge.f32.partialorder %v550, 0.0
      %vm724 = vcmp.ge.f32.partialorder %v552, 0.0
      %vm725 = vcmp.ge.f32.partialorder %v555, 0.0
      %vm726 = vcmp.ge.f32.partialorder %v557, 0.0
      %vm727 = vcmp.ge.f32.partialorder %v560, 0.0
      %vm728 = vcmp.ge.f32.partialorder %v562, 0.0
      %vm729 = vcmp.ge.f32.partialorder %v565, 0.0
      %vm730 = vcmp.ge.f32.partialorder %v567, 0.0
      %vm731 = vcmp.ge.f32.partialorder %v570, 0.0
      %vm732 = vcmp.ge.f32.partialorder %v572, 0.0
      %vm733 = vcmp.ge.f32.partialorder %v575, 0.0
      %vm734 = vcmp.ge.f32.partialorder %v577, 0.0
      %vm735 = vcmp.ge.f32.partialorder %v580, 0.0
      %vm736 = vcmp.ge.f32.partialorder %v582, 0.0
      %vm737 = vcmp.ge.f32.partialorder %v585, 0.0
      %vm738 = vcmp.ge.f32.partialorder %v587, 0.0
      %vm739 = vcmp.ge.f32.partialorder %v590, 0.0
      %vm740 = vcmp.ge.f32.partialorder %v592, 0.0
      %vm741 = vcmp.ge.f32.partialorder %v595, 0.0
      %vm742 = vcmp.ge.f32.partialorder %v597, 0.0
      %vm743 = vcmp.ge.f32.partialorder %v600, 0.0
      %vm744 = vcmp.ge.f32.partialorder %v602, 0.0
      %vm745 = vcmp.ge.f32.partialorder %v605, 0.0
      %vm746 = vcmp.ge.f32.partialorder %v607, 0.0
      %vm747 = vcmp.ge.f32.partialorder %v610, 0.0
      %vm748 = vcmp.ge.f32.partialorder %v612, 0.0
      %vm749 = vcmp.ge.f32.partialorder %v615, 0.0
      %vm750 = vcmp.ge.f32.partialorder %v617, 0.0
      %vm751 = vcmp.ge.f32.partialorder %v620, 0.0
      %vm752 = vcmp.ge.f32.partialorder %v622, 0.0
      %vm753 = vcmp.ge.f32.partialorder %v625, 0.0
      %vm754 = vcmp.ge.f32.partialorder %v627, 0.0
      %vm755 = vcmp.ge.f32.partialorder %v630, 0.0
      %vm756 = vcmp.ge.f32.partialorder %v632, 0.0
      %vm757 = vcmp.ge.f32.partialorder %v635, 0.0
      %vm758 = vcmp.ge.f32.partialorder %v637, 0.0
      %vm759 = vcmp.ge.f32.partialorder %v640, 0.0
      %vm760 = vcmp.ge.f32.partialorder %v642, 0.0
      %vm761 = vcmp.ge.f32.partialorder %v645, 0.0
      %vm762 = vcmp.ge.f32.partialorder %v647, 0.0
      %vm763 = vcmp.ge.f32.partialorder %v650, 0.0
      %vm764 = vcmp.ge.f32.partialorder %v652, 0.0
      %vm765 = vcmp.ge.f32.partialorder %v655, 0.0
      %vm766 = vcmp.ge.f32.partialorder %v657, 0.0
      %vm767 = vcmp.ge.f32.partialorder %v660, 0.0
      %vm768 = vcmp.ge.f32.partialorder %v662, 0.0
      %vm769 = vcmp.ge.f32.partialorder %v665, 0.0
      %vm770 = vcmp.ge.f32.partialorder %v667, 0.0
      %vm771 = vcmp.ge.f32.partialorder %v670, 0.0
      %vm772 = vcmp.ge.f32.partialorder %v672, 0.0
      %vm773 = vcmp.ge.f32.partialorder %v675, 0.0
      %vm774 = vcmp.ge.f32.partialorder %v677, 0.0
      %vm775 = vcmp.ge.f32.partialorder %v680, 0.0
      %vm776 = vcmp.ge.f32.partialorder %v682, 0.0
      %vm777 = vcmp.ge.f32.partialorder %v685, 0.0
      %vm778 = vcmp.ge.f32.partialorder %v687, 0.0
      %vm779 = vcmp.ge.f32.partialorder %v690, 0.0
      %vm780 = vcmp.ge.f32.partialorder %v692, 0.0
      %vm781 = vcmp.ge.f32.partialorder %v695, 0.0
      %vm782 = vcmp.ge.f32.partialorder %v697, 0.0
      %vm783 = vcmp.ge.f32.partialorder %v700, 0.0
      %vm784 = vcmp.ge.f32.partialorder %v702, 0.0
      %vm785 = vcmp.ge.f32.partialorder %v705, 0.0
      %vm786 = vcmp.ge.f32.partialorder %v707, 0.0
      %vm787 = vcmp.ge.f32.partialorder %v710, 0.0
      %vm788 = vcmp.ge.f32.partialorder %v712, 0.0
      %vm789 = vcmp.ge.f32.partialorder %v715, 0.0
      %vm790 = vcmp.ge.f32.partialorder %v717, 0.0
      %v791 = vmul.f32 %v540, 0.2
      %v792 = vmul.f32 %v542, 0.2
      %v793 = vmul.f32 %v545, 0.2
      %v794 = vmul.f32 %v547, 0.2
      %v795 = vmul.f32 %v550, 0.2
      %v796 = vmul.f32 %v552, 0.2
      %v797 = vmul.f32 %v555, 0.2
      %v798 = vmul.f32 %v557, 0.2
      %v799 = vmul.f32 %v560, 0.2
      %v800 = vmul.f32 %v562, 0.2
      %v801 = vmul.f32 %v565, 0.2
      %v802 = vmul.f32 %v567, 0.2
      %v803 = vmul.f32 %v570, 0.2
      %v804 = vmul.f32 %v572, 0.2
      %v805 = vmul.f32 %v575, 0.2
      %v806 = vmul.f32 %v577, 0.2
      %v807 = vmul.f32 %v580, 0.2
      %v808 = vmul.f32 %v582, 0.2
      %v809 = vmul.f32 %v585, 0.2
      %v810 = vmul.f32 %v587, 0.2
      %v811 = vmul.f32 %v590, 0.2
      %v812 = vmul.f32 %v592, 0.2
      %v813 = vmul.f32 %v595, 0.2
      %v814 = vmul.f32 %v597, 0.2
      %v815 = vmul.f32 %v600, 0.2
      %v816 = vmul.f32 %v602, 0.2
      %v817 = vmul.f32 %v605, 0.2
      %v818 = vmul.f32 %v607, 0.2
      %v819 = vmul.f32 %v610, 0.2
      %v820 = vmul.f32 %v612, 0.2
      %v821 = vmul.f32 %v615, 0.2
      %v822 = vmul.f32 %v617, 0.2
      %v823 = vmul.f32 %v620, 0.2
      %v824 = vmul.f32 %v622, 0.2
      %v825 = vmul.f32 %v625, 0.2
      %v826 = vmul.f32 %v627, 0.2
      %v827 = vmul.f32 %v630, 0.2
      %v828 = vmul.f32 %v632, 0.2
      %v829 = vmul.f32 %v635, 0.2
      %v830 = vmul.f32 %v637, 0.2
      %v831 = vmul.f32 %v640, 0.2
      %v832 = vmul.f32 %v642, 0.2
      %v833 = vmul.f32 %v645, 0.2
      %v834 = vmul.f32 %v647, 0.2
      %v835 = vmul.f32 %v650, 0.2
      %v836 = vmul.f32 %v652, 0.2
      %v837 = vmul.f32 %v655, 0.2
      %v838 = vmul.f32 %v657, 0.2
      %v839 = vmul.f32 %v660, 0.2
      %v840 = vmul.f32 %v662, 0.2
      %v841 = vmul.f32 %v665, 0.2
      %v842 = vmul.f32 %v667, 0.2
      %v843 = vmul.f32 %v670, 0.2
      %v844 = vmul.f32 %v672, 0.2
      %v845 = vmul.f32 %v675, 0.2
      %v846 = vmul.f32 %v677, 0.2
      %v847 = vmul.f32 %v680, 0.2
      %v848 = vmul.f32 %v682, 0.2
      %v849 = vmul.f32 %v685, 0.2
      %v850 = vmul.f32 %v687, 0.2
      %v851 = vmul.f32 %v690, 0.2
      %v852 = vmul.f32 %v692, 0.2
      %v853 = vmul.f32 %v695, 0.2
      %v854 = vmul.f32 %v697, 0.2
      %v855 = vmul.f32 %v700, 0.2
      %v856 = vmul.f32 %v702, 0.2
      %v857 = vmul.f32 %v705, 0.2
      %v858 = vmul.f32 %v707, 0.2
      %v859 = vmul.f32 %v710, 0.2
      %v860 = vmul.f32 %v712, 0.2
      %v861 = vmul.f32 %v715, 0.2
      %v862 = vmul.f32 %v717, 0.2
      %v863 = vsel %vm719, %v540, %v791
      %v864 = vsel %vm720, %v542, %v792
      %v865 = vsel %vm721, %v545, %v793
      %v866 = vsel %vm722, %v547, %v794
      %v867 = vsel %vm723, %v550, %v795
      %v868 = vsel %vm724, %v552, %v796
      %v869 = vsel %vm725, %v555, %v797
      %v870 = vsel %vm726, %v557, %v798
      %v871 = vsel %vm727, %v560, %v799
      %v872 = vsel %vm728, %v562, %v800
      %v873 = vsel %vm729, %v565, %v801
      %v874 = vsel %vm730, %v567, %v802
      %v875 = vsel %vm731, %v570, %v803
      %v876 = vsel %vm732, %v572, %v804
      %v877 = vsel %vm733, %v575, %v805
      %v878 = vsel %vm734, %v577, %v806
      %v879 = vsel %vm735, %v580, %v807
      %v880 = vsel %vm736, %v582, %v808
      %v881 = vsel %vm737, %v585, %v809
      %v882 = vsel %vm738, %v587, %v810
      %v883 = vsel %vm739, %v590, %v811
      %v884 = vsel %vm740, %v592, %v812
      %v885 = vsel %vm741, %v595, %v813
      %v886 = vsel %vm742, %v597, %v814
      %v887 = vsel %vm743, %v600, %v815
      %v888 = vsel %vm744, %v602, %v816
      %v889 = vsel %vm745, %v605, %v817
      %v890 = vsel %vm746, %v607, %v818
      %v891 = vsel %vm747, %v610, %v819
      %v892 = vsel %vm748, %v612, %v820
      %v893 = vsel %vm749, %v615, %v821
      %v894 = vsel %vm750, %v617, %v822
      %v895 = vsel %vm751, %v620, %v823
      %v896 = vsel %vm752, %v622, %v824
      %v897 = vsel %vm753, %v625, %v825
      %v898 = vsel %vm754, %v627, %v826
      %v899 = vsel %vm755, %v630, %v827
      %v900 = vsel %vm756, %v632, %v828
      %v901 = vsel %vm757, %v635, %v829
      %v902 = vsel %vm758, %v637, %v830
      %v903 = vsel %vm759, %v640, %v831
      %v904 = vsel %vm760, %v642, %v832
      %v905 = vsel %vm761, %v645, %v833
      %v906 = vsel %vm762, %v647, %v834
      %v907 = vsel %vm763, %v650, %v835
      %v908 = vsel %vm764, %v652, %v836
      %v909 = vsel %vm765, %v655, %v837
      %v910 = vsel %vm766, %v657, %v838
      %v911 = vsel %vm767, %v660, %v839
      %v912 = vsel %vm768, %v662, %v840
      %v913 = vsel %vm769, %v665, %v841
      %v914 = vsel %vm770, %v667, %v842
      %v915 = vsel %vm771, %v670, %v843
      %v916 = vsel %vm772, %v672, %v844
      %v917 = vsel %vm773, %v675, %v845
      %v918 = vsel %vm774, %v677, %v846
      %v919 = vsel %vm775, %v680, %v847
      %v920 = vsel %vm776, %v682, %v848
      %v921 = vsel %vm777, %v685, %v849
      %v922 = vsel %vm778, %v687, %v850
      %v923 = vsel %vm779, %v690, %v851
      %v924 = vsel %vm780, %v692, %v852
      %v925 = vsel %vm781, %v695, %v853
      %v926 = vsel %vm782, %v697, %v854
      %v927 = vsel %vm783, %v700, %v855
      %v928 = vsel %vm784, %v702, %v856
      %v929 = vsel %vm785, %v705, %v857
      %v930 = vsel %vm786, %v707, %v858
      %v931 = vsel %vm787, %v710, %v859
      %v932 = vsel %vm788, %v712, %v860
      %v933 = vsel %vm789, %v715, %v861
      %v934 = vsel %vm790, %v717, %v862
      %v935 = vpack.c.bf16 %v863, %v863
      %v936 = vpack.c.bf16 %v864, %v864
      %v937 = vpack.c.bf16 %v865, %v865
      %v938 = vpack.c.bf16 %v866, %v866
      %v939 = vpack.c.bf16 %v867, %v867
      %v940 = vpack.c.bf16 %v868, %v868
      %v941 = vpack.c.bf16 %v869, %v869
      %v942 = vpack.c.bf16 %v870, %v870
      %v943 = vpack.c.bf16 %v871, %v871
      %v944 = vpack.c.bf16 %v872, %v872
      %v945 = vpack.c.bf16 %v873, %v873
      %v946 = vpack.c.bf16 %v874, %v874
      %v947 = vpack.c.bf16 %v875, %v875
      %v948 = vpack.c.bf16 %v876, %v876
      %v949 = vpack.c.bf16 %v877, %v877
      %v950 = vpack.c.bf16 %v878, %v878
      %v951 = vpack.c.bf16 %v879, %v879
      %v952 = vpack.c.bf16 %v880, %v880
      %v953 = vpack.c.bf16 %v881, %v881
      %v954 = vpack.c.bf16 %v882, %v882
      %v955 = vpack.c.bf16 %v883, %v883
      %v956 = vpack.c.bf16 %v884, %v884
      %v957 = vpack.c.bf16 %v885, %v885
      %v958 = vpack.c.bf16 %v886, %v886
      %v959 = vpack.c.bf16 %v887, %v887
      %v960 = vpack.c.bf16 %v888, %v888
      %v961 = vpack.c.bf16 %v889, %v889
      %v962 = vpack.c.bf16 %v890, %v890
      %v963 = vpack.c.bf16 %v891, %v891
      %v964 = vpack.c.bf16 %v892, %v892
      %v965 = vpack.c.bf16 %v893, %v893
      %v966 = vpack.c.bf16 %v894, %v894
      %v967 = vpack.c.bf16 %v895, %v895
      %v968 = vpack.c.bf16 %v896, %v896
      %v969 = vpack.c.bf16 %v897, %v897
      %v970 = vpack.c.bf16 %v898, %v898
      %v971 = vpack.c.bf16 %v899, %v899
      %v972 = vpack.c.bf16 %v900, %v900
      %v973 = vpack.c.bf16 %v901, %v901
      %v974 = vpack.c.bf16 %v902, %v902
      %v975 = vpack.c.bf16 %v903, %v903
      %v976 = vpack.c.bf16 %v904, %v904
      %v977 = vpack.c.bf16 %v905, %v905
      %v978 = vpack.c.bf16 %v906, %v906
      %v979 = vpack.c.bf16 %v907, %v907
      %v980 = vpack.c.bf16 %v908, %v908
      %v981 = vpack.c.bf16 %v909, %v909
      %v982 = vpack.c.bf16 %v910, %v910
      %v983 = vpack.c.bf16 %v911, %v911
      %v984 = vpack.c.bf16 %v912, %v912
      %v985 = vpack.c.bf16 %v913, %v913
      %v986 = vpack.c.bf16 %v914, %v914
      %v987 = vpack.c.bf16 %v915, %v915
      %v988 = vpack.c.bf16 %v916, %v916
      %v989 = vpack.c.bf16 %v917, %v917
      %v990 = vpack.c.bf16 %v918, %v918
      %v991 = vpack.c.bf16 %v919, %v919
      %v992 = vpack.c.bf16 %v920, %v920
      %v993 = vpack.c.bf16 %v921, %v921
      %v994 = vpack.c.bf16 %v922, %v922
      %v995 = vpack.c.bf16 %v923, %v923
      %v996 = vpack.c.bf16 %v924, %v924
      %v997 = vpack.c.bf16 %v925, %v925
      %v998 = vpack.c.bf16 %v926, %v926
      %v999 = vpack.c.bf16 %v927, %v927
      %v1000 = vpack.c.bf16 %v928, %v928
      %v1001 = vpack.c.bf16 %v929, %v929
      %v1002 = vpack.c.bf16 %v930, %v930
      %v1003 = vpack.c.bf16 %v931, %v931
      %v1004 = vpack.c.bf16 %v932, %v932
      %v1005 = vpack.c.bf16 %v933, %v933
      %v1006 = vpack.c.bf16 %v934, %v934
      %1007 = vst [vmem:[%s172] sm:$0xf] %v935
      %1008 = vst [vmem:[%s172 + $0x4] sm:$0xf] %v936
      %1009 = vst [vmem:[%s172 + $0x8] sm:$0xf] %v937
      %1010 = vst [vmem:[%s172 + $0xc] sm:$0xf] %v938
      %1011 = vst [vmem:[%s172 + $0x10] sm:$0xf] %v939
      %1012 = vst [vmem:[%s172 + $0x14] sm:$0xf] %v940
      %1013 = vst [vmem:[%s172 + $0x18] sm:$0xf] %v941
      %1014 = vst [vmem:[%s172 + $0x1c] sm:$0xf] %v942
      %1015 = vst [vmem:[%s172 + $0x20] sm:$0xf] %v943
      %1016 = vst [vmem:[%s172 + $0x24] sm:$0xf] %v944
      %1017 = vst [vmem:[%s172 + $0x28] sm:$0xf] %v945
      %1018 = vst [vmem:[%s172 + $0x2c] sm:$0xf] %v946
      %1019 = vst [vmem:[%s172 + $0x30] sm:$0xf] %v947
      %1020 = vst [vmem:[%s172 + $0x34] sm:$0xf] %v948
      %1021 = vst [vmem:[%s172 + $0x38] sm:$0xf] %v949
      %1022 = vst [vmem:[%s172 + $0x3c] sm:$0xf] %v950
      %1023 = vst [vmem:[%s172 + $0x40] sm:$0xf] %v951
      %1024 = vst [vmem:[%s172 + $0x44] sm:$0xf] %v952
      %1025 = vst [vmem:[%s172 + $0x48] sm:$0xf] %v953
      %1026 = vst [vmem:[%s172 + $0x4c] sm:$0xf] %v954
      %1027 = vst [vmem:[%s172 + $0x50] sm:$0xf] %v955
      %1028 = vst [vmem:[%s172 + $0x54] sm:$0xf] %v956
      %1029 = vst [vmem:[%s172 + $0x58] sm:$0xf] %v957
      %1030 = vst [vmem:[%s172 + $0x5c] sm:$0xf] %v958
      %1031 = vst [vmem:[%s172 + $0x60] sm:$0xf] %v959
      %1032 = vst [vmem:[%s172 + $0x64] sm:$0xf] %v960
      %1033 = vst [vmem:[%s172 + $0x68] sm:$0xf] %v961
      %1034 = vst [vmem:[%s172 + $0x6c] sm:$0xf] %v962
      %1035 = vst [vmem:[%s172 + $0x70] sm:$0xf] %v963
      %1036 = vst [vmem:[%s172 + $0x74] sm:$0xf] %v964
      %1037 = vst [vmem:[%s172 + $0x78] sm:$0xf] %v965
      %1038 = vst [vmem:[%s172 + $0x7c] sm:$0xf] %v966
      %1039 = vst [vmem:[%s172 + $0x80] sm:$0xf] %v967
      %1040 = vst [vmem:[%s172 + $0x84] sm:$0xf] %v968
      %1041 = vst [vmem:[%s172 + $0x88] sm:$0xf] %v969
      %1042 = vst [vmem:[%s172 + $0x8c] sm:$0xf] %v970
      %1043 = vst [vmem:[%s172 + $0x90] sm:$0xf] %v971
      %1044 = vst [vmem:[%s172 + $0x94] sm:$0xf] %v972
      %1045 = vst [vmem:[%s172 + $0x98] sm:$0xf] %v973
      %1046 = vst [vmem:[%s172 + $0x9c] sm:$0xf] %v974
      %1047 = vst [vmem:[%s172 + $0xa0] sm:$0xf] %v975
      %1048 = vst [vmem:[%s172 + $0xa4] sm:$0xf] %v976
      %1049 = vst [vmem:[%s172 + $0xa8] sm:$0xf] %v977
      %1050 = vst [vmem:[%s172 + $0xac] sm:$0xf] %v978
      %1051 = vst [vmem:[%s172 + $0xb0] sm:$0xf] %v979
      %1052 = vst [vmem:[%s172 + $0xb4] sm:$0xf] %v980
      %1053 = vst [vmem:[%s172 + $0xb8] sm:$0xf] %v981
      %1054 = vst [vmem:[%s172 + $0xbc] sm:$0xf] %v982
      %1055 = vst [vmem:[%s172 + $0xc0] sm:$0xf] %v983
      %1056 = vst [vmem:[%s172 + $0xc4] sm:$0xf] %v984
      %1057 = vst [vmem:[%s172 + $0xc8] sm:$0xf] %v985
      %1058 = vst [vmem:[%s172 + $0xcc] sm:$0xf] %v986
      %1059 = vst [vmem:[%s172 + $0xd0] sm:$0xf] %v987
      %1060 = vst [vmem:[%s172 + $0xd4] sm:$0xf] %v988
      %1061 = vst [vmem:[%s172 + $0xd8] sm:$0xf] %v989
      %1062 = vst [vmem:[%s172 + $0xdc] sm:$0xf] %v990
      %1063 = vst [vmem:[%s172 + $0xe0] sm:$0xf] %v991
      %1064 = vst [vmem:[%s172 + $0xe4] sm:$0xf] %v992
      %1065 = vst [vmem:[%s172 + $0xe8] sm:$0xf] %v993
      %1066 = vst [vmem:[%s172 + $0xec] sm:$0xf] %v994
      %1067 = vst [vmem:[%s172 + $0xf0] sm:$0xf] %v995
      %1068 = vst [vmem:[%s172 + $0xf4] sm:$0xf] %v996
      %1069 = vst [vmem:[%s172 + $0xf8] sm:$0xf] %v997
      %1070 = vst [vmem:[%s172 + $0xfc] sm:$0xf] %v998
      %1071 = vst [vmem:[%s172 + $0x100] sm:$0xf] %v999
      %1072 = vst [vmem:[%s172 + $0x104] sm:$0xf] %v1000
      %1073 = vst [vmem:[%s172 + $0x108] sm:$0xf] %v1001
      %1074 = vst [vmem:[%s172 + $0x10c] sm:$0xf] %v1002
      %1075 = vst [vmem:[%s172 + $0x110] sm:$0xf] %v1003
      %1076 = vst [vmem:[%s172 + $0x114] sm:$0xf] %v1004
      %1077 = vst [vmem:[%s172 + $0x118] sm:$0xf] %v1005
      %1078 = vst [vmem:[%s172 + $0x11c] sm:$0xf] %v1006
      %s1079 = smul.u32 72, %s14
      %p1080 = scmp.lt.s32.totalorder %s1079, 575
      %s1081 = scalar_select %p1080, %s1079, 575
      %s1082 = smul.addr %s1081, 4
      %s1083 = scalar_lea.vmem %s3, %s1082
      // Predicated region
      $region33: #{lp_discriminator_forward.4} parent=31 // pred_check
        %p1084 = pneg %p100
      $region34: #{lp_discriminator_forward.4} parent=31 // pred_check_branch
        %1086 = sbr.rel (%p1084) target = $region36
      $region35: #{lp_discriminator_forward.4} parent=31 // pred_region
        %s1087 = smul.u32 72, %s14
      $region36: #{lp_discriminator_forward.4} parent=31 // pred_fallthru
        _
    $region32: #{lp_discriminator_forward.4} parent=5 // pred_fallthru
      _
    %p1088 = scmp.le.s32.totalorder 2, %s9
    // Predicated region
    $region37: #{lp_discriminator_forward.4} parent=5 // pred_check
      %p1089 = pneg %p1088
    $region38: #{lp_discriminator_forward.4} parent=5 // pred_check_branch
      %1091 = sbr.rel (%p1089) target = $region40
    $region39: #{lp_discriminator_forward.4} parent=5 // pred_region
      %s1092 = ssub.s32 %s9, 2
      // Predicated region
      $region41: #{lp_discriminator_forward.4} parent=39 // pred_check
        %p1093 = pneg %p106
      $region42: #{lp_discriminator_forward.4} parent=39 // pred_check_branch
        %1095 = sbr.rel (%p1093) target = $region44
      $region43: #{lp_discriminator_forward.4} parent=39 // pred_region
        %s1096 = smul.u32 72, %s15
        %p1097 = scmp.lt.s32.totalorder %s1096, 575
        %s1098 = scalar_select %p1097, %s1096, 575
        %s1099 = smul.addr %s1098, 4
        %s1100 = scalar_lea.vmem %s3, %s1099
      $region44: #{lp_discriminator_forward.4} parent=39 // pred_fallthru
        _
    $region40: #{lp_discriminator_forward.4} parent=5 // pred_fallthru
      _
  $region6: #{lp_discriminator_forward.4} parent=0 // loop_footer
    %s13 = sadd.s32 1, %s9
  $region7: #{lp_discriminator_forward.4} parent=0 // loop_footer_branch
    %8 = sbr.rel target = $region3
  $region8: #{lp_discriminator_forward.4} parent=0 // loop_exit
    _

// kernel: lp_discriminator_forward.5
$region0: #{lp_discriminator_forward.5}
  #allocation0 [shape = 'u32[]', space=smem, size = 0x4, offset = 0x4, fixed_abs, tag = 'smem constant byte address 0x4 - core index']
  #allocation1 [shape = 'u32[72,128]{1,0:T(1,128)}', space=vmem, size = 0x9000, scoped, tag = 'internal scratch']
  #allocation2 [shape = 'f32[2,576,128]{2,1,0:T(8,128)}', space=vmem, size = 0x90000, scoped, tag = 'scratch operand']
  #allocation3 [shape = 'f32[1,128]{1,0:T(1,128)}', space=vmem, size = 0x200, scoped, tag = 'scratch operand']
  #allocation4 [shape = 'f32[1,128]{1,0:T(1,128)}', space=vmem, size = 0x200, scoped, tag = 'scratch operand']
  %s0 = inlined_call_operand.vmem [shape: bf16[1152,128], index: 0, kind: input, shape index: {}]
  %s1 = inlined_call_operand.vmem [shape: bf16[128,128], index: 1, kind: input, shape index: {}]
  %s2 = inlined_call_operand.vmem [shape: f32[1,128], index: 2, kind: input, shape index: {}]
  %s3 = inlined_call_operand.vmem [shape: f32[1,128], index: 3, kind: input, shape index: {}]
  %s4 = inlined_call_operand.vmem [shape: f32[1152,128], index: 4, kind: output, shape index: {}]
  %s5 = sld [smem:[#allocation0]]
  $region61: #{lp_discriminator_forward.5} parent=0
    _
  %s7 = ssub.s32 1, %s5
  %s8 = scalar_select 0, %s7, %s5
  loop: start=0, step=1, limit=6
  $region2: #{lp_discriminator_forward.5} parent=0 // loop_pre_header
    _
  $region3: #{lp_discriminator_forward.5} parent=0 // loop_header
    %s10 = sphi 0, %s14
    %p11 = scmp.ge.s32.totalorder %s10, 6
    %s17 = sphi 0, %s29
    %s18 = sphi 0, %s25
    %s19 = sphi 0, %s17
    %s20 = sphi 0, %s18
    %s21 = sphi 0, %s19
    %s22 = sphi 0, %s20
    %s38 = sphi 0, %s40
    %s41 = sphi 0, %s38
    %s42 = sphi 0, %s41
    %s58 = sphi 0, %s42
    %s62 = sphi 0, %s62
    %s64 = sphi 0, %s62
    %s65 = sphi 0, %s64
    %s79 = sphi 0, %s65
    %s83 = sphi 0, %s83
    %s85 = sphi 0, %s83
    %s86 = sphi 0, %s85
    %s100 = sphi 0, %s86
    %s104 = sphi 0, %s104
    %s106 = sphi 0, %s104
    %s107 = sphi 0, %s106
    %s121 = sphi 0, %s107
    %s129 = sphi 0, %s131
    %s132 = sphi 0, %s129
    %s133 = sphi 0, %s132
    %s149 = sphi 0, %s133
  $region4: #{lp_discriminator_forward.5} parent=0 // loop_header_branch
    %13 = sbr.rel (%p11) target = $region8
  $region5: #{lp_discriminator_forward.5} parent=0 // loop_body
    %s15 = ssub.s32 %s10, 1
    %s16 = ssub.s32 %s10, 2
    %s23 = sadd.s32 1, %s18
    %p24 = scmp.ge.s32.totalorder %s23, 2
    %s25 = scalar_select %p24, 0, %s23
    %s26 = sadd.s32 1, %s17
    %s27 = scalar_select %p24, %s26, %s17
    %p28 = scmp.ge.s32.totalorder %s27, 2
    %s29 = scalar_select %p28, 0, %s27
    %s30 = ssub.s32 1, %s17
    %s31 = smul.u32 %s18, %s30
    %s32 = sadd.s32 %s31, %s17
    %s33 = ssub.s32 1, %s29
    %s34 = smul.u32 %s25, %s33
    %s35 = sadd.s32 %s34, %s29
    %s36 = ssub.s32 %s32, %s35
    %p37 = scmp.eq.s32.totalorder %s36, 0
    %s39 = sadd.s32 %s38, 1
    %s40 = scalar_select %p37, %s38, %s39
    %p43 = pneg %p37
    %p44 = scmp.eq.s32.totalorder %s10, 3
    %p45 = por %p43, %p44
    %p46 = scmp.ne.s32.totalorder %s38, %s41
    %p47 = scmp.eq.s32.totalorder %s10, 0
    %p48 = por %p46, %p47
    %p49 = scmp.ne.s32.totalorder %s38, %s41
    %p50 = scmp.eq.s32.totalorder %s15, 3
    %p51 = por %p49, %p50
    %p52 = scmp.ne.s32.totalorder %s41, %s42
    %p53 = scmp.eq.s32.totalorder %s15, 0
    %p54 = por %p52, %p53
    %p55 = scmp.ne.s32.totalorder %s41, %s42
    %p56 = scmp.eq.s32.totalorder %s16, 3
    %p57 = por %p55, %p56
    %p59 = scmp.ne.s32.totalorder %s42, %s58
    %p60 = scmp.eq.s32.totalorder %s16, 0
    %p61 = por %p59, %p60
    %s63 = sadd.s32 %s62, 1
    %p66 = scmp.eq.s32.totalorder %s10, 3
    %p67 = scmp.ne.s32.totalorder %s62, %s64
    %p68 = scmp.eq.s32.totalorder %s10, 0
    %p69 = por %p67, %p68
    %p70 = scmp.ne.s32.totalorder %s62, %s64
    %p71 = scmp.eq.s32.totalorder %s15, 3
    %p72 = por %p70, %p71
    %p73 = scmp.ne.s32.totalorder %s64, %s65
    %p74 = scmp.eq.s32.totalorder %s15, 0
    %p75 = por %p73, %p74
    %p76 = scmp.ne.s32.totalorder %s64, %s65
    %p77 = scmp.eq.s32.totalorder %s16, 3
    %p78 = por %p76, %p77
    %p80 = scmp.ne.s32.totalorder %s65, %s79
    %p81 = scmp.eq.s32.totalorder %s16, 0
    %p82 = por %p80, %p81
    %s84 = sadd.s32 %s83, 1
    %p87 = scmp.eq.s32.totalorder %s10, 3
    %p88 = scmp.ne.s32.totalorder %s83, %s85
    %p89 = scmp.eq.s32.totalorder %s10, 0
    %p90 = por %p88, %p89
    %p91 = scmp.ne.s32.totalorder %s83, %s85
    %p92 = scmp.eq.s32.totalorder %s15, 3
    %p93 = por %p91, %p92
    %p94 = scmp.ne.s32.totalorder %s85, %s86
    %p95 = scmp.eq.s32.totalorder %s15, 0
    %p96 = por %p94, %p95
    %p97 = scmp.ne.s32.totalorder %s85, %s86
    %p98 = scmp.eq.s32.totalorder %s16, 3
    %p99 = por %p97, %p98
    %p101 = scmp.ne.s32.totalorder %s86, %s100
    %p102 = scmp.eq.s32.totalorder %s16, 0
    %p103 = por %p101, %p102
    %s105 = sadd.s32 %s104, 1
    %p108 = scmp.eq.s32.totalorder %s10, 3
    %p109 = scmp.ne.s32.totalorder %s104, %s106
    %p110 = scmp.eq.s32.totalorder %s10, 0
    %p111 = por %p109, %p110
    %p112 = scmp.ne.s32.totalorder %s104, %s106
    %p113 = scmp.eq.s32.totalorder %s15, 3
    %p114 = por %p112, %p113
    %p115 = scmp.ne.s32.totalorder %s106, %s107
    %p116 = scmp.eq.s32.totalorder %s15, 0
    %p117 = por %p115, %p116
    %p118 = scmp.ne.s32.totalorder %s106, %s107
    %p119 = scmp.eq.s32.totalorder %s16, 3
    %p120 = por %p118, %p119
    %p122 = scmp.ne.s32.totalorder %s107, %s121
    %p123 = scmp.eq.s32.totalorder %s16, 0
    %p124 = por %p122, %p123
    %s125 = smul.u32 %s18, %s17
    %s126 = smul.u32 %s25, %s29
    %s127 = ssub.s32 %s125, %s126
    %p128 = scmp.eq.s32.totalorder %s127, 0
    %s130 = sadd.s32 %s129, 1
    %s131 = scalar_select %p128, %s129, %s130
    %p134 = pneg %p128
    %p135 = scmp.eq.s32.totalorder %s10, 3
    %p136 = por %p134, %p135
    %p137 = scmp.ne.s32.totalorder %s129, %s132
    %p138 = scmp.eq.s32.totalorder %s10, 0
    %p139 = por %p137, %p138
    %p140 = scmp.ne.s32.totalorder %s129, %s132
    %p141 = scmp.eq.s32.totalorder %s15, 3
    %p142 = por %p140, %p141
    %p143 = scmp.ne.s32.totalorder %s132, %s133
    %p144 = scmp.eq.s32.totalorder %s15, 0
    %p145 = por %p143, %p144
    %p146 = scmp.ne.s32.totalorder %s132, %s133
    %p147 = scmp.eq.s32.totalorder %s16, 3
    %p148 = por %p146, %p147
    %p150 = scmp.ne.s32.totalorder %s133, %s149
    %p151 = scmp.eq.s32.totalorder %s16, 0
    %p152 = por %p150, %p151
    %p153 = scmp.le.s32.totalorder 1, %s10
    %p154 = scmp.lt.s32.totalorder %s10, 5
    %p155 = pnand %p153, %p154
    %p156 = pneg %p155
    // Predicated region
    $region9: #{lp_discriminator_forward.5} parent=5 // pred_check
      _
    $region10: #{lp_discriminator_forward.5} parent=5 // pred_check_branch
      %158 = sbr.rel (%p155) target = $region12
    $region11: #{lp_discriminator_forward.5} parent=5 // pred_region
      %s159 = ssub.s32 %s10, 1
      // Predicated region
      $region13: #{lp_discriminator_forward.5} parent=11 // pred_check
        %p160 = pneg %p75
      $region14: #{lp_discriminator_forward.5} parent=11 // pred_check_branch
        %162 = sbr.rel (%p160) target = $region16
      $region15: #{lp_discriminator_forward.5} parent=11 // pred_region
        _
      $region16: #{lp_discriminator_forward.5} parent=11 // pred_fallthru
        _
      // Predicated region
      $region17: #{lp_discriminator_forward.5} parent=11 // pred_check
        %p163 = pneg %p96
      $region18: #{lp_discriminator_forward.5} parent=11 // pred_check_branch
        %165 = sbr.rel (%p163) target = $region20
      $region19: #{lp_discriminator_forward.5} parent=11 // pred_region
        _
      $region20: #{lp_discriminator_forward.5} parent=11 // pred_fallthru
        _
      // Predicated region
      $region21: #{lp_discriminator_forward.5} parent=11 // pred_check
        %p166 = pneg %p117
      $region22: #{lp_discriminator_forward.5} parent=11 // pred_check_branch
        %168 = sbr.rel (%p166) target = $region24
      $region23: #{lp_discriminator_forward.5} parent=11 // pred_region
        _
      $region24: #{lp_discriminator_forward.5} parent=11 // pred_fallthru
        _
    $region12: #{lp_discriminator_forward.5} parent=5 // pred_fallthru
      _
    %p169 = scmp.lt.s32.totalorder %s10, 4
    // Predicated region
    $region25: #{lp_discriminator_forward.5} parent=5 // pred_check
      %p170 = pneg %p169
    $region26: #{lp_discriminator_forward.5} parent=5 // pred_check_branch
      %172 = sbr.rel (%p170) target = $region28
    $region27: #{lp_discriminator_forward.5} parent=5 // pred_region
      // Predicated region
      $region29: #{lp_discriminator_forward.5} parent=27 // pred_check
        %p173 = pneg %p48
      $region30: #{lp_discriminator_forward.5} parent=27 // pred_check_branch
        %175 = sbr.rel (%p173) target = $region32
      $region31: #{lp_discriminator_forward.5} parent=27 // pred_region
        %s176 = ssub.s32 1, %s17
        %s177 = smul.u32 %s18, %s176
        %s178 = sadd.s32 %s177, %s17
        %s179 = smul.u32 72, %s178
        %p180 = scmp.lt.s32.totalorder %s179, 143
        %s181 = scalar_select %p180, %s179, 143
        %s182 = smul.addr %s181, 4
        %s183 = scalar_lea.vmem %s0, %s182
        %s184 = ssub.s32 1, %s17
        %s185 = smul.u32 %s18, %s184
        %s186 = sadd.s32 %s185, %s17
        %s187 = smul.u32 72, %s186
      $region32: #{lp_discriminator_forward.5} parent=27 // pred_fallthru
        _
    $region28: #{lp_discriminator_forward.5} parent=5 // pred_fallthru
      _
    %p188 = scmp.le.s32.totalorder 1, %s10
    %p189 = scmp.lt.s32.totalorder %s10, 5
    %p190 = pnand %p188, %p189
    %p191 = pneg %p190
    // Predicated region
    $region33: #{lp_discriminator_forward.5} parent=5 // pred_check
      _
    $region34: #{lp_discriminator_forward.5} parent=5 // pred_check_branch
      %193 = sbr.rel (%p190) target = $region36
    $region35: #{lp_discriminator_forward.5} parent=5 // pred_region
      %s194 = ssub.s32 %s10, 1
      %s195 = ssub.s32 1, %s19
      %s196 = smul.u32 %s20, %s195
      %s197 = sadd.s32 %s196, %s19
      %s198 = smul.u32 72, %s197
      %p199 = scmp.lt.s32.totalorder %s198, 143
      %s200 = scalar_select %p199, %s198, 143
      %s201 = smul.addr %s200, 4
      %s202 = scalar_lea.vmem %s0, %s201
      %p203 = pneg %p54
      %p204 = pneg %p51
      %p205 = pneg %p75
      %p206 = pneg %p72
      %p207 = pneg %p96
      %p208 = pneg %p93
      %p209 = pneg %p117
      %p210 = pneg %p114
      %p211 = pneg %p145
      %p212 = pneg %p142
      %s213 = smul.u32 %s20, %s19
      %s214 = smul.u32 72, %s213
      %p215 = scmp.lt.s32.totalorder %s214, 143
      %s216 = scalar_select %p215, %s214, 143
      %s217 = smul.addr %s216, 8
      %s218 = scalar_lea.vmem %s4, %s217
      %s219 = ssub.s32 1, %s19
      %s220 = smul.u32 %s20, %s219
      %s221 = sadd.s32 %s220, %s19
      %s222 = smul.u32 72, %s221
      %p223 = scmp.lt.s32.totalorder %s222, 143
      %s224 = scalar_select %p223, %s222, 143
      %s225 = smul.addr %s224, 4
      %s226 = scalar_lea.vmem %s0, %s225
      %s227 = ssub.s32 1, %s19
      %s228 = smul.u32 %s20, %s227
      %s229 = sadd.s32 %s228, %s19
      %s230 = smul.u32 72, %s229
      %s231 = smul.u32 %s20, %s19
      %s232 = smul.u32 72, %s231
      %p233 = scmp.lt.s32.totalorder %s232, 143
      %s234 = scalar_select %p233, %s232, 143
      %s235 = smul.addr %s234, 8
      %s236 = scalar_lea.vmem %s4, %s235
      %s237 = smul.u32 %s20, %s19
      %s238 = smul.u32 72, %s237
      %p239 = scmp.eq.s32.totalorder %s19, 0
      %p240 = scmp.eq.s32.totalorder %s20, 0
      %p241 = pnand %p239, %p240
      %p242 = pneg %p241
      // Predicated region
      $region37: #{lp_discriminator_forward.5} parent=35 // pred_check
        _
      $region38: #{lp_discriminator_forward.5} parent=35 // pred_check_branch
        %244 = sbr.rel (%p241) target = $region40
      $region39: #{lp_discriminator_forward.5} parent=35 // pred_region
        %245 = vst [vmem:[#allocation3] sm:$0x1] 0.0
        %246 = vst [vmem:[#allocation4] sm:$0x1] 0.0
      $region40: #{lp_discriminator_forward.5} parent=35 // pred_fallthru
        _
      // Predicated region
      $region41: #{lp_discriminator_forward.5} parent=35 // pred_check
        %p247 = pneg %p239
      $region42: #{lp_discriminator_forward.5} parent=35 // pred_check_branch
        %249 = sbr.rel (%p247) target = $region44
      $region43: #{lp_discriminator_forward.5} parent=35 // pred_region
        %v250 = vld [vmem:[%s226] sm:$0xf]
        %v251 = vld [vmem:[%s226 + $0x4] sm:$0xf]
        %v252 = vld [vmem:[%s226 + $0x8] sm:$0xf]
        %v253 = vld [vmem:[%s226 + $0xc] sm:$0xf]
        %v254 = vld [vmem:[%s226 + $0x10] sm:$0xf]
        %v255 = vld [vmem:[%s226 + $0x14] sm:$0xf]
        %v256 = vld [vmem:[%s226 + $0x18] sm:$0xf]
        %v257 = vld [vmem:[%s226 + $0x1c] sm:$0xf]
        %v258 = vld [vmem:[%s226 + $0x20] sm:$0xf]
        %v259 = vld [vmem:[%s226 + $0x24] sm:$0xf]
        %v260 = vld [vmem:[%s226 + $0x28] sm:$0xf]
        %v261 = vld [vmem:[%s226 + $0x2c] sm:$0xf]
        %v262 = vld [vmem:[%s226 + $0x30] sm:$0xf]
        %v263 = vld [vmem:[%s226 + $0x34] sm:$0xf]
        %v264 = vld [vmem:[%s226 + $0x38] sm:$0xf]
        %v265 = vld [vmem:[%s226 + $0x3c] sm:$0xf]
        %v266 = vld [vmem:[%s226 + $0x40] sm:$0xf]
        %v267 = vld [vmem:[%s226 + $0x44] sm:$0xf]
        %v268 = vld [vmem:[%s226 + $0x48] sm:$0xf]
        %v269 = vld [vmem:[%s226 + $0x4c] sm:$0xf]
        %v270 = vld [vmem:[%s226 + $0x50] sm:$0xf]
        %v271 = vld [vmem:[%s226 + $0x54] sm:$0xf]
        %v272 = vld [vmem:[%s226 + $0x58] sm:$0xf]
        %v273 = vld [vmem:[%s226 + $0x5c] sm:$0xf]
        %v274 = vld [vmem:[%s226 + $0x60] sm:$0xf]
        %v275 = vld [vmem:[%s226 + $0x64] sm:$0xf]
        %v276 = vld [vmem:[%s226 + $0x68] sm:$0xf]
        %v277 = vld [vmem:[%s226 + $0x6c] sm:$0xf]
        %v278 = vld [vmem:[%s226 + $0x70] sm:$0xf]
        %v279 = vld [vmem:[%s226 + $0x74] sm:$0xf]
        %v280 = vld [vmem:[%s226 + $0x78] sm:$0xf]
        %v281 = vld [vmem:[%s226 + $0x7c] sm:$0xf]
        %v282 = vld [vmem:[%s226 + $0x80] sm:$0xf]
        %v283 = vld [vmem:[%s226 + $0x84] sm:$0xf]
        %v284 = vld [vmem:[%s226 + $0x88] sm:$0xf]
        %v285 = vld [vmem:[%s226 + $0x8c] sm:$0xf]
        %v286 = vld [vmem:[%s226 + $0x90] sm:$0xf]
        %v287 = vld [vmem:[%s226 + $0x94] sm:$0xf]
        %v288 = vld [vmem:[%s226 + $0x98] sm:$0xf]
        %v289 = vld [vmem:[%s226 + $0x9c] sm:$0xf]
        %v290 = vld [vmem:[%s226 + $0xa0] sm:$0xf]
        %v291 = vld [vmem:[%s226 + $0xa4] sm:$0xf]
        %v292 = vld [vmem:[%s226 + $0xa8] sm:$0xf]
        %v293 = vld [vmem:[%s226 + $0xac] sm:$0xf]
        %v294 = vld [vmem:[%s226 + $0xb0] sm:$0xf]
        %v295 = vld [vmem:[%s226 + $0xb4] sm:$0xf]
        %v296 = vld [vmem:[%s226 + $0xb8] sm:$0xf]
        %v297 = vld [vmem:[%s226 + $0xbc] sm:$0xf]
        %v298 = vld [vmem:[%s226 + $0xc0] sm:$0xf]
        %v299 = vld [vmem:[%s226 + $0xc4] sm:$0xf]
        %v300 = vld [vmem:[%s226 + $0xc8] sm:$0xf]
        %v301 = vld [vmem:[%s226 + $0xcc] sm:$0xf]
        %v302 = vld [vmem:[%s226 + $0xd0] sm:$0xf]
        %v303 = vld [vmem:[%s226 + $0xd4] sm:$0xf]
        %v304 = vld [vmem:[%s226 + $0xd8] sm:$0xf]
        %v305 = vld [vmem:[%s226 + $0xdc] sm:$0xf]
        %v306 = vld [vmem:[%s226 + $0xe0] sm:$0xf]
        %v307 = vld [vmem:[%s226 + $0xe4] sm:$0xf]
        %v308 = vld [vmem:[%s226 + $0xe8] sm:$0xf]
        %v309 = vld [vmem:[%s226 + $0xec] sm:$0xf]
        %v310 = vld [vmem:[%s226 + $0xf0] sm:$0xf]
        %v311 = vld [vmem:[%s226 + $0xf4] sm:$0xf]
        %v312 = vld [vmem:[%s226 + $0xf8] sm:$0xf]
        %v313 = vld [vmem:[%s226 + $0xfc] sm:$0xf]
        %v314 = vld [vmem:[%s226 + $0x100] sm:$0xf]
        %v315 = vld [vmem:[%s226 + $0x104] sm:$0xf]
        %v316 = vld [vmem:[%s226 + $0x108] sm:$0xf]
        %v317 = vld [vmem:[%s226 + $0x10c] sm:$0xf]
        %v318 = vld [vmem:[%s226 + $0x110] sm:$0xf]
        %v319 = vld [vmem:[%s226 + $0x114] sm:$0xf]
        %v320 = vld [vmem:[%s226 + $0x118] sm:$0xf]
        %v321 = vld [vmem:[%s226 + $0x11c] sm:$0xf]
        %v322 = vld [vmem:[%s1] sm:$0xf]
        %v323 = vld [vmem:[%s1 + $0x4] sm:$0xf]
        %v324 = vld [vmem:[%s1 + $0x8] sm:$0xf]
        %v325 = vld [vmem:[%s1 + $0xc] sm:$0xf]
        %v326 = vld [vmem:[%s1 + $0x10] sm:$0xf]
        %v327 = vld [vmem:[%s1 + $0x14] sm:$0xf]
        %v328 = vld [vmem:[%s1 + $0x18] sm:$0xf]
        %v329 = vld [vmem:[%s1 + $0x1c] sm:$0xf]
        %v330 = vld [vmem:[%s1 + $0x20] sm:$0xf]
        %v331 = vld [vmem:[%s1 + $0x24] sm:$0xf]
        %v332 = vld [vmem:[%s1 + $0x28] sm:$0xf]
        %v333 = vld [vmem:[%s1 + $0x2c] sm:$0xf]
        %v334 = vld [vmem:[%s1 + $0x30] sm:$0xf]
        %v335 = vld [vmem:[%s1 + $0x34] sm:$0xf]
        %v336 = vld [vmem:[%s1 + $0x38] sm:$0xf]
        %v337 = vld [vmem:[%s1 + $0x3c] sm:$0xf]
        %v410 = vunpack.c.l.b16 %v250
        %v411 = vunpack.c.l.b16 %v251
        %v412 = vunpack.c.l.b16 %v252
        %v413 = vunpack.c.l.b16 %v253
        %v414 = vunpack.c.l.b16 %v254
        %v415 = vunpack.c.l.b16 %v255
        %v416 = vunpack.c.l.b16 %v256
        %v417 = vunpack.c.l.b16 %v257
        %v418 = vunpack.c.l.b16 %v258
        %v419 = vunpack.c.l.b16 %v259
        %v420 = vunpack.c.l.b16 %v260
        %v421 = vunpack.c.l.b16 %v261
        %v422 = vunpack.c.l.b16 %v262
        %v423 = vunpack.c.l.b16 %v263
        %v424 = vunpack.c.l.b16 %v264
        %v425 = vunpack.c.l.b16 %v265
        %v426 = vunpack.c.l.b16 %v266
        %v427 = vunpack.c.l.b16 %v267
        %v428 = vunpack.c.l.b16 %v268
        %v429 = vunpack.c.l.b16 %v269
        %v430 = vunpack.c.l.b16 %v270
        %v431 = vunpack.c.l.b16 %v271
        %v432 = vunpack.c.l.b16 %v272
        %v433 = vunpack.c.l.b16 %v273
        %v434 = vunpack.c.l.b16 %v274
        %v435 = vunpack.c.l.b16 %v275
        %v436 = vunpack.c.l.b16 %v276
        %v437 = vunpack.c.l.b16 %v277
        %v438 = vunpack.c.l.b16 %v278
        %v439 = vunpack.c.l.b16 %v279
        %v440 = vunpack.c.l.b16 %v280
        %v441 = vunpack.c.l.b16 %v281
        %v442 = vunpack.c.l.b16 %v282
        %v443 = vunpack.c.l.b16 %v283
        %v444 = vunpack.c.l.b16 %v284
        %v445 = vunpack.c.l.b16 %v285
        %v446 = vunpack.c.l.b16 %v286
        %v447 = vunpack.c.l.b16 %v287
        %v448 = vunpack.c.l.b16 %v288
        %v449 = vunpack.c.l.b16 %v289
        %v450 = vunpack.c.l.b16 %v290
        %v451 = vunpack.c.l.b16 %v291
        %v452 = vunpack.c.l.b16 %v292
        %v453 = vunpack.c.l.b16 %v293
        %v454 = vunpack.c.l.b16 %v294
        %v455 = vunpack.c.l.b16 %v295
        %v456 = vunpack.c.l.b16 %v296
        %v457 = vunpack.c.l.b16 %v297
        %v458 = vunpack.c.l.b16 %v298
        %v459 = vunpack.c.l.b16 %v299
        %v460 = vunpack.c.l.b16 %v300
        %v461 = vunpack.c.l.b16 %v301
        %v462 = vunpack.c.l.b16 %v302
        %v463 = vunpack.c.l.b16 %v303
        %v464 = vunpack.c.l.b16 %v304
        %v465 = vunpack.c.l.b16 %v305
        %v466 = vunpack.c.l.b16 %v306
        %v467 = vunpack.c.l.b16 %v307
        %v468 = vunpack.c.l.b16 %v308
        %v469 = vunpack.c.l.b16 %v309
        %v470 = vunpack.c.l.b16 %v310
        %v471 = vunpack.c.l.b16 %v311
        %v472 = vunpack.c.l.b16 %v312
        %v473 = vunpack.c.l.b16 %v313
        %v474 = vunpack.c.l.b16 %v314
        %v475 = vunpack.c.l.b16 %v315
        %v476 = vunpack.c.l.b16 %v316
        %v477 = vunpack.c.l.b16 %v317
        %v478 = vunpack.c.l.b16 %v318
        %v479 = vunpack.c.l.b16 %v319
        %v480 = vunpack.c.l.b16 %v320
        %v481 = vunpack.c.l.b16 %v321
        %v482 = vpack.c.b16 %v411, %v410
        %v483 = vpack.c.b16 %v413, %v412
        %v484 = vpack.c.b16 %v415, %v414
        %v485 = vpack.c.b16 %v417, %v416
        %v486 = vpack.c.b16 %v419, %v418
        %v487 = vpack.c.b16 %v421, %v420
        %v488 = vpack.c.b16 %v423, %v422
        %v489 = vpack.c.b16 %v425, %v424
        %v490 = vpack.c.b16 %v427, %v426
        %v491 = vpack.c.b16 %v429, %v428
        %v492 = vpack.c.b16 %v431, %v430
        %v493 = vpack.c.b16 %v433, %v432
        %v494 = vpack.c.b16 %v435, %v434
        %v495 = vpack.c.b16 %v437, %v436
        %v496 = vpack.c.b16 %v439, %v438
        %v497 = vpack.c.b16 %v441, %v440
        %v498 = vpack.c.b16 %v443, %v442
        %v499 = vpack.c.b16 %v445, %v444
        %v500 = vpack.c.b16 %v447, %v446
        %v501 = vpack.c.b16 %v449, %v448
        %v502 = vpack.c.b16 %v451, %v450
        %v503 = vpack.c.b16 %v453, %v452
        %v504 = vpack.c.b16 %v455, %v454
        %v505 = vpack.c.b16 %v457, %v456
        %v506 = vpack.c.b16 %v459, %v458
        %v507 = vpack.c.b16 %v461, %v460
        %v508 = vpack.c.b16 %v463, %v462
        %v509 = vpack.c.b16 %v465, %v464
        %v510 = vpack.c.b16 %v467, %v466
        %v511 = vpack.c.b16 %v469, %v468
        %v512 = vpack.c.b16 %v471, %v470
        %v513 = vpack.c.b16 %v473, %v472
        %v514 = vpack.c.b16 %v475, %v474
        %v515 = vpack.c.b16 %v477, %v476
        %v516 = vpack.c.b16 %v479, %v478
        %v517 = vpack.c.b16 %v481, %v480
        %v570 = vunpack.c.l.b16 %v322
        %v571 = vunpack.c.l.b16 %v323
        %v572 = vunpack.c.l.b16 %v324
        %v573 = vunpack.c.l.b16 %v325
        %v574 = vunpack.c.l.b16 %v326
        %v575 = vunpack.c.l.b16 %v327
        %v576 = vunpack.c.l.b16 %v328
        %v577 = vunpack.c.l.b16 %v329
        %v578 = vunpack.c.l.b16 %v330
        %v579 = vunpack.c.l.b16 %v331
        %v580 = vunpack.c.l.b16 %v332
        %v581 = vunpack.c.l.b16 %v333
        %v582 = vunpack.c.l.b16 %v334
        %v583 = vunpack.c.l.b16 %v335
        %v584 = vunpack.c.l.b16 %v336
        %v585 = vunpack.c.l.b16 %v337
        %v586 = vpack.c.b16 %v571, %v570
        %v587 = vpack.c.b16 %v573, %v572
        %v588 = vpack.c.b16 %v575, %v574
        %v589 = vpack.c.b16 %v577, %v576
        %v590 = vpack.c.b16 %v579, %v578
        %v591 = vpack.c.b16 %v581, %v580
        %v592 = vpack.c.b16 %v583, %v582
        %v593 = vpack.c.b16 %v585, %v584
        %602 = vmatpush.bf16.msra.mxu0 %v593
        %603 = vmatpush.bf16.msra.mxu0 %v592
        %604 = vmatpush.bf16.msra.mxu0 %v591
        %605 = vmatpush.bf16.msra.mxu0 %v590
        %606 = vmatpush.bf16.msra.mxu0 %v589
        %607 = vmatpush.bf16.msra.mxu0 %v588
        %608 = vmatpush.bf16.msra.mxu0 %v587
        %609 = vmatpush.bf16.msra.mxu0 %v586
        %610 = vmatmul.bf16.gmra.mxu0 %v482
        %v611 = vpop.f32.mrf.mxu0
        %v612 = vadd.f32 0.0, %v611
        %v613 = vpop.f32.mrf.mxu0
        %v614 = vadd.f32 0.0, %v613
        %615 = vmatmul.bf16.gmra.mxu0 %v483
        %v616 = vpop.f32.mrf.mxu0
        %v617 = vadd.f32 0.0, %v616
        %v618 = vpop.f32.mrf.mxu0
        %v619 = vadd.f32 0.0, %v618
        %620 = vmatmul.bf16.gmra.mxu0 %v484
        %v621 = vpop.f32.mrf.mxu0
        %v622 = vadd.f32 0.0, %v621
        %v623 = vpop.f32.mrf.mxu0
        %v624 = vadd.f32 0.0, %v623
        %625 = vmatmul.bf16.gmra.mxu0 %v485
        %v626 = vpop.f32.mrf.mxu0
        %v627 = vadd.f32 0.0, %v626
        %v628 = vpop.f32.mrf.mxu0
        %v629 = vadd.f32 0.0, %v628
        %630 = vmatmul.bf16.gmra.mxu0 %v486
        %v631 = vpop.f32.mrf.mxu0
        %v632 = vadd.f32 0.0, %v631
        %v633 = vpop.f32.mrf.mxu0
        %v634 = vadd.f32 0.0, %v633
        %635 = vmatmul.bf16.gmra.mxu0 %v487
        %v636 = vpop.f32.mrf.mxu0
        %v637 = vadd.f32 0.0, %v636
        %v638 = vpop.f32.mrf.mxu0
        %v639 = vadd.f32 0.0, %v638
        %640 = vmatmul.bf16.gmra.mxu0 %v488
        %v641 = vpop.f32.mrf.mxu0
        %v642 = vadd.f32 0.0, %v641
        %v643 = vpop.f32.mrf.mxu0
        %v644 = vadd.f32 0.0, %v643
        %645 = vmatmul.bf16.gmra.mxu0 %v489
        %v646 = vpop.f32.mrf.mxu0
        %v647 = vadd.f32 0.0, %v646
        %v648 = vpop.f32.mrf.mxu0
        %v649 = vadd.f32 0.0, %v648
        %650 = vmatmul.bf16.gmra.mxu0 %v490
        %v651 = vpop.f32.mrf.mxu0
        %v652 = vadd.f32 0.0, %v651
        %v653 = vpop.f32.mrf.mxu0
        %v654 = vadd.f32 0.0, %v653
        %655 = vmatmul.bf16.gmra.mxu0 %v491
        %v656 = vpop.f32.mrf.mxu0
        %v657 = vadd.f32 0.0, %v656
        %v658 = vpop.f32.mrf.mxu0
        %v659 = vadd.f32 0.0, %v658
        %660 = vmatmul.bf16.gmra.mxu0 %v492
        %v661 = vpop.f32.mrf.mxu0
        %v662 = vadd.f32 0.0, %v661
        %v663 = vpop.f32.mrf.mxu0
        %v664 = vadd.f32 0.0, %v663
        %665 = vmatmul.bf16.gmra.mxu0 %v493
        %v666 = vpop.f32.mrf.mxu0
        %v667 = vadd.f32 0.0, %v666
        %v668 = vpop.f32.mrf.mxu0
        %v669 = vadd.f32 0.0, %v668
        %670 = vmatmul.bf16.gmra.mxu0 %v494
        %v671 = vpop.f32.mrf.mxu0
        %v672 = vadd.f32 0.0, %v671
        %v673 = vpop.f32.mrf.mxu0
        %v674 = vadd.f32 0.0, %v673
        %675 = vmatmul.bf16.gmra.mxu0 %v495
        %v676 = vpop.f32.mrf.mxu0
        %v677 = vadd.f32 0.0, %v676
        %v678 = vpop.f32.mrf.mxu0
        %v679 = vadd.f32 0.0, %v678
        %680 = vmatmul.bf16.gmra.mxu0 %v496
        %v681 = vpop.f32.mrf.mxu0
        %v682 = vadd.f32 0.0, %v681
        %v683 = vpop.f32.mrf.mxu0
        %v684 = vadd.f32 0.0, %v683
        %685 = vmatmul.bf16.gmra.mxu0 %v497
        %v686 = vpop.f32.mrf.mxu0
        %v687 = vadd.f32 0.0, %v686
        %v688 = vpop.f32.mrf.mxu0
        %v689 = vadd.f32 0.0, %v688
        %690 = vmatmul.bf16.gmra.mxu0 %v498
        %v691 = vpop.f32.mrf.mxu0
        %v692 = vadd.f32 0.0, %v691
        %v693 = vpop.f32.mrf.mxu0
        %v694 = vadd.f32 0.0, %v693
        %695 = vmatmul.bf16.gmra.mxu0 %v499
        %v696 = vpop.f32.mrf.mxu0
        %v697 = vadd.f32 0.0, %v696
        %v698 = vpop.f32.mrf.mxu0
        %v699 = vadd.f32 0.0, %v698
        %700 = vmatmul.bf16.gmra.mxu0 %v500
        %v701 = vpop.f32.mrf.mxu0
        %v702 = vadd.f32 0.0, %v701
        %v703 = vpop.f32.mrf.mxu0
        %v704 = vadd.f32 0.0, %v703
        %705 = vmatmul.bf16.gmra.mxu0 %v501
        %v706 = vpop.f32.mrf.mxu0
        %v707 = vadd.f32 0.0, %v706
        %v708 = vpop.f32.mrf.mxu0
        %v709 = vadd.f32 0.0, %v708
        %710 = vmatmul.bf16.gmra.mxu0 %v502
        %v711 = vpop.f32.mrf.mxu0
        %v712 = vadd.f32 0.0, %v711
        %v713 = vpop.f32.mrf.mxu0
        %v714 = vadd.f32 0.0, %v713
        %715 = vmatmul.bf16.gmra.mxu0 %v503
        %v716 = vpop.f32.mrf.mxu0
        %v717 = vadd.f32 0.0, %v716
        %v718 = vpop.f32.mrf.mxu0
        %v719 = vadd.f32 0.0, %v718
        %720 = vmatmul.bf16.gmra.mxu0 %v504
        %v721 = vpop.f32.mrf.mxu0
        %v722 = vadd.f32 0.0, %v721
        %v723 = vpop.f32.mrf.mxu0
        %v724 = vadd.f32 0.0, %v723
        %725 = vmatmul.bf16.gmra.mxu0 %v505
        %v726 = vpop.f32.mrf.mxu0
        %v727 = vadd.f32 0.0, %v726
        %v728 = vpop.f32.mrf.mxu0
        %v729 = vadd.f32 0.0, %v728
        %730 = vmatmul.bf16.gmra.mxu0 %v506
        %v731 = vpop.f32.mrf.mxu0
        %v732 = vadd.f32 0.0, %v731
        %v733 = vpop.f32.mrf.mxu0
        %v734 = vadd.f32 0.0, %v733
        %735 = vmatmul.bf16.gmra.mxu0 %v507
        %v736 = vpop.f32.mrf.mxu0
        %v737 = vadd.f32 0.0, %v736
        %v738 = vpop.f32.mrf.mxu0
        %v739 = vadd.f32 0.0, %v738
        %740 = vmatmul.bf16.gmra.mxu0 %v508
        %v741 = vpop.f32.mrf.mxu0
        %v742 = vadd.f32 0.0, %v741
        %v743 = vpop.f32.mrf.mxu0
        %v744 = vadd.f32 0.0, %v743
        %745 = vmatmul.bf16.gmra.mxu0 %v509
        %v746 = vpop.f32.mrf.mxu0
        %v747 = vadd.f32 0.0, %v746
        %v748 = vpop.f32.mrf.mxu0
        %v749 = vadd.f32 0.0, %v748
        %750 = vmatmul.bf16.gmra.mxu0 %v510
        %v751 = vpop.f32.mrf.mxu0
        %v752 = vadd.f32 0.0, %v751
        %v753 = vpop.f32.mrf.mxu0
        %v754 = vadd.f32 0.0, %v753
        %755 = vmatmul.bf16.gmra.mxu0 %v511
        %v756 = vpop.f32.mrf.mxu0
        %v757 = vadd.f32 0.0, %v756
        %v758 = vpop.f32.mrf.mxu0
        %v759 = vadd.f32 0.0, %v758
        %760 = vmatmul.bf16.gmra.mxu0 %v512
        %v761 = vpop.f32.mrf.mxu0
        %v762 = vadd.f32 0.0, %v761
        %v763 = vpop.f32.mrf.mxu0
        %v764 = vadd.f32 0.0, %v763
        %765 = vmatmul.bf16.gmra.mxu0 %v513
        %v766 = vpop.f32.mrf.mxu0
        %v767 = vadd.f32 0.0, %v766
        %v768 = vpop.f32.mrf.mxu0
        %v769 = vadd.f32 0.0, %v768
        %770 = vmatmul.bf16.gmra.mxu0 %v514
        %v771 = vpop.f32.mrf.mxu0
        %v772 = vadd.f32 0.0, %v771
        %v773 = vpop.f32.mrf.mxu0
        %v774 = vadd.f32 0.0, %v773
        %775 = vmatmul.bf16.gmra.mxu0 %v515
        %v776 = vpop.f32.mrf.mxu0
        %v777 = vadd.f32 0.0, %v776
        %v778 = vpop.f32.mrf.mxu0
        %v779 = vadd.f32 0.0, %v778
        %780 = vmatmul.bf16.gmra.mxu0 %v516
        %v781 = vpop.f32.mrf.mxu0
        %v782 = vadd.f32 0.0, %v781
        %v783 = vpop.f32.mrf.mxu0
        %v784 = vadd.f32 0.0, %v783
        %785 = vmatmul.bf16.gmra.mxu0 %v517
        %v786 = vpop.f32.mrf.mxu0
        %v787 = vadd.f32 0.0, %v786
        %v788 = vpop.f32.mrf.mxu0
        %v789 = vadd.f32 0.0, %v788
        %790 = vdwg.mxu0
        %s791 = smul.u32 %s20, 576
        %s792 = scalar_lea.vmem [#allocation2], %s791
        %793 = vst [vmem:[%s792] sm:$0xff] %v612
        %794 = vst [vmem:[%s792 + $0x8] sm:$0xff] %v614
        %795 = vst [vmem:[%s792 + $0x10] sm:$0xff] %v617
        %796 = vst [vmem:[%s792 + $0x18] sm:$0xff] %v619
        %797 = vst [vmem:[%s792 + $0x20] sm:$0xff] %v622
        %798 = vst [vmem:[%s792 + $0x28] sm:$0xff] %v624
        %799 = vst [vmem:[%s792 + $0x30] sm:$0xff] %v627
        %800 = vst [vmem:[%s792 + $0x38] sm:$0xff] %v629
        %801 = vst [vmem:[%s792 + $0x40] sm:$0xff] %v632
        %802 = vst [vmem:[%s792 + $0x48] sm:$0xff] %v634
        %803 = vst [vmem:[%s792 + $0x50] sm:$0xff] %v637
        %804 = vst [vmem:[%s792 + $0x58] sm:$0xff] %v639
        %805 = vst [vmem:[%s792 + $0x60] sm:$0xff] %v642
        %806 = vst [vmem:[%s792 + $0x68] sm:$0xff] %v644
        %807 = vst [vmem:[%s792 + $0x70] sm:$0xff] %v647
        %808 = vst [vmem:[%s792 + $0x78] sm:$0xff] %v649
        %809 = vst [vmem:[%s792 + $0x80] sm:$0xff] %v652
        %810 = vst [vmem:[%s792 + $0x88] sm:$0xff] %v654
        %811 = vst [vmem:[%s792 + $0x90] sm:$0xff] %v657
        %812 = vst [vmem:[%s792 + $0x98] sm:$0xff] %v659
        %813 = vst [vmem:[%s792 + $0xa0] sm:$0xff] %v662
        %814 = vst [vmem:[%s792 + $0xa8] sm:$0xff] %v664
        %815 = vst [vmem:[%s792 + $0xb0] sm:$0xff] %v667
        %816 = vst [vmem:[%s792 + $0xb8] sm:$0xff] %v669
        %817 = vst [vmem:[%s792 + $0xc0] sm:$0xff] %v672
        %818 = vst [vmem:[%s792 + $0xc8] sm:$0xff] %v674
        %819 = vst [vmem:[%s792 + $0xd0] sm:$0xff] %v677
        %820 = vst [vmem:[%s792 + $0xd8] sm:$0xff] %v679
        %821 = vst [vmem:[%s792 + $0xe0] sm:$0xff] %v682
        %822 = vst [vmem:[%s792 + $0xe8] sm:$0xff] %v684
        %823 = vst [vmem:[%s792 + $0xf0] sm:$0xff] %v687
        %824 = vst [vmem:[%s792 + $0xf8] sm:$0xff] %v689
        %825 = vst [vmem:[%s792 + $0x100] sm:$0xff] %v692
        %826 = vst [vmem:[%s792 + $0x108] sm:$0xff] %v694
        %827 = vst [vmem:[%s792 + $0x110] sm:$0xff] %v697
        %828 = vst [vmem:[%s792 + $0x118] sm:$0xff] %v699
        %829 = vst [vmem:[%s792 + $0x120] sm:$0xff] %v702
        %830 = vst [vmem:[%s792 + $0x128] sm:$0xff] %v704
        %831 = vst [vmem:[%s792 + $0x130] sm:$0xff] %v707
        %832 = vst [vmem:[%s792 + $0x138] sm:$0xff] %v709
        %833 = vst [vmem:[%s792 + $0x140] sm:$0xff] %v712
        %834 = vst [vmem:[%s792 + $0x148] sm:$0xff] %v714
        %835 = vst [vmem:[%s792 + $0x150] sm:$0xff] %v717
        %836 = vst [vmem:[%s792 + $0x158] sm:$0xff] %v719
        %837 = vst [vmem:[%s792 + $0x160] sm:$0xff] %v722
        %838 = vst [vmem:[%s792 + $0x168] sm:$0xff] %v724
        %839 = vst [vmem:[%s792 + $0x170] sm:$0xff] %v727
        %840 = vst [vmem:[%s792 + $0x178] sm:$0xff] %v729
        %841 = vst [vmem:[%s792 + $0x180] sm:$0xff] %v732
        %842 = vst [vmem:[%s792 + $0x188] sm:$0xff] %v734
        %843 = vst [vmem:[%s792 + $0x190] sm:$0xff] %v737
        %844 = vst [vmem:[%s792 + $0x198] sm:$0xff] %v739
        %845 = vst [vmem:[%s792 + $0x1a0] sm:$0xff] %v742
        %846 = vst [vmem:[%s792 + $0x1a8] sm:$0xff] %v744
        %847 = vst [vmem:[%s792 + $0x1b0] sm:$0xff] %v747
        %848 = vst [vmem:[%s792 + $0x1b8] sm:$0xff] %v749
        %849 = vst [vmem:[%s792 + $0x1c0] sm:$0xff] %v752
        %850 = vst [vmem:[%s792 + $0x1c8] sm:$0xff] %v754
        %851 = vst [vmem:[%s792 + $0x1d0] sm:$0xff] %v757
        %852 = vst [vmem:[%s792 + $0x1d8] sm:$0xff] %v759
        %853 = vst [vmem:[%s792 + $0x1e0] sm:$0xff] %v762
        %854 = vst [vmem:[%s792 + $0x1e8] sm:$0xff] %v764
        %855 = vst [vmem:[%s792 + $0x1f0] sm:$0xff] %v767
        %856 = vst [vmem:[%s792 + $0x1f8] sm:$0xff] %v769
        %857 = vst [vmem:[%s792 + $0x200] sm:$0xff] %v772
        %858 = vst [vmem:[%s792 + $0x208] sm:$0xff] %v774
        %859 = vst [vmem:[%s792 + $0x210] sm:$0xff] %v777
        %860 = vst [vmem:[%s792 + $0x218] sm:$0xff] %v779
        %861 = vst [vmem:[%s792 + $0x220] sm:$0xff] %v782
        %862 = vst [vmem:[%s792 + $0x228] sm:$0xff] %v784
        %863 = vst [vmem:[%s792 + $0x230] sm:$0xff] %v787
        %864 = vst [vmem:[%s792 + $0x238] sm:$0xff] %v789
        %v865 = vld [vmem:[#allocation3] sm:$0x1]
        %v866 = vadd.f32 %v612, %v614
        %v867 = vadd.f32 %v866, %v617
        %v868 = vadd.f32 %v867, %v619
        %v869 = vadd.f32 %v868, %v622
        %v870 = vadd.f32 %v869, %v624
        %v871 = vadd.f32 %v870, %v627
        %v872 = vadd.f32 %v871, %v629
        %v873 = vadd.f32 %v872, %v632
        %v874 = vadd.f32 %v873, %v634
        %v875 = vadd.f32 %v874, %v637
        %v876 = vadd.f32 %v875, %v639
        %v877 = vadd.f32 %v876, %v642
        %v878 = vadd.f32 %v877, %v644
        %v879 = vadd.f32 %v878, %v647
        %v880 = vadd.f32 %v879, %v649
        %v881 = vadd.f32 %v880, %v652
        %v882 = vadd.f32 %v881, %v654
        %v883 = vadd.f32 %v882, %v657
        %v884 = vadd.f32 %v883, %v659
        %v885 = vadd.f32 %v884, %v662
        %v886 = vadd.f32 %v885, %v664
        %v887 = vadd.f32 %v886, %v667
        %v888 = vadd.f32 %v887, %v669
        %v889 = vadd.f32 %v888, %v672
        %v890 = vadd.f32 %v889, %v674
        %v891 = vadd.f32 %v890, %v677
        %v892 = vadd.f32 %v891, %v679
        %v893 = vadd.f32 %v892, %v682
        %v894 = vadd.f32 %v893, %v684
        %v895 = vadd.f32 %v894, %v687
        %v896 = vadd.f32 %v895, %v689
        %v897 = vadd.f32 %v896, %v692
        %v898 = vadd.f32 %v897, %v694
        %v899 = vadd.f32 %v898, %v697
        %v900 = vadd.f32 %v899, %v699
        %v901 = vadd.f32 %v900, %v702
        %v902 = vadd.f32 %v901, %v704
        %v903 = vadd.f32 %v902, %v707
        %v904 = vadd.f32 %v903, %v709
        %v905 = vadd.f32 %v904, %v712
        %v906 = vadd.f32 %v905, %v714
        %v907 = vadd.f32 %v906, %v717
        %v908 = vadd.f32 %v907, %v719
        %v909 = vadd.f32 %v908, %v722
        %v910 = vadd.f32 %v909, %v724
        %v911 = vadd.f32 %v910, %v727
        %v912 = vadd.f32 %v911, %v729
        %v913 = vadd.f32 %v912, %v732
        %v914 = vadd.f32 %v913, %v734
        %v915 = vadd.f32 %v914, %v737
        %v916 = vadd.f32 %v915, %v739
        %v917 = vadd.f32 %v916, %v742
        %v918 = vadd.f32 %v917, %v744
        %v919 = vadd.f32 %v918, %v747
        %v920 = vadd.f32 %v919, %v749
        %v921 = vadd.f32 %v920, %v752
        %v922 = vadd.f32 %v921, %v754
        %v923 = vadd.f32 %v922, %v757
        %v924 = vadd.f32 %v923, %v759
        %v925 = vadd.f32 %v924, %v762
        %v926 = vadd.f32 %v925, %v764
        %v927 = vadd.f32 %v926, %v767
        %v928 = vadd.f32 %v927, %v769
        %v929 = vadd.f32 %v928, %v772
        %v930 = vadd.f32 %v929, %v774
        %v931 = vadd.f32 %v930, %v777
        %v932 = vadd.f32 %v931, %v779
        %v933 = vadd.f32 %v932, %v782
        %v934 = vadd.f32 %v933, %v784
        %v935 = vadd.f32 %v934, %v787
        %v936 = vadd.f32 %v935, %v789
        %v937 = vrot.slane %v936, 4
        %v938 = vadd.f32 %v936, %v937
        %v939 = vrot.slane %v938, 2
        %v940 = vadd.f32 %v938, %v939
        %v941 = vrot.slane %v940, 1
        %v942 = vadd.f32 %v940, %v941
        %v943 = vadd.f32 %v865, %v942
        %944 = vst [vmem:[#allocation3] sm:$0x1] %v943
        %v945 = vld [vmem:[#allocation4] sm:$0x1]
        %v946 = vmul.f32 %v612, %v612
        %v947 = vmul.f32 %v614, %v614
        %v948 = vmul.f32 %v617, %v617
        %v949 = vmul.f32 %v619, %v619
        %v950 = vmul.f32 %v622, %v622
        %v951 = vmul.f32 %v624, %v624
        %v952 = vmul.f32 %v627, %v627
        %v953 = vmul.f32 %v629, %v629
        %v954 = vmul.f32 %v632, %v632
        %v955 = vmul.f32 %v634, %v634
        %v956 = vmul.f32 %v637, %v637
        %v957 = vmul.f32 %v639, %v639
        %v958 = vmul.f32 %v642, %v642
        %v959 = vmul.f32 %v644, %v644
        %v960 = vmul.f32 %v647, %v647
        %v961 = vmul.f32 %v649, %v649
        %v962 = vmul.f32 %v652, %v652
        %v963 = vmul.f32 %v654, %v654
        %v964 = vmul.f32 %v657, %v657
        %v965 = vmul.f32 %v659, %v659
        %v966 = vmul.f32 %v662, %v662
        %v967 = vmul.f32 %v664, %v664
        %v968 = vmul.f32 %v667, %v667
        %v969 = vmul.f32 %v669, %v669
        %v970 = vmul.f32 %v672, %v672
        %v971 = vmul.f32 %v674, %v674
        %v972 = vmul.f32 %v677, %v677
        %v973 = vmul.f32 %v679, %v679
        %v974 = vmul.f32 %v682, %v682
        %v975 = vmul.f32 %v684, %v684
        %v976 = vmul.f32 %v687, %v687
        %v977 = vmul.f32 %v689, %v689
        %v978 = vmul.f32 %v692, %v692
        %v979 = vmul.f32 %v694, %v694
        %v980 = vmul.f32 %v697, %v697
        %v981 = vmul.f32 %v699, %v699
        %v982 = vmul.f32 %v702, %v702
        %v983 = vmul.f32 %v704, %v704
        %v984 = vmul.f32 %v707, %v707
        %v985 = vmul.f32 %v709, %v709
        %v986 = vmul.f32 %v712, %v712
        %v987 = vmul.f32 %v714, %v714
        %v988 = vmul.f32 %v717, %v717
        %v989 = vmul.f32 %v719, %v719
        %v990 = vmul.f32 %v722, %v722
        %v991 = vmul.f32 %v724, %v724
        %v992 = vmul.f32 %v727, %v727
        %v993 = vmul.f32 %v729, %v729
        %v994 = vmul.f32 %v732, %v732
        %v995 = vmul.f32 %v734, %v734
        %v996 = vmul.f32 %v737, %v737
        %v997 = vmul.f32 %v739, %v739
        %v998 = vmul.f32 %v742, %v742
        %v999 = vmul.f32 %v744, %v744
        %v1000 = vmul.f32 %v747, %v747
        %v1001 = vmul.f32 %v749, %v749
        %v1002 = vmul.f32 %v752, %v752
        %v1003 = vmul.f32 %v754, %v754
        %v1004 = vmul.f32 %v757, %v757
        %v1005 = vmul.f32 %v759, %v759
        %v1006 = vmul.f32 %v762, %v762
        %v1007 = vmul.f32 %v764, %v764
        %v1008 = vmul.f32 %v767, %v767
        %v1009 = vmul.f32 %v769, %v769
        %v1010 = vmul.f32 %v772, %v772
        %v1011 = vmul.f32 %v774, %v774
        %v1012 = vmul.f32 %v777, %v777
        %v1013 = vmul.f32 %v779, %v779
        %v1014 = vmul.f32 %v782, %v782
        %v1015 = vmul.f32 %v784, %v784
        %v1016 = vmul.f32 %v787, %v787
        %v1017 = vmul.f32 %v789, %v789
        %v1018 = vadd.f32 %v946, %v947
        %v1019 = vadd.f32 %v1018, %v948
        %v1020 = vadd.f32 %v1019, %v949
        %v1021 = vadd.f32 %v1020, %v950
        %v1022 = vadd.f32 %v1021, %v951
        %v1023 = vadd.f32 %v1022, %v952
        %v1024 = vadd.f32 %v1023, %v953
        %v1025 = vadd.f32 %v1024, %v954
        %v1026 = vadd.f32 %v1025, %v955
        %v1027 = vadd.f32 %v1026, %v956
        %v1028 = vadd.f32 %v1027, %v957
        %v1029 = vadd.f32 %v1028, %v958
        %v1030 = vadd.f32 %v1029, %v959
        %v1031 = vadd.f32 %v1030, %v960
        %v1032 = vadd.f32 %v1031, %v961
        %v1033 = vadd.f32 %v1032, %v962
        %v1034 = vadd.f32 %v1033, %v963
        %v1035 = vadd.f32 %v1034, %v964
        %v1036 = vadd.f32 %v1035, %v965
        %v1037 = vadd.f32 %v1036, %v966
        %v1038 = vadd.f32 %v1037, %v967
        %v1039 = vadd.f32 %v1038, %v968
        %v1040 = vadd.f32 %v1039, %v969
        %v1041 = vadd.f32 %v1040, %v970
        %v1042 = vadd.f32 %v1041, %v971
        %v1043 = vadd.f32 %v1042, %v972
        %v1044 = vadd.f32 %v1043, %v973
        %v1045 = vadd.f32 %v1044, %v974
        %v1046 = vadd.f32 %v1045, %v975
        %v1047 = vadd.f32 %v1046, %v976
        %v1048 = vadd.f32 %v1047, %v977
        %v1049 = vadd.f32 %v1048, %v978
        %v1050 = vadd.f32 %v1049, %v979
        %v1051 = vadd.f32 %v1050, %v980
        %v1052 = vadd.f32 %v1051, %v981
        %v1053 = vadd.f32 %v1052, %v982
        %v1054 = vadd.f32 %v1053, %v983
        %v1055 = vadd.f32 %v1054, %v984
        %v1056 = vadd.f32 %v1055, %v985
        %v1057 = vadd.f32 %v1056, %v986
        %v1058 = vadd.f32 %v1057, %v987
        %v1059 = vadd.f32 %v1058, %v988
        %v1060 = vadd.f32 %v1059, %v989
        %v1061 = vadd.f32 %v1060, %v990
        %v1062 = vadd.f32 %v1061, %v991
        %v1063 = vadd.f32 %v1062, %v992
        %v1064 = vadd.f32 %v1063, %v993
        %v1065 = vadd.f32 %v1064, %v994
        %v1066 = vadd.f32 %v1065, %v995
        %v1067 = vadd.f32 %v1066, %v996
        %v1068 = vadd.f32 %v1067, %v997
        %v1069 = vadd.f32 %v1068, %v998
        %v1070 = vadd.f32 %v1069, %v999
        %v1071 = vadd.f32 %v1070, %v1000
        %v1072 = vadd.f32 %v1071, %v1001
        %v1073 = vadd.f32 %v1072, %v1002
        %v1074 = vadd.f32 %v1073, %v1003
        %v1075 = vadd.f32 %v1074, %v1004
        %v1076 = vadd.f32 %v1075, %v1005
        %v1077 = vadd.f32 %v1076, %v1006
        %v1078 = vadd.f32 %v1077, %v1007
        %v1079 = vadd.f32 %v1078, %v1008
        %v1080 = vadd.f32 %v1079, %v1009
        %v1081 = vadd.f32 %v1080, %v1010
        %v1082 = vadd.f32 %v1081, %v1011
        %v1083 = vadd.f32 %v1082, %v1012
        %v1084 = vadd.f32 %v1083, %v1013
        %v1085 = vadd.f32 %v1084, %v1014
        %v1086 = vadd.f32 %v1085, %v1015
        %v1087 = vadd.f32 %v1086, %v1016
        %v1088 = vadd.f32 %v1087, %v1017
        %v1089 = vrot.slane %v1088, 4
        %v1090 = vadd.f32 %v1088, %v1089
        %v1091 = vrot.slane %v1090, 2
        %v1092 = vadd.f32 %v1090, %v1091
        %v1093 = vrot.slane %v1092, 1
        %v1094 = vadd.f32 %v1092, %v1093
        %v1095 = vadd.f32 %v945, %v1094
        %1096 = vst [vmem:[#allocation4] sm:$0x1] %v1095
      $region44: #{lp_discriminator_forward.5} parent=35 // pred_fallthru
        _
      %p1097 = scmp.eq.s32.totalorder %s19, 1
      // Predicated region
      $region45: #{lp_discriminator_forward.5} parent=35 // pred_check
        %p1098 = pneg %p1097
      $region46: #{lp_discriminator_forward.5} parent=35 // pred_check_branch
        %1100 = sbr.rel (%p1098) target = $region48
      $region47: #{lp_discriminator_forward.5} parent=35 // pred_region
        %v1101 = vld [vmem:[#allocation3] sm:$0x1]
        %v1102 = vmul.f32 %v1101, 0.00086805556
        %v1103 = vld [vmem:[#allocation4] sm:$0x1]
        %v1104 = vmul.f32 %v1103, 0.00086805556
        %v1105 = vmul.f32 %v1102, %v1102
        %v1106 = vsub.f32 %v1104, %v1105
        %v1107 = vmax.f32 %v1106, 0.0
        %v1108 = vadd.f32 %v1107, 1e-05
        %v1109 = vrsqrt.pop %v1108
        %v1110 = vmul.f32 %v1109, %v1108
        %v1111 = vmul.f32 %v1110, %v1109
        %v1112 = vmul.f32 0.5, %v1111
        %v1113 = vsub.f32 1.5, %v1112
        %v1114 = vmul.f32 %v1109, %v1113
        %vm1115 = vweird.f32 %v1108
        %vm1116 = vweird.f32 %v1109
        %vm1117 = vmor %vm1115, %vm1116
        %v1118 = vsel %vm1117, %v1109, %v1114
        %v1119 = vld [vmem:[%s2] sm:$0x1]
        %v1120 = vmul.f32 %v1118, %v1119
        %v1121 = vld [vmem:[%s3] sm:$0x1]
        %v1122 = vmul.f32 %v1102, %v1120
        %v1123 = vsub.f32 %v1121, %v1122
        %s1124 = smul.u32 %s20, 576
        %s1125 = scalar_lea.vmem [#allocation2], %s1124
        %v1126 = vld [vmem:[%s1125] sm:$0xff]
        %v1127 = vld [vmem:[%s1125 + $0x8] sm:$0xff]
        %v1128 = vld [vmem:[%s1125 + $0x10] sm:$0xff]
        %v1129 = vld [vmem:[%s1125 + $0x18] sm:$0xff]
        %v1130 = vld [vmem:[%s1125 + $0x20] sm:$0xff]
        %v1131 = vld [vmem:[%s1125 + $0x28] sm:$0xff]
        %v1132 = vld [vmem:[%s1125 + $0x30] sm:$0xff]
        %v1133 = vld [vmem:[%s1125 + $0x38] sm:$0xff]
        %v1134 = vld [vmem:[%s1125 + $0x40] sm:$0xff]
        %v1135 = vld [vmem:[%s1125 + $0x48] sm:$0xff]
        %v1136 = vld [vmem:[%s1125 + $0x50] sm:$0xff]
        %v1137 = vld [vmem:[%s1125 + $0x58] sm:$0xff]
        %v1138 = vld [vmem:[%s1125 + $0x60] sm:$0xff]
        %v1139 = vld [vmem:[%s1125 + $0x68] sm:$0xff]
        %v1140 = vld [vmem:[%s1125 + $0x70] sm:$0xff]
        %v1141 = vld [vmem:[%s1125 + $0x78] sm:$0xff]
        %v1142 = vld [vmem:[%s1125 + $0x80] sm:$0xff]
        %v1143 = vld [vmem:[%s1125 + $0x88] sm:$0xff]
        %v1144 = vld [vmem:[%s1125 + $0x90] sm:$0xff]
        %v1145 = vld [vmem:[%s1125 + $0x98] sm:$0xff]
        %v1146 = vld [vmem:[%s1125 + $0xa0] sm:$0xff]
        %v1147 = vld [vmem:[%s1125 + $0xa8] sm:$0xff]
        %v1148 = vld [vmem:[%s1125 + $0xb0] sm:$0xff]
        %v1149 = vld [vmem:[%s1125 + $0xb8] sm:$0xff]
        %v1150 = vld [vmem:[%s1125 + $0xc0] sm:$0xff]
        %v1151 = vld [vmem:[%s1125 + $0xc8] sm:$0xff]
        %v1152 = vld [vmem:[%s1125 + $0xd0] sm:$0xff]
        %v1153 = vld [vmem:[%s1125 + $0xd8] sm:$0xff]
        %v1154 = vld [vmem:[%s1125 + $0xe0] sm:$0xff]
        %v1155 = vld [vmem:[%s1125 + $0xe8] sm:$0xff]
        %v1156 = vld [vmem:[%s1125 + $0xf0] sm:$0xff]
        %v1157 = vld [vmem:[%s1125 + $0xf8] sm:$0xff]
        %v1158 = vld [vmem:[%s1125 + $0x100] sm:$0xff]
        %v1159 = vld [vmem:[%s1125 + $0x108] sm:$0xff]
        %v1160 = vld [vmem:[%s1125 + $0x110] sm:$0xff]
        %v1161 = vld [vmem:[%s1125 + $0x118] sm:$0xff]
        %v1162 = vld [vmem:[%s1125 + $0x120] sm:$0xff]
        %v1163 = vld [vmem:[%s1125 + $0x128] sm:$0xff]
        %v1164 = vld [vmem:[%s1125 + $0x130] sm:$0xff]
        %v1165 = vld [vmem:[%s1125 + $0x138] sm:$0xff]
        %v1166 = vld [vmem:[%s1125 + $0x140] sm:$0xff]
        %v1167 = vld [vmem:[%s1125 + $0x148] sm:$0xff]
        %v1168 = vld [vmem:[%s1125 + $0x150] sm:$0xff]
        %v1169 = vld [vmem:[%s1125 + $0x158] sm:$0xff]
        %v1170 = vld [vmem:[%s1125 + $0x160] sm:$0xff]
        %v1171 = vld [vmem:[%s1125 + $0x168] sm:$0xff]
        %v1172 = vld [vmem:[%s1125 + $0x170] sm:$0xff]
        %v1173 = vld [vmem:[%s1125 + $0x178] sm:$0xff]
        %v1174 = vld [vmem:[%s1125 + $0x180] sm:$0xff]
        %v1175 = vld [vmem:[%s1125 + $0x188] sm:$0xff]
        %v1176 = vld [vmem:[%s1125 + $0x190] sm:$0xff]
        %v1177 = vld [vmem:[%s1125 + $0x198] sm:$0xff]
        %v1178 = vld [vmem:[%s1125 + $0x1a0] sm:$0xff]
        %v1179 = vld [vmem:[%s1125 + $0x1a8] sm:$0xff]
        %v1180 = vld [vmem:[%s1125 + $0x1b0] sm:$0xff]
        %v1181 = vld [vmem:[%s1125 + $0x1b8] sm:$0xff]
        %v1182 = vld [vmem:[%s1125 + $0x1c0] sm:$0xff]
        %v1183 = vld [vmem:[%s1125 + $0x1c8] sm:$0xff]
        %v1184 = vld [vmem:[%s1125 + $0x1d0] sm:$0xff]
        %v1185 = vld [vmem:[%s1125 + $0x1d8] sm:$0xff]
        %v1186 = vld [vmem:[%s1125 + $0x1e0] sm:$0xff]
        %v1187 = vld [vmem:[%s1125 + $0x1e8] sm:$0xff]
        %v1188 = vld [vmem:[%s1125 + $0x1f0] sm:$0xff]
        %v1189 = vld [vmem:[%s1125 + $0x1f8] sm:$0xff]
        %v1190 = vld [vmem:[%s1125 + $0x200] sm:$0xff]
        %v1191 = vld [vmem:[%s1125 + $0x208] sm:$0xff]
        %v1192 = vld [vmem:[%s1125 + $0x210] sm:$0xff]
        %v1193 = vld [vmem:[%s1125 + $0x218] sm:$0xff]
        %v1194 = vld [vmem:[%s1125 + $0x220] sm:$0xff]
        %v1195 = vld [vmem:[%s1125 + $0x228] sm:$0xff]
        %v1196 = vld [vmem:[%s1125 + $0x230] sm:$0xff]
        %v1197 = vld [vmem:[%s1125 + $0x238] sm:$0xff]
        %v1199 = vperm.slane %v1120, 0
        %v1201 = vmul.f32 %v1126, %v1199
        %v1202 = vmul.f32 %v1127, %v1199
        %v1203 = vmul.f32 %v1128, %v1199
        %v1204 = vmul.f32 %v1129, %v1199
        %v1205 = vmul.f32 %v1130, %v1199
        %v1206 = vmul.f32 %v1131, %v1199
        %v1207 = vmul.f32 %v1132, %v1199
        %v1208 = vmul.f32 %v1133, %v1199
        %v1209 = vmul.f32 %v1134, %v1199
        %v1210 = vmul.f32 %v1135, %v1199
        %v1211 = vmul.f32 %v1136, %v1199
        %v1212 = vmul.f32 %v1137, %v1199
        %v1213 = vmul.f32 %v1138, %v1199
        %v1214 = vmul.f32 %v1139, %v1199
        %v1215 = vmul.f32 %v1140, %v1199
        %v1216 = vmul.f32 %v1141, %v1199
        %v1217 = vmul.f32 %v1142, %v1199
        %v1218 = vmul.f32 %v1143, %v1199
        %v1219 = vmul.f32 %v1144, %v1199
        %v1220 = vmul.f32 %v1145, %v1199
        %v1221 = vmul.f32 %v1146, %v1199
        %v1222 = vmul.f32 %v1147, %v1199
        %v1223 = vmul.f32 %v1148, %v1199
        %v1224 = vmul.f32 %v1149, %v1199
        %v1225 = vmul.f32 %v1150, %v1199
        %v1226 = vmul.f32 %v1151, %v1199
        %v1227 = vmul.f32 %v1152, %v1199
        %v1228 = vmul.f32 %v1153, %v1199
        %v1229 = vmul.f32 %v1154, %v1199
        %v1230 = vmul.f32 %v1155, %v1199
        %v1231 = vmul.f32 %v1156, %v1199
        %v1232 = vmul.f32 %v1157, %v1199
        %v1233 = vmul.f32 %v1158, %v1199
        %v1234 = vmul.f32 %v1159, %v1199
        %v1235 = vmul.f32 %v1160, %v1199
        %v1236 = vmul.f32 %v1161, %v1199
        %v1237 = vmul.f32 %v1162, %v1199
        %v1238 = vmul.f32 %v1163, %v1199
        %v1239 = vmul.f32 %v1164, %v1199
        %v1240 = vmul.f32 %v1165, %v1199
        %v1241 = vmul.f32 %v1166, %v1199
        %v1242 = vmul.f32 %v1167, %v1199
        %v1243 = vmul.f32 %v1168, %v1199
        %v1244 = vmul.f32 %v1169, %v1199
        %v1245 = vmul.f32 %v1170, %v1199
        %v1246 = vmul.f32 %v1171, %v1199
        %v1247 = vmul.f32 %v1172, %v1199
        %v1248 = vmul.f32 %v1173, %v1199
        %v1249 = vmul.f32 %v1174, %v1199
        %v1250 = vmul.f32 %v1175, %v1199
        %v1251 = vmul.f32 %v1176, %v1199
        %v1252 = vmul.f32 %v1177, %v1199
        %v1253 = vmul.f32 %v1178, %v1199
        %v1254 = vmul.f32 %v1179, %v1199
        %v1255 = vmul.f32 %v1180, %v1199
        %v1256 = vmul.f32 %v1181, %v1199
        %v1257 = vmul.f32 %v1182, %v1199
        %v1258 = vmul.f32 %v1183, %v1199
        %v1259 = vmul.f32 %v1184, %v1199
        %v1260 = vmul.f32 %v1185, %v1199
        %v1261 = vmul.f32 %v1186, %v1199
        %v1262 = vmul.f32 %v1187, %v1199
        %v1263 = vmul.f32 %v1188, %v1199
        %v1264 = vmul.f32 %v1189, %v1199
        %v1265 = vmul.f32 %v1190, %v1199
        %v1266 = vmul.f32 %v1191, %v1199
        %v1267 = vmul.f32 %v1192, %v1199
        %v1268 = vmul.f32 %v1193, %v1199
        %v1269 = vmul.f32 %v1194, %v1199
        %v1270 = vmul.f32 %v1195, %v1199
        %v1271 = vmul.f32 %v1196, %v1199
        %v1272 = vmul.f32 %v1197, %v1199
        %v1274 = vperm.slane %v1123, 0
        %v1276 = vadd.f32 %v1201, %v1274
        %v1277 = vadd.f32 %v1202, %v1274
        %v1278 = vadd.f32 %v1203, %v1274
        %v1279 = vadd.f32 %v1204, %v1274
        %v1280 = vadd.f32 %v1205, %v1274
        %v1281 = vadd.f32 %v1206, %v1274
        %v1282 = vadd.f32 %v1207, %v1274
        %v1283 = vadd.f32 %v1208, %v1274
        %v1284 = vadd.f32 %v1209, %v1274
        %v1285 = vadd.f32 %v1210, %v1274
        %v1286 = vadd.f32 %v1211, %v1274
        %v1287 = vadd.f32 %v1212, %v1274
        %v1288 = vadd.f32 %v1213, %v1274
        %v1289 = vadd.f32 %v1214, %v1274
        %v1290 = vadd.f32 %v1215, %v1274
        %v1291 = vadd.f32 %v1216, %v1274
        %v1292 = vadd.f32 %v1217, %v1274
        %v1293 = vadd.f32 %v1218, %v1274
        %v1294 = vadd.f32 %v1219, %v1274
        %v1295 = vadd.f32 %v1220, %v1274
        %v1296 = vadd.f32 %v1221, %v1274
        %v1297 = vadd.f32 %v1222, %v1274
        %v1298 = vadd.f32 %v1223, %v1274
        %v1299 = vadd.f32 %v1224, %v1274
        %v1300 = vadd.f32 %v1225, %v1274
        %v1301 = vadd.f32 %v1226, %v1274
        %v1302 = vadd.f32 %v1227, %v1274
        %v1303 = vadd.f32 %v1228, %v1274
        %v1304 = vadd.f32 %v1229, %v1274
        %v1305 = vadd.f32 %v1230, %v1274
        %v1306 = vadd.f32 %v1231, %v1274
        %v1307 = vadd.f32 %v1232, %v1274
        %v1308 = vadd.f32 %v1233, %v1274
        %v1309 = vadd.f32 %v1234, %v1274
        %v1310 = vadd.f32 %v1235, %v1274
        %v1311 = vadd.f32 %v1236, %v1274
        %v1312 = vadd.f32 %v1237, %v1274
        %v1313 = vadd.f32 %v1238, %v1274
        %v1314 = vadd.f32 %v1239, %v1274
        %v1315 = vadd.f32 %v1240, %v1274
        %v1316 = vadd.f32 %v1241, %v1274
        %v1317 = vadd.f32 %v1242, %v1274
        %v1318 = vadd.f32 %v1243, %v1274
        %v1319 = vadd.f32 %v1244, %v1274
        %v1320 = vadd.f32 %v1245, %v1274
        %v1321 = vadd.f32 %v1246, %v1274
        %v1322 = vadd.f32 %v1247, %v1274
        %v1323 = vadd.f32 %v1248, %v1274
        %v1324 = vadd.f32 %v1249, %v1274
        %v1325 = vadd.f32 %v1250, %v1274
        %v1326 = vadd.f32 %v1251, %v1274
        %v1327 = vadd.f32 %v1252, %v1274
        %v1328 = vadd.f32 %v1253, %v1274
        %v1329 = vadd.f32 %v1254, %v1274
        %v1330 = vadd.f32 %v1255, %v1274
        %v1331 = vadd.f32 %v1256, %v1274
        %v1332 = vadd.f32 %v1257, %v1274
        %v1333 = vadd.f32 %v1258, %v1274
        %v1334 = vadd.f32 %v1259, %v1274
        %v1335 = vadd.f32 %v1260, %v1274
        %v1336 = vadd.f32 %v1261, %v1274
        %v1337 = vadd.f32 %v1262, %v1274
        %v1338 = vadd.f32 %v1263, %v1274
        %v1339 = vadd.f32 %v1264, %v1274
        %v1340 = vadd.f32 %v1265, %v1274
        %v1341 = vadd.f32 %v1266, %v1274
        %v1342 = vadd.f32 %v1267, %v1274
        %v1343 = vadd.f32 %v1268, %v1274
        %v1344 = vadd.f32 %v1269, %v1274
        %v1345 = vadd.f32 %v1270, %v1274
        %v1346 = vadd.f32 %v1271, %v1274
        %v1347 = vadd.f32 %v1272, %v1274
        %vm1348 = vcmp.ge.f32.partialorder %v1276, 0.0
        %vm1349 = vcmp.ge.f32.partialorder %v1277, 0.0
        %vm1350 = vcmp.ge.f32.partialorder %v1278, 0.0
        %vm1351 = vcmp.ge.f32.partialorder %v1279, 0.0
        %vm1352 = vcmp.ge.f32.partialorder %v1280, 0.0
        %vm1353 = vcmp.ge.f32.partialorder %v1281, 0.0
        %vm1354 = vcmp.ge.f32.partialorder %v1282, 0.0
        %vm1355 = vcmp.ge.f32.partialorder %v1283, 0.0
        %vm1356 = vcmp.ge.f32.partialorder %v1284, 0.0
        %vm1357 = vcmp.ge.f32.partialorder %v1285, 0.0
        %vm1358 = vcmp.ge.f32.partialorder %v1286, 0.0
        %vm1359 = vcmp.ge.f32.partialorder %v1287, 0.0
        %vm1360 = vcmp.ge.f32.partialorder %v1288, 0.0
        %vm1361 = vcmp.ge.f32.partialorder %v1289, 0.0
        %vm1362 = vcmp.ge.f32.partialorder %v1290, 0.0
        %vm1363 = vcmp.ge.f32.partialorder %v1291, 0.0
        %vm1364 = vcmp.ge.f32.partialorder %v1292, 0.0
        %vm1365 = vcmp.ge.f32.partialorder %v1293, 0.0
        %vm1366 = vcmp.ge.f32.partialorder %v1294, 0.0
        %vm1367 = vcmp.ge.f32.partialorder %v1295, 0.0
        %vm1368 = vcmp.ge.f32.partialorder %v1296, 0.0
        %vm1369 = vcmp.ge.f32.partialorder %v1297, 0.0
        %vm1370 = vcmp.ge.f32.partialorder %v1298, 0.0
        %vm1371 = vcmp.ge.f32.partialorder %v1299, 0.0
        %vm1372 = vcmp.ge.f32.partialorder %v1300, 0.0
        %vm1373 = vcmp.ge.f32.partialorder %v1301, 0.0
        %vm1374 = vcmp.ge.f32.partialorder %v1302, 0.0
        %vm1375 = vcmp.ge.f32.partialorder %v1303, 0.0
        %vm1376 = vcmp.ge.f32.partialorder %v1304, 0.0
        %vm1377 = vcmp.ge.f32.partialorder %v1305, 0.0
        %vm1378 = vcmp.ge.f32.partialorder %v1306, 0.0
        %vm1379 = vcmp.ge.f32.partialorder %v1307, 0.0
        %vm1380 = vcmp.ge.f32.partialorder %v1308, 0.0
        %vm1381 = vcmp.ge.f32.partialorder %v1309, 0.0
        %vm1382 = vcmp.ge.f32.partialorder %v1310, 0.0
        %vm1383 = vcmp.ge.f32.partialorder %v1311, 0.0
        %vm1384 = vcmp.ge.f32.partialorder %v1312, 0.0
        %vm1385 = vcmp.ge.f32.partialorder %v1313, 0.0
        %vm1386 = vcmp.ge.f32.partialorder %v1314, 0.0
        %vm1387 = vcmp.ge.f32.partialorder %v1315, 0.0
        %vm1388 = vcmp.ge.f32.partialorder %v1316, 0.0
        %vm1389 = vcmp.ge.f32.partialorder %v1317, 0.0
        %vm1390 = vcmp.ge.f32.partialorder %v1318, 0.0
        %vm1391 = vcmp.ge.f32.partialorder %v1319, 0.0
        %vm1392 = vcmp.ge.f32.partialorder %v1320, 0.0
        %vm1393 = vcmp.ge.f32.partialorder %v1321, 0.0
        %vm1394 = vcmp.ge.f32.partialorder %v1322, 0.0
        %vm1395 = vcmp.ge.f32.partialorder %v1323, 0.0
        %vm1396 = vcmp.ge.f32.partialorder %v1324, 0.0
        %vm1397 = vcmp.ge.f32.partialorder %v1325, 0.0
        %vm1398 = vcmp.ge.f32.partialorder %v1326, 0.0
        %vm1399 = vcmp.ge.f32.partialorder %v1327, 0.0
        %vm1400 = vcmp.ge.f32.partialorder %v1328, 0.0
        %vm1401 = vcmp.ge.f32.partialorder %v1329, 0.0
        %vm1402 = vcmp.ge.f32.partialorder %v1330, 0.0
        %vm1403 = vcmp.ge.f32.partialorder %v1331, 0.0
        %vm1404 = vcmp.ge.f32.partialorder %v1332, 0.0
        %vm1405 = vcmp.ge.f32.partialorder %v1333, 0.0
        %vm1406 = vcmp.ge.f32.partialorder %v1334, 0.0
        %vm1407 = vcmp.ge.f32.partialorder %v1335, 0.0
        %vm1408 = vcmp.ge.f32.partialorder %v1336, 0.0
        %vm1409 = vcmp.ge.f32.partialorder %v1337, 0.0
        %vm1410 = vcmp.ge.f32.partialorder %v1338, 0.0
        %vm1411 = vcmp.ge.f32.partialorder %v1339, 0.0
        %vm1412 = vcmp.ge.f32.partialorder %v1340, 0.0
        %vm1413 = vcmp.ge.f32.partialorder %v1341, 0.0
        %vm1414 = vcmp.ge.f32.partialorder %v1342, 0.0
        %vm1415 = vcmp.ge.f32.partialorder %v1343, 0.0
        %vm1416 = vcmp.ge.f32.partialorder %v1344, 0.0
        %vm1417 = vcmp.ge.f32.partialorder %v1345, 0.0
        %vm1418 = vcmp.ge.f32.partialorder %v1346, 0.0
        %vm1419 = vcmp.ge.f32.partialorder %v1347, 0.0
        %v1420 = vmul.f32 %v1276, 0.2
        %v1421 = vmul.f32 %v1277, 0.2
        %v1422 = vmul.f32 %v1278, 0.2
        %v1423 = vmul.f32 %v1279, 0.2
        %v1424 = vmul.f32 %v1280, 0.2
        %v1425 = vmul.f32 %v1281, 0.2
        %v1426 = vmul.f32 %v1282, 0.2
        %v1427 = vmul.f32 %v1283, 0.2
        %v1428 = vmul.f32 %v1284, 0.2
        %v1429 = vmul.f32 %v1285, 0.2
        %v1430 = vmul.f32 %v1286, 0.2
        %v1431 = vmul.f32 %v1287, 0.2
        %v1432 = vmul.f32 %v1288, 0.2
        %v1433 = vmul.f32 %v1289, 0.2
        %v1434 = vmul.f32 %v1290, 0.2
        %v1435 = vmul.f32 %v1291, 0.2
        %v1436 = vmul.f32 %v1292, 0.2
        %v1437 = vmul.f32 %v1293, 0.2
        %v1438 = vmul.f32 %v1294, 0.2
        %v1439 = vmul.f32 %v1295, 0.2
        %v1440 = vmul.f32 %v1296, 0.2
        %v1441 = vmul.f32 %v1297, 0.2
        %v1442 = vmul.f32 %v1298, 0.2
        %v1443 = vmul.f32 %v1299, 0.2
        %v1444 = vmul.f32 %v1300, 0.2
        %v1445 = vmul.f32 %v1301, 0.2
        %v1446 = vmul.f32 %v1302, 0.2
        %v1447 = vmul.f32 %v1303, 0.2
        %v1448 = vmul.f32 %v1304, 0.2
        %v1449 = vmul.f32 %v1305, 0.2
        %v1450 = vmul.f32 %v1306, 0.2
        %v1451 = vmul.f32 %v1307, 0.2
        %v1452 = vmul.f32 %v1308, 0.2
        %v1453 = vmul.f32 %v1309, 0.2
        %v1454 = vmul.f32 %v1310, 0.2
        %v1455 = vmul.f32 %v1311, 0.2
        %v1456 = vmul.f32 %v1312, 0.2
        %v1457 = vmul.f32 %v1313, 0.2
        %v1458 = vmul.f32 %v1314, 0.2
        %v1459 = vmul.f32 %v1315, 0.2
        %v1460 = vmul.f32 %v1316, 0.2
        %v1461 = vmul.f32 %v1317, 0.2
        %v1462 = vmul.f32 %v1318, 0.2
        %v1463 = vmul.f32 %v1319, 0.2
        %v1464 = vmul.f32 %v1320, 0.2
        %v1465 = vmul.f32 %v1321, 0.2
        %v1466 = vmul.f32 %v1322, 0.2
        %v1467 = vmul.f32 %v1323, 0.2
        %v1468 = vmul.f32 %v1324, 0.2
        %v1469 = vmul.f32 %v1325, 0.2
        %v1470 = vmul.f32 %v1326, 0.2
        %v1471 = vmul.f32 %v1327, 0.2
        %v1472 = vmul.f32 %v1328, 0.2
        %v1473 = vmul.f32 %v1329, 0.2
        %v1474 = vmul.f32 %v1330, 0.2
        %v1475 = vmul.f32 %v1331, 0.2
        %v1476 = vmul.f32 %v1332, 0.2
        %v1477 = vmul.f32 %v1333, 0.2
        %v1478 = vmul.f32 %v1334, 0.2
        %v1479 = vmul.f32 %v1335, 0.2
        %v1480 = vmul.f32 %v1336, 0.2
        %v1481 = vmul.f32 %v1337, 0.2
        %v1482 = vmul.f32 %v1338, 0.2
        %v1483 = vmul.f32 %v1339, 0.2
        %v1484 = vmul.f32 %v1340, 0.2
        %v1485 = vmul.f32 %v1341, 0.2
        %v1486 = vmul.f32 %v1342, 0.2
        %v1487 = vmul.f32 %v1343, 0.2
        %v1488 = vmul.f32 %v1344, 0.2
        %v1489 = vmul.f32 %v1345, 0.2
        %v1490 = vmul.f32 %v1346, 0.2
        %v1491 = vmul.f32 %v1347, 0.2
        %v1492 = vsel %vm1348, %v1276, %v1420
        %v1493 = vsel %vm1349, %v1277, %v1421
        %v1494 = vsel %vm1350, %v1278, %v1422
        %v1495 = vsel %vm1351, %v1279, %v1423
        %v1496 = vsel %vm1352, %v1280, %v1424
        %v1497 = vsel %vm1353, %v1281, %v1425
        %v1498 = vsel %vm1354, %v1282, %v1426
        %v1499 = vsel %vm1355, %v1283, %v1427
        %v1500 = vsel %vm1356, %v1284, %v1428
        %v1501 = vsel %vm1357, %v1285, %v1429
        %v1502 = vsel %vm1358, %v1286, %v1430
        %v1503 = vsel %vm1359, %v1287, %v1431
        %v1504 = vsel %vm1360, %v1288, %v1432
        %v1505 = vsel %vm1361, %v1289, %v1433
        %v1506 = vsel %vm1362, %v1290, %v1434
        %v1507 = vsel %vm1363, %v1291, %v1435
        %v1508 = vsel %vm1364, %v1292, %v1436
        %v1509 = vsel %vm1365, %v1293, %v1437
        %v1510 = vsel %vm1366, %v1294, %v1438
        %v1511 = vsel %vm1367, %v1295, %v1439
        %v1512 = vsel %vm1368, %v1296, %v1440
        %v1513 = vsel %vm1369, %v1297, %v1441
        %v1514 = vsel %vm1370, %v1298, %v1442
        %v1515 = vsel %vm1371, %v1299, %v1443
        %v1516 = vsel %vm1372, %v1300, %v1444
        %v1517 = vsel %vm1373, %v1301, %v1445
        %v1518 = vsel %vm1374, %v1302, %v1446
        %v1519 = vsel %vm1375, %v1303, %v1447
        %v1520 = vsel %vm1376, %v1304, %v1448
        %v1521 = vsel %vm1377, %v1305, %v1449
        %v1522 = vsel %vm1378, %v1306, %v1450
        %v1523 = vsel %vm1379, %v1307, %v1451
        %v1524 = vsel %vm1380, %v1308, %v1452
        %v1525 = vsel %vm1381, %v1309, %v1453
        %v1526 = vsel %vm1382, %v1310, %v1454
        %v1527 = vsel %vm1383, %v1311, %v1455
        %v1528 = vsel %vm1384, %v1312, %v1456
        %v1529 = vsel %vm1385, %v1313, %v1457
        %v1530 = vsel %vm1386, %v1314, %v1458
        %v1531 = vsel %vm1387, %v1315, %v1459
        %v1532 = vsel %vm1388, %v1316, %v1460
        %v1533 = vsel %vm1389, %v1317, %v1461
        %v1534 = vsel %vm1390, %v1318, %v1462
        %v1535 = vsel %vm1391, %v1319, %v1463
        %v1536 = vsel %vm1392, %v1320, %v1464
        %v1537 = vsel %vm1393, %v1321, %v1465
        %v1538 = vsel %vm1394, %v1322, %v1466
        %v1539 = vsel %vm1395, %v1323, %v1467
        %v1540 = vsel %vm1396, %v1324, %v1468
        %v1541 = vsel %vm1397, %v1325, %v1469
        %v1542 = vsel %vm1398, %v1326, %v1470
        %v1543 = vsel %vm1399, %v1327, %v1471
        %v1544 = vsel %vm1400, %v1328, %v1472
        %v1545 = vsel %vm1401, %v1329, %v1473
        %v1546 = vsel %vm1402, %v1330, %v1474
        %v1547 = vsel %vm1403, %v1331, %v1475
        %v1548 = vsel %vm1404, %v1332, %v1476
        %v1549 = vsel %vm1405, %v1333, %v1477
        %v1550 = vsel %vm1406, %v1334, %v1478
        %v1551 = vsel %vm1407, %v1335, %v1479
        %v1552 = vsel %vm1408, %v1336, %v1480
        %v1553 = vsel %vm1409, %v1337, %v1481
        %v1554 = vsel %vm1410, %v1338, %v1482
        %v1555 = vsel %vm1411, %v1339, %v1483
        %v1556 = vsel %vm1412, %v1340, %v1484
        %v1557 = vsel %vm1413, %v1341, %v1485
        %v1558 = vsel %vm1414, %v1342, %v1486
        %v1559 = vsel %vm1415, %v1343, %v1487
        %v1560 = vsel %vm1416, %v1344, %v1488
        %v1561 = vsel %vm1417, %v1345, %v1489
        %v1562 = vsel %vm1418, %v1346, %v1490
        %v1563 = vsel %vm1419, %v1347, %v1491
        %1564 = vst [vmem:[%s236] sm:$0xff] %v1492
        %1565 = vst [vmem:[%s236 + $0x8] sm:$0xff] %v1493
        %1566 = vst [vmem:[%s236 + $0x10] sm:$0xff] %v1494
        %1567 = vst [vmem:[%s236 + $0x18] sm:$0xff] %v1495
        %1568 = vst [vmem:[%s236 + $0x20] sm:$0xff] %v1496
        %1569 = vst [vmem:[%s236 + $0x28] sm:$0xff] %v1497
        %1570 = vst [vmem:[%s236 + $0x30] sm:$0xff] %v1498
        %1571 = vst [vmem:[%s236 + $0x38] sm:$0xff] %v1499
        %1572 = vst [vmem:[%s236 + $0x40] sm:$0xff] %v1500
        %1573 = vst [vmem:[%s236 + $0x48] sm:$0xff] %v1501
        %1574 = vst [vmem:[%s236 + $0x50] sm:$0xff] %v1502
        %1575 = vst [vmem:[%s236 + $0x58] sm:$0xff] %v1503
        %1576 = vst [vmem:[%s236 + $0x60] sm:$0xff] %v1504
        %1577 = vst [vmem:[%s236 + $0x68] sm:$0xff] %v1505
        %1578 = vst [vmem:[%s236 + $0x70] sm:$0xff] %v1506
        %1579 = vst [vmem:[%s236 + $0x78] sm:$0xff] %v1507
        %1580 = vst [vmem:[%s236 + $0x80] sm:$0xff] %v1508
        %1581 = vst [vmem:[%s236 + $0x88] sm:$0xff] %v1509
        %1582 = vst [vmem:[%s236 + $0x90] sm:$0xff] %v1510
        %1583 = vst [vmem:[%s236 + $0x98] sm:$0xff] %v1511
        %1584 = vst [vmem:[%s236 + $0xa0] sm:$0xff] %v1512
        %1585 = vst [vmem:[%s236 + $0xa8] sm:$0xff] %v1513
        %1586 = vst [vmem:[%s236 + $0xb0] sm:$0xff] %v1514
        %1587 = vst [vmem:[%s236 + $0xb8] sm:$0xff] %v1515
        %1588 = vst [vmem:[%s236 + $0xc0] sm:$0xff] %v1516
        %1589 = vst [vmem:[%s236 + $0xc8] sm:$0xff] %v1517
        %1590 = vst [vmem:[%s236 + $0xd0] sm:$0xff] %v1518
        %1591 = vst [vmem:[%s236 + $0xd8] sm:$0xff] %v1519
        %1592 = vst [vmem:[%s236 + $0xe0] sm:$0xff] %v1520
        %1593 = vst [vmem:[%s236 + $0xe8] sm:$0xff] %v1521
        %1594 = vst [vmem:[%s236 + $0xf0] sm:$0xff] %v1522
        %1595 = vst [vmem:[%s236 + $0xf8] sm:$0xff] %v1523
        %1596 = vst [vmem:[%s236 + $0x100] sm:$0xff] %v1524
        %1597 = vst [vmem:[%s236 + $0x108] sm:$0xff] %v1525
        %1598 = vst [vmem:[%s236 + $0x110] sm:$0xff] %v1526
        %1599 = vst [vmem:[%s236 + $0x118] sm:$0xff] %v1527
        %1600 = vst [vmem:[%s236 + $0x120] sm:$0xff] %v1528
        %1601 = vst [vmem:[%s236 + $0x128] sm:$0xff] %v1529
        %1602 = vst [vmem:[%s236 + $0x130] sm:$0xff] %v1530
        %1603 = vst [vmem:[%s236 + $0x138] sm:$0xff] %v1531
        %1604 = vst [vmem:[%s236 + $0x140] sm:$0xff] %v1532
        %1605 = vst [vmem:[%s236 + $0x148] sm:$0xff] %v1533
        %1606 = vst [vmem:[%s236 + $0x150] sm:$0xff] %v1534
        %1607 = vst [vmem:[%s236 + $0x158] sm:$0xff] %v1535
        %1608 = vst [vmem:[%s236 + $0x160] sm:$0xff] %v1536
        %1609 = vst [vmem:[%s236 + $0x168] sm:$0xff] %v1537
        %1610 = vst [vmem:[%s236 + $0x170] sm:$0xff] %v1538
        %1611 = vst [vmem:[%s236 + $0x178] sm:$0xff] %v1539
        %1612 = vst [vmem:[%s236 + $0x180] sm:$0xff] %v1540
        %1613 = vst [vmem:[%s236 + $0x188] sm:$0xff] %v1541
        %1614 = vst [vmem:[%s236 + $0x190] sm:$0xff] %v1542
        %1615 = vst [vmem:[%s236 + $0x198] sm:$0xff] %v1543
        %1616 = vst [vmem:[%s236 + $0x1a0] sm:$0xff] %v1544
        %1617 = vst [vmem:[%s236 + $0x1a8] sm:$0xff] %v1545
        %1618 = vst [vmem:[%s236 + $0x1b0] sm:$0xff] %v1546
        %1619 = vst [vmem:[%s236 + $0x1b8] sm:$0xff] %v1547
        %1620 = vst [vmem:[%s236 + $0x1c0] sm:$0xff] %v1548
        %1621 = vst [vmem:[%s236 + $0x1c8] sm:$0xff] %v1549
        %1622 = vst [vmem:[%s236 + $0x1d0] sm:$0xff] %v1550
        %1623 = vst [vmem:[%s236 + $0x1d8] sm:$0xff] %v1551
        %1624 = vst [vmem:[%s236 + $0x1e0] sm:$0xff] %v1552
        %1625 = vst [vmem:[%s236 + $0x1e8] sm:$0xff] %v1553
        %1626 = vst [vmem:[%s236 + $0x1f0] sm:$0xff] %v1554
        %1627 = vst [vmem:[%s236 + $0x1f8] sm:$0xff] %v1555
        %1628 = vst [vmem:[%s236 + $0x200] sm:$0xff] %v1556
        %1629 = vst [vmem:[%s236 + $0x208] sm:$0xff] %v1557
        %1630 = vst [vmem:[%s236 + $0x210] sm:$0xff] %v1558
        %1631 = vst [vmem:[%s236 + $0x218] sm:$0xff] %v1559
        %1632 = vst [vmem:[%s236 + $0x220] sm:$0xff] %v1560
        %1633 = vst [vmem:[%s236 + $0x228] sm:$0xff] %v1561
        %1634 = vst [vmem:[%s236 + $0x230] sm:$0xff] %v1562
        %1635 = vst [vmem:[%s236 + $0x238] sm:$0xff] %v1563
      $region48: #{lp_discriminator_forward.5} parent=35 // pred_fallthru
        _
      %s1636 = smul.u32 %s20, %s19
      %s1637 = smul.u32 72, %s1636
      %p1638 = scmp.lt.s32.totalorder %s1637, 143
      %s1639 = scalar_select %p1638, %s1637, 143
      %s1640 = smul.addr %s1639, 8
      %s1641 = scalar_lea.vmem %s4, %s1640
      // Predicated region
      $region49: #{lp_discriminator_forward.5} parent=35 // pred_check
        %p1642 = pneg %p142
      $region50: #{lp_discriminator_forward.5} parent=35 // pred_check_branch
        %1644 = sbr.rel (%p1642) target = $region52
      $region51: #{lp_discriminator_forward.5} parent=35 // pred_region
        %s1645 = smul.u32 %s20, %s19
        %s1646 = smul.u32 72, %s1645
      $region52: #{lp_discriminator_forward.5} parent=35 // pred_fallthru
        _
    $region36: #{lp_discriminator_forward.5} parent=5 // pred_fallthru
      _
    %p1647 = scmp.le.s32.totalorder 2, %s10
    // Predicated region
    $region53: #{lp_discriminator_forward.5} parent=5 // pred_check
      %p1648 = pneg %p1647
    $region54: #{lp_discriminator_forward.5} parent=5 // pred_check_branch
      %1650 = sbr.rel (%p1648) target = $region56
    $region55: #{lp_discriminator_forward.5} parent=5 // pred_region
      %s1651 = ssub.s32 %s10, 2
      // Predicated region
      $region57: #{lp_discriminator_forward.5} parent=55 // pred_check
        %p1652 = pneg %p148
      $region58: #{lp_discriminator_forward.5} parent=55 // pred_check_branch
        %1654 = sbr.rel (%p1652) target = $region60
      $region59: #{lp_discriminator_forward.5} parent=55 // pred_region
        %s1655 = smul.u32 %s22, %s21
        %s1656 = smul.u32 72, %s1655
        %p1657 = scmp.lt.s32.totalorder %s1656, 143
        %s1658 = scalar_select %p1657, %s1656, 143
        %s1659 = smul.addr %s1658, 8
        %s1660 = scalar_lea.vmem %s4, %s1659
      $region60: #{lp_discriminator_forward.5} parent=55 // pred_fallthru
        _
    $region56: #{lp_discriminator_forward.5} parent=5 // pred_fallthru
      _
  $region6: #{lp_discriminator_forward.5} parent=0 // loop_footer
    %s14 = sadd.s32 1, %s10
  $region7: #{lp_discriminator_forward.5} parent=0 // loop_footer_branch
    %9 = sbr.rel target = $region3
  $region8: #{lp_discriminator_forward.5} parent=0 // loop_exit
    _

// kernel: lp_discriminator_forward.6
$region0: #{lp_discriminator_forward.6}
  #allocation0 [shape = 'u32[]', space=smem, size = 0x4, offset = 0x4, fixed_abs, tag = 'smem constant byte address 0x4 - core index']
  #allocation1 [shape = 'u32[72,128]{1,0:T(1,128)}', space=vmem, size = 0x9000, scoped, tag = 'internal scratch']
  #allocation2 [shape = 'f32[1,288,128]{2,1,0:T(8,128)}', space=vmem, size = 0x24000, scoped, tag = 'scratch operand']
  #allocation3 [shape = 'f32[1,128]{1,0:T(1,128)}', space=vmem, size = 0x200, scoped, tag = 'scratch operand']
  #allocation4 [shape = 'f32[1,128]{1,0:T(1,128)}', space=vmem, size = 0x200, scoped, tag = 'scratch operand']
  %s0 = inlined_call_operand.vmem [shape: bf16[288,256], index: 0, kind: input, shape index: {}]
  %s1 = inlined_call_operand.vmem [shape: bf16[256,128], index: 1, kind: input, shape index: {}]
  %s2 = inlined_call_operand.vmem [shape: f32[1,128], index: 2, kind: input, shape index: {}]
  %s3 = inlined_call_operand.vmem [shape: f32[1,128], index: 3, kind: input, shape index: {}]
  %s4 = inlined_call_operand.vmem [shape: f32[288,128], index: 4, kind: output, shape index: {}]
  %s5 = sld [smem:[#allocation0]]
  $region61: #{lp_discriminator_forward.6} parent=0
    _
  %s7 = ssub.s32 1, %s5
  %s8 = scalar_select 0, %s7, %s5
  loop: start=0, step=1, limit=4
  $region2: #{lp_discriminator_forward.6} parent=0 // loop_pre_header
    _
  $region3: #{lp_discriminator_forward.6} parent=0 // loop_header
    %s10 = sphi 0, %s14
    %p11 = scmp.ge.s32.totalorder %s10, 4
    %s17 = sphi 0, %s29
    %s18 = sphi 0, %s25
    %s19 = sphi 0, %s17
    %s20 = sphi 0, %s18
    %s21 = sphi 0, %s19
    %s22 = sphi 0, %s20
    %s36 = sphi 0, %s38
    %s39 = sphi 0, %s36
    %s40 = sphi 0, %s39
    %s56 = sphi 0, %s40
    %s60 = sphi 0, %s60
    %s62 = sphi 0, %s60
    %s63 = sphi 0, %s62
    %s77 = sphi 0, %s63
    %s81 = sphi 0, %s81
    %s83 = sphi 0, %s81
    %s84 = sphi 0, %s83
    %s98 = sphi 0, %s84
    %s102 = sphi 0, %s102
    %s104 = sphi 0, %s102
    %s105 = sphi 0, %s104
    %s119 = sphi 0, %s105
    %s127 = sphi 0, %s129
    %s130 = sphi 0, %s127
    %s131 = sphi 0, %s130
    %s147 = sphi 0, %s131
  $region4: #{lp_discriminator_forward.6} parent=0 // loop_header_branch
    %13 = sbr.rel (%p11) target = $region8
  $region5: #{lp_discriminator_forward.6} parent=0 // loop_body
    %s15 = ssub.s32 %s10, 1
    %s16 = ssub.s32 %s10, 2
    %s23 = sadd.s32 1, %s18
    %p24 = scmp.ge.s32.totalorder %s23, 1
    %s25 = scalar_select %p24, 0, %s23
    %s26 = sadd.s32 1, %s17
    %s27 = scalar_select %p24, %s26, %s17
    %p28 = scmp.ge.s32.totalorder %s27, 2
    %s29 = scalar_select %p28, 0, %s27
    %s30 = ssub.s32 1, %s17
    %s31 = smul.u32 %s18, %s30
    %s32 = ssub.s32 1, %s29
    %s33 = smul.u32 %s25, %s32
    %s34 = ssub.s32 %s31, %s33
    %p35 = scmp.eq.s32.totalorder %s34, 0
    %s37 = sadd.s32 %s36, 1
    %s38 = scalar_select %p35, %s36, %s37
    %p41 = pneg %p35
    %p42 = scmp.eq.s32.totalorder %s10, 1
    %p43 = por %p41, %p42
    %p44 = scmp.ne.s32.totalorder %s36, %s39
    %p45 = scmp.eq.s32.totalorder %s10, 0
    %p46 = por %p44, %p45
    %p47 = scmp.ne.s32.totalorder %s36, %s39
    %p48 = scmp.eq.s32.totalorder %s15, 1
    %p49 = por %p47, %p48
    %p50 = scmp.ne.s32.totalorder %s39, %s40
    %p51 = scmp.eq.s32.totalorder %s15, 0
    %p52 = por %p50, %p51
    %p53 = scmp.ne.s32.totalorder %s39, %s40
    %p54 = scmp.eq.s32.totalorder %s16, 1
    %p55 = por %p53, %p54
    %p57 = scmp.ne.s32.totalorder %s40, %s56
    %p58 = scmp.eq.s32.totalorder %s16, 0
    %p59 = por %p57, %p58
    %s61 = sadd.s32 %s60, 1
    %p64 = scmp.eq.s32.totalorder %s10, 1
    %p65 = scmp.ne.s32.totalorder %s60, %s62
    %p66 = scmp.eq.s32.totalorder %s10, 0
    %p67 = por %p65, %p66
    %p68 = scmp.ne.s32.totalorder %s60, %s62
    %p69 = scmp.eq.s32.totalorder %s15, 1
    %p70 = por %p68, %p69
    %p71 = scmp.ne.s32.totalorder %s62, %s63
    %p72 = scmp.eq.s32.totalorder %s15, 0
    %p73 = por %p71, %p72
    %p74 = scmp.ne.s32.totalorder %s62, %s63
    %p75 = scmp.eq.s32.totalorder %s16, 1
    %p76 = por %p74, %p75
    %p78 = scmp.ne.s32.totalorder %s63, %s77
    %p79 = scmp.eq.s32.totalorder %s16, 0
    %p80 = por %p78, %p79
    %s82 = sadd.s32 %s81, 1
    %p85 = scmp.eq.s32.totalorder %s10, 1
    %p86 = scmp.ne.s32.totalorder %s81, %s83
    %p87 = scmp.eq.s32.totalorder %s10, 0
    %p88 = por %p86, %p87
    %p89 = scmp.ne.s32.totalorder %s81, %s83
    %p90 = scmp.eq.s32.totalorder %s15, 1
    %p91 = por %p89, %p90
    %p92 = scmp.ne.s32.totalorder %s83, %s84
    %p93 = scmp.eq.s32.totalorder %s15, 0
    %p94 = por %p92, %p93
    %p95 = scmp.ne.s32.totalorder %s83, %s84
    %p96 = scmp.eq.s32.totalorder %s16, 1
    %p97 = por %p95, %p96
    %p99 = scmp.ne.s32.totalorder %s84, %s98
    %p100 = scmp.eq.s32.totalorder %s16, 0
    %p101 = por %p99, %p100
    %s103 = sadd.s32 %s102, 1
    %p106 = scmp.eq.s32.totalorder %s10, 1
    %p107 = scmp.ne.s32.totalorder %s102, %s104
    %p108 = scmp.eq.s32.totalorder %s10, 0
    %p109 = por %p107, %p108
    %p110 = scmp.ne.s32.totalorder %s102, %s104
    %p111 = scmp.eq.s32.totalorder %s15, 1
    %p112 = por %p110, %p111
    %p113 = scmp.ne.s32.totalorder %s104, %s105
    %p114 = scmp.eq.s32.totalorder %s15, 0
    %p115 = por %p113, %p114
    %p116 = scmp.ne.s32.totalorder %s104, %s105
    %p117 = scmp.eq.s32.totalorder %s16, 1
    %p118 = por %p116, %p117
    %p120 = scmp.ne.s32.totalorder %s105, %s119
    %p121 = scmp.eq.s32.totalorder %s16, 0
    %p122 = por %p120, %p121
    %s123 = smul.u32 %s18, %s17
    %s124 = smul.u32 %s25, %s29
    %s125 = ssub.s32 %s123, %s124
    %p126 = scmp.eq.s32.totalorder %s125, 0
    %s128 = sadd.s32 %s127, 1
    %s129 = scalar_select %p126, %s127, %s128
    %p132 = pneg %p126
    %p133 = scmp.eq.s32.totalorder %s10, 1
    %p134 = por %p132, %p133
    %p135 = scmp.ne.s32.totalorder %s127, %s130
    %p136 = scmp.eq.s32.totalorder %s10, 0
    %p137 = por %p135, %p136
    %p138 = scmp.ne.s32.totalorder %s127, %s130
    %p139 = scmp.eq.s32.totalorder %s15, 1
    %p140 = por %p138, %p139
    %p141 = scmp.ne.s32.totalorder %s130, %s131
    %p142 = scmp.eq.s32.totalorder %s15, 0
    %p143 = por %p141, %p142
    %p144 = scmp.ne.s32.totalorder %s130, %s131
    %p145 = scmp.eq.s32.totalorder %s16, 1
    %p146 = por %p144, %p145
    %p148 = scmp.ne.s32.totalorder %s131, %s147
    %p149 = scmp.eq.s32.totalorder %s16, 0
    %p150 = por %p148, %p149
    %p151 = scmp.le.s32.totalorder 1, %s10
    %p152 = scmp.lt.s32.totalorder %s10, 3
    %p153 = pnand %p151, %p152
    %p154 = pneg %p153
    // Predicated region
    $region9: #{lp_discriminator_forward.6} parent=5 // pred_check
      _
    $region10: #{lp_discriminator_forward.6} parent=5 // pred_check_branch
      %156 = sbr.rel (%p153) target = $region12
    $region11: #{lp_discriminator_forward.6} parent=5 // pred_region
      %s157 = ssub.s32 %s10, 1
      // Predicated region
      $region13: #{lp_discriminator_forward.6} parent=11 // pred_check
        %p158 = pneg %p73
      $region14: #{lp_discriminator_forward.6} parent=11 // pred_check_branch
        %160 = sbr.rel (%p158) target = $region16
      $region15: #{lp_discriminator_forward.6} parent=11 // pred_region
        _
      $region16: #{lp_discriminator_forward.6} parent=11 // pred_fallthru
        _
      // Predicated region
      $region17: #{lp_discriminator_forward.6} parent=11 // pred_check
        %p161 = pneg %p94
      $region18: #{lp_discriminator_forward.6} parent=11 // pred_check_branch
        %163 = sbr.rel (%p161) target = $region20
      $region19: #{lp_discriminator_forward.6} parent=11 // pred_region
        _
      $region20: #{lp_discriminator_forward.6} parent=11 // pred_fallthru
        _
      // Predicated region
      $region21: #{lp_discriminator_forward.6} parent=11 // pred_check
        %p164 = pneg %p115
      $region22: #{lp_discriminator_forward.6} parent=11 // pred_check_branch
        %166 = sbr.rel (%p164) target = $region24
      $region23: #{lp_discriminator_forward.6} parent=11 // pred_region
        _
      $region24: #{lp_discriminator_forward.6} parent=11 // pred_fallthru
        _
    $region12: #{lp_discriminator_forward.6} parent=5 // pred_fallthru
      _
    %p167 = scmp.lt.s32.totalorder %s10, 2
    // Predicated region
    $region25: #{lp_discriminator_forward.6} parent=5 // pred_check
      %p168 = pneg %p167
    $region26: #{lp_discriminator_forward.6} parent=5 // pred_check_branch
      %170 = sbr.rel (%p168) target = $region28
    $region27: #{lp_discriminator_forward.6} parent=5 // pred_region
      // Predicated region
      $region29: #{lp_discriminator_forward.6} parent=27 // pred_check
        %p171 = pneg %p46
      $region30: #{lp_discriminator_forward.6} parent=27 // pred_check_branch
        %173 = sbr.rel (%p171) target = $region32
      $region31: #{lp_discriminator_forward.6} parent=27 // pred_region
        %s174 = ssub.s32 1, %s17
        %s175 = smul.u32 %s18, %s174
        %s176 = smul.u32 36, %s175
        %p177 = scmp.lt.s32.totalorder %s176, 35
        %s178 = scalar_select %p177, %s176, 35
        %s179 = smul.addr %s178, 2
        %s180 = smul.addr %s179, 4
        %s181 = scalar_lea.vmem %s0, %s180
        %s182 = ssub.s32 1, %s17
        %s183 = smul.u32 %s18, %s182
        %s184 = smul.u32 36, %s183
      $region32: #{lp_discriminator_forward.6} parent=27 // pred_fallthru
        _
    $region28: #{lp_discriminator_forward.6} parent=5 // pred_fallthru
      _
    %p185 = scmp.le.s32.totalorder 1, %s10
    %p186 = scmp.lt.s32.totalorder %s10, 3
    %p187 = pnand %p185, %p186
    %p188 = pneg %p187
    // Predicated region
    $region33: #{lp_discriminator_forward.6} parent=5 // pred_check
      _
    $region34: #{lp_discriminator_forward.6} parent=5 // pred_check_branch
      %190 = sbr.rel (%p187) target = $region36
    $region35: #{lp_discriminator_forward.6} parent=5 // pred_region
      %s191 = ssub.s32 %s10, 1
      %s192 = ssub.s32 1, %s19
      %s193 = smul.u32 %s20, %s192
      %s194 = smul.u32 36, %s193
      %p195 = scmp.lt.s32.totalorder %s194, 35
      %s196 = scalar_select %p195, %s194, 35
      %s197 = smul.addr %s196, 2
      %s198 = smul.addr %s197, 4
      %s199 = scalar_lea.vmem %s0, %s198
      %p200 = pneg %p52
      %p201 = pneg %p49
      %p202 = pneg %p73
      %p203 = pneg %p70
      %p204 = pneg %p94
      %p205 = pneg %p91
      %p206 = pneg %p115
      %p207 = pneg %p112
      %p208 = pneg %p143
      %p209 = pneg %p140
      %s210 = smul.u32 %s20, %s19
      %s211 = smul.u32 36, %s210
      %p212 = scmp.lt.s32.totalorder %s211, 35
      %s213 = scalar_select %p212, %s211, 35
      %s214 = smul.addr %s213, 8
      %s215 = scalar_lea.vmem %s4, %s214
      %s216 = ssub.s32 1, %s19
      %s217 = smul.u32 %s20, %s216
      %s218 = smul.u32 36, %s217
      %p219 = scmp.lt.s32.totalorder %s218, 35
      %s220 = scalar_select %p219, %s218, 35
      %s221 = smul.addr %s220, 2
      %s222 = smul.addr %s221, 4
      %s223 = scalar_lea.vmem %s0, %s222
      %s224 = ssub.s32 1, %s19
      %s225 = smul.u32 %s20, %s224
      %s226 = smul.u32 36, %s225
      %s227 = smul.u32 %s20, %s19
      %s228 = smul.u32 36, %s227
      %p229 = scmp.lt.s32.totalorder %s228, 35
      %s230 = scalar_select %p229, %s228, 35
      %s231 = smul.addr %s230, 8
      %s232 = scalar_lea.vmem %s4, %s231
      %s233 = smul.u32 %s20, %s19
      %s234 = smul.u32 36, %s233
      %p235 = scmp.eq.s32.totalorder %s19, 0
      %p236 = scmp.eq.s32.totalorder %s20, 0
      %p237 = pnand %p235, %p236
      %p238 = pneg %p237
      // Predicated region
      $region37: #{lp_discriminator_forward.6} parent=35 // pred_check
        _
      $region38: #{lp_discriminator_forward.6} parent=35 // pred_check_branch
        %240 = sbr.rel (%p237) target = $region40
      $region39: #{lp_discriminator_forward.6} parent=35 // pred_region
        %241 = vst [vmem:[#allocation3] sm:$0x1] 0.0
        %242 = vst [vmem:[#allocation4] sm:$0x1] 0.0
      $region40: #{lp_discriminator_forward.6} parent=35 // pred_fallthru
        _
      // Predicated region
      $region41: #{lp_discriminator_forward.6} parent=35 // pred_check
        %p243 = pneg %p235
      $region42: #{lp_discriminator_forward.6} parent=35 // pred_check_branch
        %245 = sbr.rel (%p243) target = $region44
      $region43: #{lp_discriminator_forward.6} parent=35 // pred_region
        %v246 = vld [vmem:[%s223] sm:$0xff]
        %v247 = vld [vmem:[%s223 + $0x8] sm:$0xff]
        %v248 = vld [vmem:[%s223 + $0x10] sm:$0xff]
        %v249 = vld [vmem:[%s223 + $0x18] sm:$0xff]
        %v250 = vld [vmem:[%s223 + $0x20] sm:$0xff]
        %v251 = vld [vmem:[%s223 + $0x28] sm:$0xff]
        %v252 = vld [vmem:[%s223 + $0x30] sm:$0xff]
        %v253 = vld [vmem:[%s223 + $0x38] sm:$0xff]
        %v254 = vld [vmem:[%s223 + $0x40] sm:$0xff]
        %v255 = vld [vmem:[%s223 + $0x48] sm:$0xff]
        %v256 = vld [vmem:[%s223 + $0x50] sm:$0xff]
        %v257 = vld [vmem:[%s223 + $0x58] sm:$0xff]
        %v258 = vld [vmem:[%s223 + $0x60] sm:$0xff]
        %v259 = vld [vmem:[%s223 + $0x68] sm:$0xff]
        %v260 = vld [vmem:[%s223 + $0x70] sm:$0xff]
        %v261 = vld [vmem:[%s223 + $0x78] sm:$0xff]
        %v262 = vld [vmem:[%s223 + $0x80] sm:$0xff]
        %v263 = vld [vmem:[%s223 + $0x88] sm:$0xff]
        %v264 = vld [vmem:[%s223 + $0x90] sm:$0xff]
        %v265 = vld [vmem:[%s223 + $0x98] sm:$0xff]
        %v266 = vld [vmem:[%s223 + $0xa0] sm:$0xff]
        %v267 = vld [vmem:[%s223 + $0xa8] sm:$0xff]
        %v268 = vld [vmem:[%s223 + $0xb0] sm:$0xff]
        %v269 = vld [vmem:[%s223 + $0xb8] sm:$0xff]
        %v270 = vld [vmem:[%s223 + $0xc0] sm:$0xff]
        %v271 = vld [vmem:[%s223 + $0xc8] sm:$0xff]
        %v272 = vld [vmem:[%s223 + $0xd0] sm:$0xff]
        %v273 = vld [vmem:[%s223 + $0xd8] sm:$0xff]
        %v274 = vld [vmem:[%s223 + $0xe0] sm:$0xff]
        %v275 = vld [vmem:[%s223 + $0xe8] sm:$0xff]
        %v276 = vld [vmem:[%s223 + $0xf0] sm:$0xff]
        %v277 = vld [vmem:[%s223 + $0xf8] sm:$0xff]
        %v278 = vld [vmem:[%s223 + $0x100] sm:$0xff]
        %v279 = vld [vmem:[%s223 + $0x108] sm:$0xff]
        %v280 = vld [vmem:[%s223 + $0x110] sm:$0xff]
        %v281 = vld [vmem:[%s223 + $0x118] sm:$0xff]
        %v282 = vld [vmem:[%s1] sm:$0xf]
        %v283 = vld [vmem:[%s1 + $0x4] sm:$0xf]
        %v284 = vld [vmem:[%s1 + $0x8] sm:$0xf]
        %v285 = vld [vmem:[%s1 + $0xc] sm:$0xf]
        %v286 = vld [vmem:[%s1 + $0x10] sm:$0xf]
        %v287 = vld [vmem:[%s1 + $0x14] sm:$0xf]
        %v288 = vld [vmem:[%s1 + $0x18] sm:$0xf]
        %v289 = vld [vmem:[%s1 + $0x1c] sm:$0xf]
        %v290 = vld [vmem:[%s1 + $0x20] sm:$0xf]
        %v291 = vld [vmem:[%s1 + $0x24] sm:$0xf]
        %v292 = vld [vmem:[%s1 + $0x28] sm:$0xf]
        %v293 = vld [vmem:[%s1 + $0x2c] sm:$0xf]
        %v294 = vld [vmem:[%s1 + $0x30] sm:$0xf]
        %v295 = vld [vmem:[%s1 + $0x34] sm:$0xf]
        %v296 = vld [vmem:[%s1 + $0x38] sm:$0xf]
        %v297 = vld [vmem:[%s1 + $0x3c] sm:$0xf]
        %v298 = vld [vmem:[%s1 + $0x40] sm:$0xf]
        %v299 = vld [vmem:[%s1 + $0x44] sm:$0xf]
        %v300 = vld [vmem:[%s1 + $0x48] sm:$0xf]
        %v301 = vld [vmem:[%s1 + $0x4c] sm:$0xf]
        %v302 = vld [vmem:[%s1 + $0x50] sm:$0xf]
        %v303 = vld [vmem:[%s1 + $0x54] sm:$0xf]
        %v304 = vld [vmem:[%s1 + $0x58] sm:$0xf]
        %v305 = vld [vmem:[%s1 + $0x5c] sm:$0xf]
        %v306 = vld [vmem:[%s1 + $0x60] sm:$0xf]
        %v307 = vld [vmem:[%s1 + $0x64] sm:$0xf]
        %v308 = vld [vmem:[%s1 + $0x68] sm:$0xf]
        %v309 = vld [vmem:[%s1 + $0x6c] sm:$0xf]
        %v310 = vld [vmem:[%s1 + $0x70] sm:$0xf]
        %v311 = vld [vmem:[%s1 + $0x74] sm:$0xf]
        %v312 = vld [vmem:[%s1 + $0x78] sm:$0xf]
        %v313 = vld [vmem:[%s1 + $0x7c] sm:$0xf]
        %v350 = vunpack.c.l.b16 %v246
        %v351 = vunpack.c.h.b16 %v246
        %v352 = vunpack.c.l.b16 %v247
        %v353 = vunpack.c.h.b16 %v247
        %v354 = vunpack.c.l.b16 %v248
        %v355 = vunpack.c.h.b16 %v248
        %v356 = vunpack.c.l.b16 %v249
        %v357 = vunpack.c.h.b16 %v249
        %v358 = vunpack.c.l.b16 %v250
        %v359 = vunpack.c.h.b16 %v250
        %v360 = vunpack.c.l.b16 %v251
        %v361 = vunpack.c.h.b16 %v251
        %v362 = vunpack.c.l.b16 %v252
        %v363 = vunpack.c.h.b16 %v252
        %v364 = vunpack.c.l.b16 %v253
        %v365 = vunpack.c.h.b16 %v253
        %v366 = vunpack.c.l.b16 %v254
        %v367 = vunpack.c.h.b16 %v254
        %v368 = vunpack.c.l.b16 %v255
        %v369 = vunpack.c.h.b16 %v255
        %v370 = vunpack.c.l.b16 %v256
        %v371 = vunpack.c.h.b16 %v256
        %v372 = vunpack.c.l.b16 %v257
        %v373 = vunpack.c.h.b16 %v257
        %v374 = vunpack.c.l.b16 %v258
        %v375 = vunpack.c.h.b16 %v258
        %v376 = vunpack.c.l.b16 %v259
        %v377 = vunpack.c.h.b16 %v259
        %v378 = vunpack.c.l.b16 %v260
        %v379 = vunpack.c.h.b16 %v260
        %v380 = vunpack.c.l.b16 %v261
        %v381 = vunpack.c.h.b16 %v261
        %v382 = vunpack.c.l.b16 %v262
        %v383 = vunpack.c.h.b16 %v262
        %v384 = vunpack.c.l.b16 %v263
        %v385 = vunpack.c.h.b16 %v263
        %v386 = vunpack.c.l.b16 %v264
        %v387 = vunpack.c.h.b16 %v264
        %v388 = vunpack.c.l.b16 %v265
        %v389 = vunpack.c.h.b16 %v265
        %v390 = vunpack.c.l.b16 %v266
        %v391 = vunpack.c.h.b16 %v266
        %v392 = vunpack.c.l.b16 %v267
        %v393 = vunpack.c.h.b16 %v267
        %v394 = vunpack.c.l.b16 %v268
        %v395 = vunpack.c.h.b16 %v268
        %v396 = vunpack.c.l.b16 %v269
        %v397 = vunpack.c.h.b16 %v269
        %v398 = vunpack.c.l.b16 %v270
        %v399 = vunpack.c.h.b16 %v270
        %v400 = vunpack.c.l.b16 %v271
        %v401 = vunpack.c.h.b16 %v271
        %v402 = vunpack.c.l.b16 %v272
        %v403 = vunpack.c.h.b16 %v272
        %v404 = vunpack.c.l.b16 %v273
        %v405 = vunpack.c.h.b16 %v273
        %v406 = vunpack.c.l.b16 %v274
        %v407 = vunpack.c.h.b16 %v274
        %v408 = vunpack.c.l.b16 %v275
        %v409 = vunpack.c.h.b16 %v275
        %v410 = vunpack.c.l.b16 %v276
        %v411 = vunpack.c.h.b16 %v276
        %v412 = vunpack.c.l.b16 %v277
        %v413 = vunpack.c.h.b16 %v277
        %v414 = vunpack.c.l.b16 %v278
        %v415 = vunpack.c.h.b16 %v278
        %v416 = vunpack.c.l.b16 %v279
        %v417 = vunpack.c.h.b16 %v279
        %v418 = vunpack.c.l.b16 %v280
        %v419 = vunpack.c.h.b16 %v280
        %v420 = vunpack.c.l.b16 %v281
        %v421 = vunpack.c.h.b16 %v281
        %v422 = vpack.c.b16 %v352, %v350
        %v423 = vpack.c.b16 %v353, %v351
        %v424 = vpack.c.b16 %v356, %v354
        %v425 = vpack.c.b16 %v357, %v355
        %v426 = vpack.c.b16 %v360, %v358
        %v427 = vpack.c.b16 %v361, %v359
        %v428 = vpack.c.b16 %v364, %v362
        %v429 = vpack.c.b16 %v365, %v363
        %v430 = vpack.c.b16 %v368, %v366
        %v431 = vpack.c.b16 %v369, %v367
        %v432 = vpack.c.b16 %v372, %v370
        %v433 = vpack.c.b16 %v373, %v371
        %v434 = vpack.c.b16 %v376, %v374
        %v435 = vpack.c.b16 %v377, %v375
        %v436 = vpack.c.b16 %v380, %v378
        %v437 = vpack.c.b16 %v381, %v379
        %v438 = vpack.c.b16 %v384, %v382
        %v439 = vpack.c.b16 %v385, %v383
        %v440 = vpack.c.b16 %v388, %v386
        %v441 = vpack.c.b16 %v389, %v387
        %v442 = vpack.c.b16 %v392, %v390
        %v443 = vpack.c.b16 %v393, %v391
        %v444 = vpack.c.b16 %v396, %v394
        %v445 = vpack.c.b16 %v397, %v395
        %v446 = vpack.c.b16 %v400, %v398
        %v447 = vpack.c.b16 %v401, %v399
        %v448 = vpack.c.b16 %v404, %v402
        %v449 = vpack.c.b16 %v405, %v403
        %v450 = vpack.c.b16 %v408, %v406
        %v451 = vpack.c.b16 %v409, %v407
        %v452 = vpack.c.b16 %v412, %v410
        %v453 = vpack.c.b16 %v413, %v411
        %v454 = vpack.c.b16 %v416, %v414
        %v455 = vpack.c.b16 %v417, %v415
        %v456 = vpack.c.b16 %v420, %v418
        %v457 = vpack.c.b16 %v421, %v419
        %v526 = vunpack.c.l.b16 %v282
        %v527 = vunpack.c.l.b16 %v283
        %v528 = vunpack.c.l.b16 %v284
        %v529 = vunpack.c.l.b16 %v285
        %v530 = vunpack.c.l.b16 %v286
        %v531 = vunpack.c.l.b16 %v287
        %v532 = vunpack.c.l.b16 %v288
        %v533 = vunpack.c.l.b16 %v289
        %v534 = vunpack.c.l.b16 %v290
        %v535 = vunpack.c.l.b16 %v291
        %v536 = vunpack.c.l.b16 %v292
        %v537 = vunpack.c.l.b16 %v293
        %v538 = vunpack.c.l.b16 %v294
        %v539 = vunpack.c.l.b16 %v295
        %v540 = vunpack.c.l.b16 %v296
        %v541 = vunpack.c.l.b16 %v297
        %v542 = vunpack.c.l.b16 %v298
        %v543 = vunpack.c.l.b16 %v299
        %v544 = vunpack.c.l.b16 %v300
        %v545 = vunpack.c.l.b16 %v301
        %v546 = vunpack.c.l.b16 %v302
        %v547 = vunpack.c.l.b16 %v303
        %v548 = vunpack.c.l.b16 %v304
        %v549 = vunpack.c.l.b16 %v305
        %v550 = vunpack.c.l.b16 %v306
        %v551 = vunpack.c.l.b16 %v307
        %v552 = vunpack.c.l.b16 %v308
        %v553 = vunpack.c.l.b16 %v309
        %v554 = vunpack.c.l.b16 %v310
        %v555 = vunpack.c.l.b16 %v311
        %v556 = vunpack.c.l.b16 %v312
        %v557 = vunpack.c.l.b16 %v313
        %v558 = vpack.c.b16 %v527, %v526
        %v559 = vpack.c.b16 %v529, %v528
        %v560 = vpack.c.b16 %v531, %v530
        %v561 = vpack.c.b16 %v533, %v532
        %v562 = vpack.c.b16 %v535, %v534
        %v563 = vpack.c.b16 %v537, %v536
        %v564 = vpack.c.b16 %v539, %v538
        %v565 = vpack.c.b16 %v541, %v540
        %v566 = vpack.c.b16 %v543, %v542
        %v567 = vpack.c.b16 %v545, %v544
        %v568 = vpack.c.b16 %v547, %v546
        %v569 = vpack.c.b16 %v549, %v548
        %v570 = vpack.c.b16 %v551, %v550
        %v571 = vpack.c.b16 %v553, %v552
        %v572 = vpack.c.b16 %v555, %v554
        %v573 = vpack.c.b16 %v557, %v556
        %590 = vmatpush.bf16.msra.mxu0 %v565
        %591 = vmatpush.bf16.msra.mxu0 %v564
        %592 = vmatpush.bf16.msra.mxu0 %v563
        %593 = vmatpush.bf16.msra.mxu0 %v562
        %594 = vmatpush.bf16.msra.mxu0 %v561
        %595 = vmatpush.bf16.msra.mxu0 %v560
        %596 = vmatpush.bf16.msra.mxu0 %v559
        %597 = vmatpush.bf16.msra.mxu0 %v558
        %598 = vmatmul.bf16.gmra.mxu0 %v422
        %v599 = vpop.f32.mrf.mxu0
        %v600 = vadd.f32 0.0, %v599
        %v601 = vpop.f32.mrf.mxu0
        %v602 = vadd.f32 0.0, %v601
        %603 = vmatmul.bf16.gmra.mxu0 %v424
        %v604 = vpop.f32.mrf.mxu0
        %v605 = vadd.f32 0.0, %v604
        %v606 = vpop.f32.mrf.mxu0
        %v607 = vadd.f32 0.0, %v606
        %608 = vmatmul.bf16.gmra.mxu0 %v426
        %v609 = vpop.f32.mrf.mxu0
        %v610 = vadd.f32 0.0, %v609
        %v611 = vpop.f32.mrf.mxu0
        %v612 = vadd.f32 0.0, %v611
        %613 = vmatmul.bf16.gmra.mxu0 %v428
        %v614 = vpop.f32.mrf.mxu0
        %v615 = vadd.f32 0.0, %v614
        %v616 = vpop.f32.mrf.mxu0
        %v617 = vadd.f32 0.0, %v616
        %618 = vmatmul.bf16.gmra.mxu0 %v430
        %v619 = vpop.f32.mrf.mxu0
        %v620 = vadd.f32 0.0, %v619
        %v621 = vpop.f32.mrf.mxu0
        %v622 = vadd.f32 0.0, %v621
        %623 = vmatmul.bf16.gmra.mxu0 %v432
        %v624 = vpop.f32.mrf.mxu0
        %v625 = vadd.f32 0.0, %v624
        %v626 = vpop.f32.mrf.mxu0
        %v627 = vadd.f32 0.0, %v626
        %628 = vmatmul.bf16.gmra.mxu0 %v434
        %v629 = vpop.f32.mrf.mxu0
        %v630 = vadd.f32 0.0, %v629
        %v631 = vpop.f32.mrf.mxu0
        %v632 = vadd.f32 0.0, %v631
        %633 = vmatmul.bf16.gmra.mxu0 %v436
        %v634 = vpop.f32.mrf.mxu0
        %v635 = vadd.f32 0.0, %v634
        %v636 = vpop.f32.mrf.mxu0
        %v637 = vadd.f32 0.0, %v636
        %638 = vmatmul.bf16.gmra.mxu0 %v438
        %v639 = vpop.f32.mrf.mxu0
        %v640 = vadd.f32 0.0, %v639
        %v641 = vpop.f32.mrf.mxu0
        %v642 = vadd.f32 0.0, %v641
        %643 = vmatmul.bf16.gmra.mxu0 %v440
        %v644 = vpop.f32.mrf.mxu0
        %v645 = vadd.f32 0.0, %v644
        %v646 = vpop.f32.mrf.mxu0
        %v647 = vadd.f32 0.0, %v646
        %648 = vmatmul.bf16.gmra.mxu0 %v442
        %v649 = vpop.f32.mrf.mxu0
        %v650 = vadd.f32 0.0, %v649
        %v651 = vpop.f32.mrf.mxu0
        %v652 = vadd.f32 0.0, %v651
        %653 = vmatmul.bf16.gmra.mxu0 %v444
        %v654 = vpop.f32.mrf.mxu0
        %v655 = vadd.f32 0.0, %v654
        %v656 = vpop.f32.mrf.mxu0
        %v657 = vadd.f32 0.0, %v656
        %658 = vmatmul.bf16.gmra.mxu0 %v446
        %v659 = vpop.f32.mrf.mxu0
        %v660 = vadd.f32 0.0, %v659
        %v661 = vpop.f32.mrf.mxu0
        %v662 = vadd.f32 0.0, %v661
        %663 = vmatmul.bf16.gmra.mxu0 %v448
        %v664 = vpop.f32.mrf.mxu0
        %v665 = vadd.f32 0.0, %v664
        %v666 = vpop.f32.mrf.mxu0
        %v667 = vadd.f32 0.0, %v666
        %668 = vmatmul.bf16.gmra.mxu0 %v450
        %v669 = vpop.f32.mrf.mxu0
        %v670 = vadd.f32 0.0, %v669
        %v671 = vpop.f32.mrf.mxu0
        %v672 = vadd.f32 0.0, %v671
        %673 = vmatmul.bf16.gmra.mxu0 %v452
        %v674 = vpop.f32.mrf.mxu0
        %v675 = vadd.f32 0.0, %v674
        %v676 = vpop.f32.mrf.mxu0
        %v677 = vadd.f32 0.0, %v676
        %678 = vmatmul.bf16.gmra.mxu0 %v454
        %v679 = vpop.f32.mrf.mxu0
        %v680 = vadd.f32 0.0, %v679
        %v681 = vpop.f32.mrf.mxu0
        %v682 = vadd.f32 0.0, %v681
        %683 = vmatmul.bf16.gmra.mxu0 %v456
        %v684 = vpop.f32.mrf.mxu0
        %v685 = vadd.f32 0.0, %v684
        %v686 = vpop.f32.mrf.mxu0
        %v687 = vadd.f32 0.0, %v686
        %688 = vdwg.mxu0
        %689 = vmatpush.bf16.msra.mxu0 %v573
        %690 = vmatpush.bf16.msra.mxu0 %v572
        %691 = vmatpush.bf16.msra.mxu0 %v571
        %692 = vmatpush.bf16.msra.mxu0 %v570
        %693 = vmatpush.bf16.msra.mxu0 %v569
        %694 = vmatpush.bf16.msra.mxu0 %v568
        %695 = vmatpush.bf16.msra.mxu0 %v567
        %696 = vmatpush.bf16.msra.mxu0 %v566
        %697 = vmatmul.bf16.gmra.mxu0 %v423
        %v698 = vpop.f32.mrf.mxu0
        %v699 = vadd.f32 %v600, %v698
        %v700 = vpop.f32.mrf.mxu0
        %v701 = vadd.f32 %v602, %v700
        %702 = vmatmul.bf16.gmra.mxu0 %v425
        %v703 = vpop.f32.mrf.mxu0
        %v704 = vadd.f32 %v605, %v703
        %v705 = vpop.f32.mrf.mxu0
        %v706 = vadd.f32 %v607, %v705
        %707 = vmatmul.bf16.gmra.mxu0 %v427
        %v708 = vpop.f32.mrf.mxu0
        %v709 = vadd.f32 %v610, %v708
        %v710 = vpop.f32.mrf.mxu0
        %v711 = vadd.f32 %v612, %v710
        %712 = vmatmul.bf16.gmra.mxu0 %v429
        %v713 = vpop.f32.mrf.mxu0
        %v714 = vadd.f32 %v615, %v713
        %v715 = vpop.f32.mrf.mxu0
        %v716 = vadd.f32 %v617, %v715
        %717 = vmatmul.bf16.gmra.mxu0 %v431
        %v718 = vpop.f32.mrf.mxu0
        %v719 = vadd.f32 %v620, %v718
        %v720 = vpop.f32.mrf.mxu0
        %v721 = vadd.f32 %v622, %v720
        %722 = vmatmul.bf16.gmra.mxu0 %v433
        %v723 = vpop.f32.mrf.mxu0
        %v724 = vadd.f32 %v625, %v723
        %v725 = vpop.f32.mrf.mxu0
        %v726 = vadd.f32 %v627, %v725
        %727 = vmatmul.bf16.gmra.mxu0 %v435
        %v728 = vpop.f32.mrf.mxu0
        %v729 = vadd.f32 %v630, %v728
        %v730 = vpop.f32.mrf.mxu0
        %v731 = vadd.f32 %v632, %v730
        %732 = vmatmul.bf16.gmra.mxu0 %v437
        %v733 = vpop.f32.mrf.mxu0
        %v734 = vadd.f32 %v635, %v733
        %v735 = vpop.f32.mrf.mxu0
        %v736 = vadd.f32 %v637, %v735
        %737 = vmatmul.bf16.gmra.mxu0 %v439
        %v738 = vpop.f32.mrf.mxu0
        %v739 = vadd.f32 %v640, %v738
        %v740 = vpop.f32.mrf.mxu0
        %v741 = vadd.f32 %v642, %v740
        %742 = vmatmul.bf16.gmra.mxu0 %v441
        %v743 = vpop.f32.mrf.mxu0
        %v744 = vadd.f32 %v645, %v743
        %v745 = vpop.f32.mrf.mxu0
        %v746 = vadd.f32 %v647, %v745
        %747 = vmatmul.bf16.gmra.mxu0 %v443
        %v748 = vpop.f32.mrf.mxu0
        %v749 = vadd.f32 %v650, %v748
        %v750 = vpop.f32.mrf.mxu0
        %v751 = vadd.f32 %v652, %v750
        %752 = vmatmul.bf16.gmra.mxu0 %v445
        %v753 = vpop.f32.mrf.mxu0
        %v754 = vadd.f32 %v655, %v753
        %v755 = vpop.f32.mrf.mxu0
        %v756 = vadd.f32 %v657, %v755
        %757 = vmatmul.bf16.gmra.mxu0 %v447
        %v758 = vpop.f32.mrf.mxu0
        %v759 = vadd.f32 %v660, %v758
        %v760 = vpop.f32.mrf.mxu0
        %v761 = vadd.f32 %v662, %v760
        %762 = vmatmul.bf16.gmra.mxu0 %v449
        %v763 = vpop.f32.mrf.mxu0
        %v764 = vadd.f32 %v665, %v763
        %v765 = vpop.f32.mrf.mxu0
        %v766 = vadd.f32 %v667, %v765
        %767 = vmatmul.bf16.gmra.mxu0 %v451
        %v768 = vpop.f32.mrf.mxu0
        %v769 = vadd.f32 %v670, %v768
        %v770 = vpop.f32.mrf.mxu0
        %v771 = vadd.f32 %v672, %v770
        %772 = vmatmul.bf16.gmra.mxu0 %v453
        %v773 = vpop.f32.mrf.mxu0
        %v774 = vadd.f32 %v675, %v773
        %v775 = vpop.f32.mrf.mxu0
        %v776 = vadd.f32 %v677, %v775
        %777 = vmatmul.bf16.gmra.mxu0 %v455
        %v778 = vpop.f32.mrf.mxu0
        %v779 = vadd.f32 %v680, %v778
        %v780 = vpop.f32.mrf.mxu0
        %v781 = vadd.f32 %v682, %v780
        %782 = vmatmul.bf16.gmra.mxu0 %v457
        %v783 = vpop.f32.mrf.mxu0
        %v784 = vadd.f32 %v685, %v783
        %v785 = vpop.f32.mrf.mxu0
        %v786 = vadd.f32 %v687, %v785
        %787 = vdwg.mxu0
        %s788 = smul.u32 %s20, 288
        %s789 = scalar_lea.vmem [#allocation2], %s788
        %790 = vst [vmem:[%s789] sm:$0xff] %v699
        %791 = vst [vmem:[%s789 + $0x8] sm:$0xff] %v701
        %792 = vst [vmem:[%s789 + $0x10] sm:$0xff] %v704
        %793 = vst [vmem:[%s789 + $0x18] sm:$0xff] %v706
        %794 = vst [vmem:[%s789 + $0x20] sm:$0xff] %v709
        %795 = vst [vmem:[%s789 + $0x28] sm:$0xff] %v711
        %796 = vst [vmem:[%s789 + $0x30] sm:$0xff] %v714
        %797 = vst [vmem:[%s789 + $0x38] sm:$0xff] %v716
        %798 = vst [vmem:[%s789 + $0x40] sm:$0xff] %v719
        %799 = vst [vmem:[%s789 + $0x48] sm:$0xff] %v721
        %800 = vst [vmem:[%s789 + $0x50] sm:$0xff] %v724
        %801 = vst [vmem:[%s789 + $0x58] sm:$0xff] %v726
        %802 = vst [vmem:[%s789 + $0x60] sm:$0xff] %v729
        %803 = vst [vmem:[%s789 + $0x68] sm:$0xff] %v731
        %804 = vst [vmem:[%s789 + $0x70] sm:$0xff] %v734
        %805 = vst [vmem:[%s789 + $0x78] sm:$0xff] %v736
        %806 = vst [vmem:[%s789 + $0x80] sm:$0xff] %v739
        %807 = vst [vmem:[%s789 + $0x88] sm:$0xff] %v741
        %808 = vst [vmem:[%s789 + $0x90] sm:$0xff] %v744
        %809 = vst [vmem:[%s789 + $0x98] sm:$0xff] %v746
        %810 = vst [vmem:[%s789 + $0xa0] sm:$0xff] %v749
        %811 = vst [vmem:[%s789 + $0xa8] sm:$0xff] %v751
        %812 = vst [vmem:[%s789 + $0xb0] sm:$0xff] %v754
        %813 = vst [vmem:[%s789 + $0xb8] sm:$0xff] %v756
        %814 = vst [vmem:[%s789 + $0xc0] sm:$0xff] %v759
        %815 = vst [vmem:[%s789 + $0xc8] sm:$0xff] %v761
        %816 = vst [vmem:[%s789 + $0xd0] sm:$0xff] %v764
        %817 = vst [vmem:[%s789 + $0xd8] sm:$0xff] %v766
        %818 = vst [vmem:[%s789 + $0xe0] sm:$0xff] %v769
        %819 = vst [vmem:[%s789 + $0xe8] sm:$0xff] %v771
        %820 = vst [vmem:[%s789 + $0xf0] sm:$0xff] %v774
        %821 = vst [vmem:[%s789 + $0xf8] sm:$0xff] %v776
        %822 = vst [vmem:[%s789 + $0x100] sm:$0xff] %v779
        %823 = vst [vmem:[%s789 + $0x108] sm:$0xff] %v781
        %824 = vst [vmem:[%s789 + $0x110] sm:$0xff] %v784
        %825 = vst [vmem:[%s789 + $0x118] sm:$0xff] %v786
        %v826 = vld [vmem:[#allocation3] sm:$0x1]
        %v827 = vadd.f32 %v699, %v701
        %v828 = vadd.f32 %v827, %v704
        %v829 = vadd.f32 %v828, %v706
        %v830 = vadd.f32 %v829, %v709
        %v831 = vadd.f32 %v830, %v711
        %v832 = vadd.f32 %v831, %v714
        %v833 = vadd.f32 %v832, %v716
        %v834 = vadd.f32 %v833, %v719
        %v835 = vadd.f32 %v834, %v721
        %v836 = vadd.f32 %v835, %v724
        %v837 = vadd.f32 %v836, %v726
        %v838 = vadd.f32 %v837, %v729
        %v839 = vadd.f32 %v838, %v731
        %v840 = vadd.f32 %v839, %v734
        %v841 = vadd.f32 %v840, %v736
        %v842 = vadd.f32 %v841, %v739
        %v843 = vadd.f32 %v842, %v741
        %v844 = vadd.f32 %v843, %v744
        %v845 = vadd.f32 %v844, %v746
        %v846 = vadd.f32 %v845, %v749
        %v847 = vadd.f32 %v846, %v751
        %v848 = vadd.f32 %v847, %v754
        %v849 = vadd.f32 %v848, %v756
        %v850 = vadd.f32 %v849, %v759
        %v851 = vadd.f32 %v850, %v761
        %v852 = vadd.f32 %v851, %v764
        %v853 = vadd.f32 %v852, %v766
        %v854 = vadd.f32 %v853, %v769
        %v855 = vadd.f32 %v854, %v771
        %v856 = vadd.f32 %v855, %v774
        %v857 = vadd.f32 %v856, %v776
        %v858 = vadd.f32 %v857, %v779
        %v859 = vadd.f32 %v858, %v781
        %v860 = vadd.f32 %v859, %v784
        %v861 = vadd.f32 %v860, %v786
        %v862 = vrot.slane %v861, 4
        %v863 = vadd.f32 %v861, %v862
        %v864 = vrot.slane %v863, 2
        %v865 = vadd.f32 %v863, %v864
        %v866 = vrot.slane %v865, 1
        %v867 = vadd.f32 %v865, %v866
        %v868 = vadd.f32 %v826, %v867
        %869 = vst [vmem:[#allocation3] sm:$0x1] %v868
        %v870 = vld [vmem:[#allocation4] sm:$0x1]
        %v871 = vmul.f32 %v699, %v699
        %v872 = vmul.f32 %v701, %v701
        %v873 = vmul.f32 %v704, %v704
        %v874 = vmul.f32 %v706, %v706
        %v875 = vmul.f32 %v709, %v709
        %v876 = vmul.f32 %v711, %v711
        %v877 = vmul.f32 %v714, %v714
        %v878 = vmul.f32 %v716, %v716
        %v879 = vmul.f32 %v719, %v719
        %v880 = vmul.f32 %v721, %v721
        %v881 = vmul.f32 %v724, %v724
        %v882 = vmul.f32 %v726, %v726
        %v883 = vmul.f32 %v729, %v729
        %v884 = vmul.f32 %v731, %v731
        %v885 = vmul.f32 %v734, %v734
        %v886 = vmul.f32 %v736, %v736
        %v887 = vmul.f32 %v739, %v739
        %v888 = vmul.f32 %v741, %v741
        %v889 = vmul.f32 %v744, %v744
        %v890 = vmul.f32 %v746, %v746
        %v891 = vmul.f32 %v749, %v749
        %v892 = vmul.f32 %v751, %v751
        %v893 = vmul.f32 %v754, %v754
        %v894 = vmul.f32 %v756, %v756
        %v895 = vmul.f32 %v759, %v759
        %v896 = vmul.f32 %v761, %v761
        %v897 = vmul.f32 %v764, %v764
        %v898 = vmul.f32 %v766, %v766
        %v899 = vmul.f32 %v769, %v769
        %v900 = vmul.f32 %v771, %v771
        %v901 = vmul.f32 %v774, %v774
        %v902 = vmul.f32 %v776, %v776
        %v903 = vmul.f32 %v779, %v779
        %v904 = vmul.f32 %v781, %v781
        %v905 = vmul.f32 %v784, %v784
        %v906 = vmul.f32 %v786, %v786
        %v907 = vadd.f32 %v871, %v872
        %v908 = vadd.f32 %v907, %v873
        %v909 = vadd.f32 %v908, %v874
        %v910 = vadd.f32 %v909, %v875
        %v911 = vadd.f32 %v910, %v876
        %v912 = vadd.f32 %v911, %v877
        %v913 = vadd.f32 %v912, %v878
        %v914 = vadd.f32 %v913, %v879
        %v915 = vadd.f32 %v914, %v880
        %v916 = vadd.f32 %v915, %v881
        %v917 = vadd.f32 %v916, %v882
        %v918 = vadd.f32 %v917, %v883
        %v919 = vadd.f32 %v918, %v884
        %v920 = vadd.f32 %v919, %v885
        %v921 = vadd.f32 %v920, %v886
        %v922 = vadd.f32 %v921, %v887
        %v923 = vadd.f32 %v922, %v888
        %v924 = vadd.f32 %v923, %v889
        %v925 = vadd.f32 %v924, %v890
        %v926 = vadd.f32 %v925, %v891
        %v927 = vadd.f32 %v926, %v892
        %v928 = vadd.f32 %v927, %v893
        %v929 = vadd.f32 %v928, %v894
        %v930 = vadd.f32 %v929, %v895
        %v931 = vadd.f32 %v930, %v896
        %v932 = vadd.f32 %v931, %v897
        %v933 = vadd.f32 %v932, %v898
        %v934 = vadd.f32 %v933, %v899
        %v935 = vadd.f32 %v934, %v900
        %v936 = vadd.f32 %v935, %v901
        %v937 = vadd.f32 %v936, %v902
        %v938 = vadd.f32 %v937, %v903
        %v939 = vadd.f32 %v938, %v904
        %v940 = vadd.f32 %v939, %v905
        %v941 = vadd.f32 %v940, %v906
        %v942 = vrot.slane %v941, 4
        %v943 = vadd.f32 %v941, %v942
        %v944 = vrot.slane %v943, 2
        %v945 = vadd.f32 %v943, %v944
        %v946 = vrot.slane %v945, 1
        %v947 = vadd.f32 %v945, %v946
        %v948 = vadd.f32 %v870, %v947
        %949 = vst [vmem:[#allocation4] sm:$0x1] %v948
      $region44: #{lp_discriminator_forward.6} parent=35 // pred_fallthru
        _
      %p950 = scmp.eq.s32.totalorder %s19, 1
      // Predicated region
      $region45: #{lp_discriminator_forward.6} parent=35 // pred_check
        %p951 = pneg %p950
      $region46: #{lp_discriminator_forward.6} parent=35 // pred_check_branch
        %953 = sbr.rel (%p951) target = $region48
      $region47: #{lp_discriminator_forward.6} parent=35 // pred_region
        %v954 = vld [vmem:[#allocation3] sm:$0x1]
        %v955 = vmul.f32 %v954, 0.0034722222
        %v956 = vld [vmem:[#allocation4] sm:$0x1]
        %v957 = vmul.f32 %v956, 0.0034722222
        %v958 = vmul.f32 %v955, %v955
        %v959 = vsub.f32 %v957, %v958
        %v960 = vmax.f32 %v959, 0.0
        %v961 = vadd.f32 %v960, 1e-05
        %v962 = vrsqrt.pop %v961
        %v963 = vmul.f32 %v962, %v961
        %v964 = vmul.f32 %v963, %v962
        %v965 = vmul.f32 0.5, %v964
        %v966 = vsub.f32 1.5, %v965
        %v967 = vmul.f32 %v962, %v966
        %vm968 = vweird.f32 %v961
        %vm969 = vweird.f32 %v962
        %vm970 = vmor %vm968, %vm969
        %v971 = vsel %vm970, %v962, %v967
        %v972 = vld [vmem:[%s2] sm:$0x1]
        %v973 = vmul.f32 %v971, %v972
        %v974 = vld [vmem:[%s3] sm:$0x1]
        %v975 = vmul.f32 %v955, %v973
        %v976 = vsub.f32 %v974, %v975
        %s977 = smul.u32 %s20, 288
        %s978 = scalar_lea.vmem [#allocation2], %s977
        %v979 = vld [vmem:[%s978] sm:$0xff]
        %v980 = vld [vmem:[%s978 + $0x8] sm:$0xff]
        %v981 = vld [vmem:[%s978 + $0x10] sm:$0xff]
        %v982 = vld [vmem:[%s978 + $0x18] sm:$0xff]
        %v983 = vld [vmem:[%s978 + $0x20] sm:$0xff]
        %v984 = vld [vmem:[%s978 + $0x28] sm:$0xff]
        %v985 = vld [vmem:[%s978 + $0x30] sm:$0xff]
        %v986 = vld [vmem:[%s978 + $0x38] sm:$0xff]
        %v987 = vld [vmem:[%s978 + $0x40] sm:$0xff]
        %v988 = vld [vmem:[%s978 + $0x48] sm:$0xff]
        %v989 = vld [vmem:[%s978 + $0x50] sm:$0xff]
        %v990 = vld [vmem:[%s978 + $0x58] sm:$0xff]
        %v991 = vld [vmem:[%s978 + $0x60] sm:$0xff]
        %v992 = vld [vmem:[%s978 + $0x68] sm:$0xff]
        %v993 = vld [vmem:[%s978 + $0x70] sm:$0xff]
        %v994 = vld [vmem:[%s978 + $0x78] sm:$0xff]
        %v995 = vld [vmem:[%s978 + $0x80] sm:$0xff]
        %v996 = vld [vmem:[%s978 + $0x88] sm:$0xff]
        %v997 = vld [vmem:[%s978 + $0x90] sm:$0xff]
        %v998 = vld [vmem:[%s978 + $0x98] sm:$0xff]
        %v999 = vld [vmem:[%s978 + $0xa0] sm:$0xff]
        %v1000 = vld [vmem:[%s978 + $0xa8] sm:$0xff]
        %v1001 = vld [vmem:[%s978 + $0xb0] sm:$0xff]
        %v1002 = vld [vmem:[%s978 + $0xb8] sm:$0xff]
        %v1003 = vld [vmem:[%s978 + $0xc0] sm:$0xff]
        %v1004 = vld [vmem:[%s978 + $0xc8] sm:$0xff]
        %v1005 = vld [vmem:[%s978 + $0xd0] sm:$0xff]
        %v1006 = vld [vmem:[%s978 + $0xd8] sm:$0xff]
        %v1007 = vld [vmem:[%s978 + $0xe0] sm:$0xff]
        %v1008 = vld [vmem:[%s978 + $0xe8] sm:$0xff]
        %v1009 = vld [vmem:[%s978 + $0xf0] sm:$0xff]
        %v1010 = vld [vmem:[%s978 + $0xf8] sm:$0xff]
        %v1011 = vld [vmem:[%s978 + $0x100] sm:$0xff]
        %v1012 = vld [vmem:[%s978 + $0x108] sm:$0xff]
        %v1013 = vld [vmem:[%s978 + $0x110] sm:$0xff]
        %v1014 = vld [vmem:[%s978 + $0x118] sm:$0xff]
        %v1016 = vperm.slane %v973, 0
        %v1018 = vmul.f32 %v979, %v1016
        %v1019 = vmul.f32 %v980, %v1016
        %v1020 = vmul.f32 %v981, %v1016
        %v1021 = vmul.f32 %v982, %v1016
        %v1022 = vmul.f32 %v983, %v1016
        %v1023 = vmul.f32 %v984, %v1016
        %v1024 = vmul.f32 %v985, %v1016
        %v1025 = vmul.f32 %v986, %v1016
        %v1026 = vmul.f32 %v987, %v1016
        %v1027 = vmul.f32 %v988, %v1016
        %v1028 = vmul.f32 %v989, %v1016
        %v1029 = vmul.f32 %v990, %v1016
        %v1030 = vmul.f32 %v991, %v1016
        %v1031 = vmul.f32 %v992, %v1016
        %v1032 = vmul.f32 %v993, %v1016
        %v1033 = vmul.f32 %v994, %v1016
        %v1034 = vmul.f32 %v995, %v1016
        %v1035 = vmul.f32 %v996, %v1016
        %v1036 = vmul.f32 %v997, %v1016
        %v1037 = vmul.f32 %v998, %v1016
        %v1038 = vmul.f32 %v999, %v1016
        %v1039 = vmul.f32 %v1000, %v1016
        %v1040 = vmul.f32 %v1001, %v1016
        %v1041 = vmul.f32 %v1002, %v1016
        %v1042 = vmul.f32 %v1003, %v1016
        %v1043 = vmul.f32 %v1004, %v1016
        %v1044 = vmul.f32 %v1005, %v1016
        %v1045 = vmul.f32 %v1006, %v1016
        %v1046 = vmul.f32 %v1007, %v1016
        %v1047 = vmul.f32 %v1008, %v1016
        %v1048 = vmul.f32 %v1009, %v1016
        %v1049 = vmul.f32 %v1010, %v1016
        %v1050 = vmul.f32 %v1011, %v1016
        %v1051 = vmul.f32 %v1012, %v1016
        %v1052 = vmul.f32 %v1013, %v1016
        %v1053 = vmul.f32 %v1014, %v1016
        %v1055 = vperm.slane %v976, 0
        %v1057 = vadd.f32 %v1018, %v1055
        %v1058 = vadd.f32 %v1019, %v1055
        %v1059 = vadd.f32 %v1020, %v1055
        %v1060 = vadd.f32 %v1021, %v1055
        %v1061 = vadd.f32 %v1022, %v1055
        %v1062 = vadd.f32 %v1023, %v1055
        %v1063 = vadd.f32 %v1024, %v1055
        %v1064 = vadd.f32 %v1025, %v1055
        %v1065 = vadd.f32 %v1026, %v1055
        %v1066 = vadd.f32 %v1027, %v1055
        %v1067 = vadd.f32 %v1028, %v1055
        %v1068 = vadd.f32 %v1029, %v1055
        %v1069 = vadd.f32 %v1030, %v1055
        %v1070 = vadd.f32 %v1031, %v1055
        %v1071 = vadd.f32 %v1032, %v1055
        %v1072 = vadd.f32 %v1033, %v1055
        %v1073 = vadd.f32 %v1034, %v1055
        %v1074 = vadd.f32 %v1035, %v1055
        %v1075 = vadd.f32 %v1036, %v1055
        %v1076 = vadd.f32 %v1037, %v1055
        %v1077 = vadd.f32 %v1038, %v1055
        %v1078 = vadd.f32 %v1039, %v1055
        %v1079 = vadd.f32 %v1040, %v1055
        %v1080 = vadd.f32 %v1041, %v1055
        %v1081 = vadd.f32 %v1042, %v1055
        %v1082 = vadd.f32 %v1043, %v1055
        %v1083 = vadd.f32 %v1044, %v1055
        %v1084 = vadd.f32 %v1045, %v1055
        %v1085 = vadd.f32 %v1046, %v1055
        %v1086 = vadd.f32 %v1047, %v1055
        %v1087 = vadd.f32 %v1048, %v1055
        %v1088 = vadd.f32 %v1049, %v1055
        %v1089 = vadd.f32 %v1050, %v1055
        %v1090 = vadd.f32 %v1051, %v1055
        %v1091 = vadd.f32 %v1052, %v1055
        %v1092 = vadd.f32 %v1053, %v1055
        %vm1093 = vcmp.ge.f32.partialorder %v1057, 0.0
        %vm1094 = vcmp.ge.f32.partialorder %v1058, 0.0
        %vm1095 = vcmp.ge.f32.partialorder %v1059, 0.0
        %vm1096 = vcmp.ge.f32.partialorder %v1060, 0.0
        %vm1097 = vcmp.ge.f32.partialorder %v1061, 0.0
        %vm1098 = vcmp.ge.f32.partialorder %v1062, 0.0
        %vm1099 = vcmp.ge.f32.partialorder %v1063, 0.0
        %vm1100 = vcmp.ge.f32.partialorder %v1064, 0.0
        %vm1101 = vcmp.ge.f32.partialorder %v1065, 0.0
        %vm1102 = vcmp.ge.f32.partialorder %v1066, 0.0
        %vm1103 = vcmp.ge.f32.partialorder %v1067, 0.0
        %vm1104 = vcmp.ge.f32.partialorder %v1068, 0.0
        %vm1105 = vcmp.ge.f32.partialorder %v1069, 0.0
        %vm1106 = vcmp.ge.f32.partialorder %v1070, 0.0
        %vm1107 = vcmp.ge.f32.partialorder %v1071, 0.0
        %vm1108 = vcmp.ge.f32.partialorder %v1072, 0.0
        %vm1109 = vcmp.ge.f32.partialorder %v1073, 0.0
        %vm1110 = vcmp.ge.f32.partialorder %v1074, 0.0
        %vm1111 = vcmp.ge.f32.partialorder %v1075, 0.0
        %vm1112 = vcmp.ge.f32.partialorder %v1076, 0.0
        %vm1113 = vcmp.ge.f32.partialorder %v1077, 0.0
        %vm1114 = vcmp.ge.f32.partialorder %v1078, 0.0
        %vm1115 = vcmp.ge.f32.partialorder %v1079, 0.0
        %vm1116 = vcmp.ge.f32.partialorder %v1080, 0.0
        %vm1117 = vcmp.ge.f32.partialorder %v1081, 0.0
        %vm1118 = vcmp.ge.f32.partialorder %v1082, 0.0
        %vm1119 = vcmp.ge.f32.partialorder %v1083, 0.0
        %vm1120 = vcmp.ge.f32.partialorder %v1084, 0.0
        %vm1121 = vcmp.ge.f32.partialorder %v1085, 0.0
        %vm1122 = vcmp.ge.f32.partialorder %v1086, 0.0
        %vm1123 = vcmp.ge.f32.partialorder %v1087, 0.0
        %vm1124 = vcmp.ge.f32.partialorder %v1088, 0.0
        %vm1125 = vcmp.ge.f32.partialorder %v1089, 0.0
        %vm1126 = vcmp.ge.f32.partialorder %v1090, 0.0
        %vm1127 = vcmp.ge.f32.partialorder %v1091, 0.0
        %vm1128 = vcmp.ge.f32.partialorder %v1092, 0.0
        %v1129 = vmul.f32 %v1057, 0.2
        %v1130 = vmul.f32 %v1058, 0.2
        %v1131 = vmul.f32 %v1059, 0.2
        %v1132 = vmul.f32 %v1060, 0.2
        %v1133 = vmul.f32 %v1061, 0.2
        %v1134 = vmul.f32 %v1062, 0.2
        %v1135 = vmul.f32 %v1063, 0.2
        %v1136 = vmul.f32 %v1064, 0.2
        %v1137 = vmul.f32 %v1065, 0.2
        %v1138 = vmul.f32 %v1066, 0.2
        %v1139 = vmul.f32 %v1067, 0.2
        %v1140 = vmul.f32 %v1068, 0.2
        %v1141 = vmul.f32 %v1069, 0.2
        %v1142 = vmul.f32 %v1070, 0.2
        %v1143 = vmul.f32 %v1071, 0.2
        %v1144 = vmul.f32 %v1072, 0.2
        %v1145 = vmul.f32 %v1073, 0.2
        %v1146 = vmul.f32 %v1074, 0.2
        %v1147 = vmul.f32 %v1075, 0.2
        %v1148 = vmul.f32 %v1076, 0.2
        %v1149 = vmul.f32 %v1077, 0.2
        %v1150 = vmul.f32 %v1078, 0.2
        %v1151 = vmul.f32 %v1079, 0.2
        %v1152 = vmul.f32 %v1080, 0.2
        %v1153 = vmul.f32 %v1081, 0.2
        %v1154 = vmul.f32 %v1082, 0.2
        %v1155 = vmul.f32 %v1083, 0.2
        %v1156 = vmul.f32 %v1084, 0.2
        %v1157 = vmul.f32 %v1085, 0.2
        %v1158 = vmul.f32 %v1086, 0.2
        %v1159 = vmul.f32 %v1087, 0.2
        %v1160 = vmul.f32 %v1088, 0.2
        %v1161 = vmul.f32 %v1089, 0.2
        %v1162 = vmul.f32 %v1090, 0.2
        %v1163 = vmul.f32 %v1091, 0.2
        %v1164 = vmul.f32 %v1092, 0.2
        %v1165 = vsel %vm1093, %v1057, %v1129
        %v1166 = vsel %vm1094, %v1058, %v1130
        %v1167 = vsel %vm1095, %v1059, %v1131
        %v1168 = vsel %vm1096, %v1060, %v1132
        %v1169 = vsel %vm1097, %v1061, %v1133
        %v1170 = vsel %vm1098, %v1062, %v1134
        %v1171 = vsel %vm1099, %v1063, %v1135
        %v1172 = vsel %vm1100, %v1064, %v1136
        %v1173 = vsel %vm1101, %v1065, %v1137
        %v1174 = vsel %vm1102, %v1066, %v1138
        %v1175 = vsel %vm1103, %v1067, %v1139
        %v1176 = vsel %vm1104, %v1068, %v1140
        %v1177 = vsel %vm1105, %v1069, %v1141
        %v1178 = vsel %vm1106, %v1070, %v1142
        %v1179 = vsel %vm1107, %v1071, %v1143
        %v1180 = vsel %vm1108, %v1072, %v1144
        %v1181 = vsel %vm1109, %v1073, %v1145
        %v1182 = vsel %vm1110, %v1074, %v1146
        %v1183 = vsel %vm1111, %v1075, %v1147
        %v1184 = vsel %vm1112, %v1076, %v1148
        %v1185 = vsel %vm1113, %v1077, %v1149
        %v1186 = vsel %vm1114, %v1078, %v1150
        %v1187 = vsel %vm1115, %v1079, %v1151
        %v1188 = vsel %vm1116, %v1080, %v1152
        %v1189 = vsel %vm1117, %v1081, %v1153
        %v1190 = vsel %vm1118, %v1082, %v1154
        %v1191 = vsel %vm1119, %v1083, %v1155
        %v1192 = vsel %vm1120, %v1084, %v1156
        %v1193 = vsel %vm1121, %v1085, %v1157
        %v1194 = vsel %vm1122, %v1086, %v1158
        %v1195 = vsel %vm1123, %v1087, %v1159
        %v1196 = vsel %vm1124, %v1088, %v1160
        %v1197 = vsel %vm1125, %v1089, %v1161
        %v1198 = vsel %vm1126, %v1090, %v1162
        %v1199 = vsel %vm1127, %v1091, %v1163
        %v1200 = vsel %vm1128, %v1092, %v1164
        %1201 = vst [vmem:[%s232] sm:$0xff] %v1165
        %1202 = vst [vmem:[%s232 + $0x8] sm:$0xff] %v1166
        %1203 = vst [vmem:[%s232 + $0x10] sm:$0xff] %v1167
        %1204 = vst [vmem:[%s232 + $0x18] sm:$0xff] %v1168
        %1205 = vst [vmem:[%s232 + $0x20] sm:$0xff] %v1169
        %1206 = vst [vmem:[%s232 + $0x28] sm:$0xff] %v1170
        %1207 = vst [vmem:[%s232 + $0x30] sm:$0xff] %v1171
        %1208 = vst [vmem:[%s232 + $0x38] sm:$0xff] %v1172
        %1209 = vst [vmem:[%s232 + $0x40] sm:$0xff] %v1173
        %1210 = vst [vmem:[%s232 + $0x48] sm:$0xff] %v1174
        %1211 = vst [vmem:[%s232 + $0x50] sm:$0xff] %v1175
        %1212 = vst [vmem:[%s232 + $0x58] sm:$0xff] %v1176
        %1213 = vst [vmem:[%s232 + $0x60] sm:$0xff] %v1177
        %1214 = vst [vmem:[%s232 + $0x68] sm:$0xff] %v1178
        %1215 = vst [vmem:[%s232 + $0x70] sm:$0xff] %v1179
        %1216 = vst [vmem:[%s232 + $0x78] sm:$0xff] %v1180
        %1217 = vst [vmem:[%s232 + $0x80] sm:$0xff] %v1181
        %1218 = vst [vmem:[%s232 + $0x88] sm:$0xff] %v1182
        %1219 = vst [vmem:[%s232 + $0x90] sm:$0xff] %v1183
        %1220 = vst [vmem:[%s232 + $0x98] sm:$0xff] %v1184
        %1221 = vst [vmem:[%s232 + $0xa0] sm:$0xff] %v1185
        %1222 = vst [vmem:[%s232 + $0xa8] sm:$0xff] %v1186
        %1223 = vst [vmem:[%s232 + $0xb0] sm:$0xff] %v1187
        %1224 = vst [vmem:[%s232 + $0xb8] sm:$0xff] %v1188
        %1225 = vst [vmem:[%s232 + $0xc0] sm:$0xff] %v1189
        %1226 = vst [vmem:[%s232 + $0xc8] sm:$0xff] %v1190
        %1227 = vst [vmem:[%s232 + $0xd0] sm:$0xff] %v1191
        %1228 = vst [vmem:[%s232 + $0xd8] sm:$0xff] %v1192
        %1229 = vst [vmem:[%s232 + $0xe0] sm:$0xff] %v1193
        %1230 = vst [vmem:[%s232 + $0xe8] sm:$0xff] %v1194
        %1231 = vst [vmem:[%s232 + $0xf0] sm:$0xff] %v1195
        %1232 = vst [vmem:[%s232 + $0xf8] sm:$0xff] %v1196
        %1233 = vst [vmem:[%s232 + $0x100] sm:$0xff] %v1197
        %1234 = vst [vmem:[%s232 + $0x108] sm:$0xff] %v1198
        %1235 = vst [vmem:[%s232 + $0x110] sm:$0xff] %v1199
        %1236 = vst [vmem:[%s232 + $0x118] sm:$0xff] %v1200
      $region48: #{lp_discriminator_forward.6} parent=35 // pred_fallthru
        _
      %s1237 = smul.u32 %s20, %s19
      %s1238 = smul.u32 36, %s1237
      %p1239 = scmp.lt.s32.totalorder %s1238, 35
      %s1240 = scalar_select %p1239, %s1238, 35
      %s1241 = smul.addr %s1240, 8
      %s1242 = scalar_lea.vmem %s4, %s1241
      // Predicated region
      $region49: #{lp_discriminator_forward.6} parent=35 // pred_check
        %p1243 = pneg %p140
      $region50: #{lp_discriminator_forward.6} parent=35 // pred_check_branch
        %1245 = sbr.rel (%p1243) target = $region52
      $region51: #{lp_discriminator_forward.6} parent=35 // pred_region
        %s1246 = smul.u32 %s20, %s19
        %s1247 = smul.u32 36, %s1246
      $region52: #{lp_discriminator_forward.6} parent=35 // pred_fallthru
        _
    $region36: #{lp_discriminator_forward.6} parent=5 // pred_fallthru
      _
    %p1248 = scmp.le.s32.totalorder 2, %s10
    // Predicated region
    $region53: #{lp_discriminator_forward.6} parent=5 // pred_check
      %p1249 = pneg %p1248
    $region54: #{lp_discriminator_forward.6} parent=5 // pred_check_branch
      %1251 = sbr.rel (%p1249) target = $region56
    $region55: #{lp_discriminator_forward.6} parent=5 // pred_region
      %s1252 = ssub.s32 %s10, 2
      // Predicated region
      $region57: #{lp_discriminator_forward.6} parent=55 // pred_check
        %p1253 = pneg %p146
      $region58: #{lp_discriminator_forward.6} parent=55 // pred_check_branch
        %1255 = sbr.rel (%p1253) target = $region60
      $region59: #{lp_discriminator_forward.6} parent=55 // pred_region
        %s1256 = smul.u32 %s22, %s21
        %s1257 = smul.u32 36, %s1256
        %p1258 = scmp.lt.s32.totalorder %s1257, 35
        %s1259 = scalar_select %p1258, %s1257, 35
        %s1260 = smul.addr %s1259, 8
        %s1261 = scalar_lea.vmem %s4, %s1260
      $region60: #{lp_discriminator_forward.6} parent=55 // pred_fallthru
        _
    $region56: #{lp_discriminator_forward.6} parent=5 // pred_fallthru
      _
  $region6: #{lp_discriminator_forward.6} parent=0 // loop_footer
    %s14 = sadd.s32 1, %s10
  $region7: #{lp_discriminator_forward.6} parent=0 // loop_footer_branch
    %9 = sbr.rel target = $region3
  $region8: #{lp_discriminator_forward.6} parent=0 // loop_exit
    _

// kernel: lp_discriminator_forward.7
$region0: #{lp_discriminator_forward.7}
  #allocation0 [shape = 'u32[]', space=smem, size = 0x4, offset = 0x4, fixed_abs, tag = 'smem constant byte address 0x4 - core index']
  #allocation1 [shape = 'u32[72,128]{1,0:T(1,128)}', space=vmem, size = 0x9000, scoped, tag = 'internal scratch']
  #allocation2 [shape = 'f32[1,256,128]{2,1,0:T(8,128)}', space=vmem, size = 0x20000, scoped, tag = 'scratch operand']
  #allocation3 [shape = 'f32[1,128]{1,0:T(1,128)}', space=vmem, size = 0x200, scoped, tag = 'scratch operand']
  #allocation4 [shape = 'f32[1,128]{1,0:T(1,128)}', space=vmem, size = 0x200, scoped, tag = 'scratch operand']
  %s0 = inlined_call_operand.vmem [shape: bf16[256,512], index: 0, kind: input, shape index: {}]
  %s1 = inlined_call_operand.vmem [shape: bf16[512,128], index: 1, kind: input, shape index: {}]
  %s2 = inlined_call_operand.vmem [shape: f32[1,128], index: 2, kind: input, shape index: {}]
  %s3 = inlined_call_operand.vmem [shape: f32[1,128], index: 3, kind: input, shape index: {}]
  %s4 = inlined_call_operand.vmem [shape: bf16[256,128], index: 4, kind: output, shape index: {}]
  %s5 = sld [smem:[#allocation0]]
  $region61: #{lp_discriminator_forward.7} parent=0
    _
  %s7 = ssub.s32 1, %s5
  %s8 = scalar_select 0, %s7, %s5
  loop: start=0, step=1, limit=4
  $region2: #{lp_discriminator_forward.7} parent=0 // loop_pre_header
    _
  $region3: #{lp_discriminator_forward.7} parent=0 // loop_header
    %s10 = sphi 0, %s14
    %p11 = scmp.ge.s32.totalorder %s10, 4
    %s17 = sphi 0, %s29
    %s18 = sphi 0, %s25
    %s19 = sphi 0, %s17
    %s20 = sphi 0, %s18
    %s21 = sphi 0, %s19
    %s22 = sphi 0, %s20
    %s36 = sphi 0, %s38
    %s39 = sphi 0, %s36
    %s40 = sphi 0, %s39
    %s56 = sphi 0, %s40
    %s60 = sphi 0, %s60
    %s62 = sphi 0, %s60
    %s63 = sphi 0, %s62
    %s77 = sphi 0, %s63
    %s81 = sphi 0, %s81
    %s83 = sphi 0, %s81
    %s84 = sphi 0, %s83
    %s98 = sphi 0, %s84
    %s102 = sphi 0, %s102
    %s104 = sphi 0, %s102
    %s105 = sphi 0, %s104
    %s119 = sphi 0, %s105
    %s127 = sphi 0, %s129
    %s130 = sphi 0, %s127
    %s131 = sphi 0, %s130
    %s147 = sphi 0, %s131
  $region4: #{lp_discriminator_forward.7} parent=0 // loop_header_branch
    %13 = sbr.rel (%p11) target = $region8
  $region5: #{lp_discriminator_forward.7} parent=0 // loop_body
    %s15 = ssub.s32 %s10, 1
    %s16 = ssub.s32 %s10, 2
    %s23 = sadd.s32 1, %s18
    %p24 = scmp.ge.s32.totalorder %s23, 1
    %s25 = scalar_select %p24, 0, %s23
    %s26 = sadd.s32 1, %s17
    %s27 = scalar_select %p24, %s26, %s17
    %p28 = scmp.ge.s32.totalorder %s27, 2
    %s29 = scalar_select %p28, 0, %s27
    %s30 = ssub.s32 1, %s17
    %s31 = smul.u32 %s18, %s30
    %s32 = ssub.s32 1, %s29
    %s33 = smul.u32 %s25, %s32
    %s34 = ssub.s32 %s31, %s33
    %p35 = scmp.eq.s32.totalorder %s34, 0
    %s37 = sadd.s32 %s36, 1
    %s38 = scalar_select %p35, %s36, %s37
    %p41 = pneg %p35
    %p42 = scmp.eq.s32.totalorder %s10, 1
    %p43 = por %p41, %p42
    %p44 = scmp.ne.s32.totalorder %s36, %s39
    %p45 = scmp.eq.s32.totalorder %s10, 0
    %p46 = por %p44, %p45
    %p47 = scmp.ne.s32.totalorder %s36, %s39
    %p48 = scmp.eq.s32.totalorder %s15, 1
    %p49 = por %p47, %p48
    %p50 = scmp.ne.s32.totalorder %s39, %s40
    %p51 = scmp.eq.s32.totalorder %s15, 0
    %p52 = por %p50, %p51
    %p53 = scmp.ne.s32.totalorder %s39, %s40
    %p54 = scmp.eq.s32.totalorder %s16, 1
    %p55 = por %p53, %p54
    %p57 = scmp.ne.s32.totalorder %s40, %s56
    %p58 = scmp.eq.s32.totalorder %s16, 0
    %p59 = por %p57, %p58
    %s61 = sadd.s32 %s60, 1
    %p64 = scmp.eq.s32.totalorder %s10, 1
    %p65 = scmp.ne.s32.totalorder %s60, %s62
    %p66 = scmp.eq.s32.totalorder %s10, 0
    %p67 = por %p65, %p66
    %p68 = scmp.ne.s32.totalorder %s60, %s62
    %p69 = scmp.eq.s32.totalorder %s15, 1
    %p70 = por %p68, %p69
    %p71 = scmp.ne.s32.totalorder %s62, %s63
    %p72 = scmp.eq.s32.totalorder %s15, 0
    %p73 = por %p71, %p72
    %p74 = scmp.ne.s32.totalorder %s62, %s63
    %p75 = scmp.eq.s32.totalorder %s16, 1
    %p76 = por %p74, %p75
    %p78 = scmp.ne.s32.totalorder %s63, %s77
    %p79 = scmp.eq.s32.totalorder %s16, 0
    %p80 = por %p78, %p79
    %s82 = sadd.s32 %s81, 1
    %p85 = scmp.eq.s32.totalorder %s10, 1
    %p86 = scmp.ne.s32.totalorder %s81, %s83
    %p87 = scmp.eq.s32.totalorder %s10, 0
    %p88 = por %p86, %p87
    %p89 = scmp.ne.s32.totalorder %s81, %s83
    %p90 = scmp.eq.s32.totalorder %s15, 1
    %p91 = por %p89, %p90
    %p92 = scmp.ne.s32.totalorder %s83, %s84
    %p93 = scmp.eq.s32.totalorder %s15, 0
    %p94 = por %p92, %p93
    %p95 = scmp.ne.s32.totalorder %s83, %s84
    %p96 = scmp.eq.s32.totalorder %s16, 1
    %p97 = por %p95, %p96
    %p99 = scmp.ne.s32.totalorder %s84, %s98
    %p100 = scmp.eq.s32.totalorder %s16, 0
    %p101 = por %p99, %p100
    %s103 = sadd.s32 %s102, 1
    %p106 = scmp.eq.s32.totalorder %s10, 1
    %p107 = scmp.ne.s32.totalorder %s102, %s104
    %p108 = scmp.eq.s32.totalorder %s10, 0
    %p109 = por %p107, %p108
    %p110 = scmp.ne.s32.totalorder %s102, %s104
    %p111 = scmp.eq.s32.totalorder %s15, 1
    %p112 = por %p110, %p111
    %p113 = scmp.ne.s32.totalorder %s104, %s105
    %p114 = scmp.eq.s32.totalorder %s15, 0
    %p115 = por %p113, %p114
    %p116 = scmp.ne.s32.totalorder %s104, %s105
    %p117 = scmp.eq.s32.totalorder %s16, 1
    %p118 = por %p116, %p117
    %p120 = scmp.ne.s32.totalorder %s105, %s119
    %p121 = scmp.eq.s32.totalorder %s16, 0
    %p122 = por %p120, %p121
    %s123 = smul.u32 %s18, %s17
    %s124 = smul.u32 %s25, %s29
    %s125 = ssub.s32 %s123, %s124
    %p126 = scmp.eq.s32.totalorder %s125, 0
    %s128 = sadd.s32 %s127, 1
    %s129 = scalar_select %p126, %s127, %s128
    %p132 = pneg %p126
    %p133 = scmp.eq.s32.totalorder %s10, 1
    %p134 = por %p132, %p133
    %p135 = scmp.ne.s32.totalorder %s127, %s130
    %p136 = scmp.eq.s32.totalorder %s10, 0
    %p137 = por %p135, %p136
    %p138 = scmp.ne.s32.totalorder %s127, %s130
    %p139 = scmp.eq.s32.totalorder %s15, 1
    %p140 = por %p138, %p139
    %p141 = scmp.ne.s32.totalorder %s130, %s131
    %p142 = scmp.eq.s32.totalorder %s15, 0
    %p143 = por %p141, %p142
    %p144 = scmp.ne.s32.totalorder %s130, %s131
    %p145 = scmp.eq.s32.totalorder %s16, 1
    %p146 = por %p144, %p145
    %p148 = scmp.ne.s32.totalorder %s131, %s147
    %p149 = scmp.eq.s32.totalorder %s16, 0
    %p150 = por %p148, %p149
    %p151 = scmp.le.s32.totalorder 1, %s10
    %p152 = scmp.lt.s32.totalorder %s10, 3
    %p153 = pnand %p151, %p152
    %p154 = pneg %p153
    // Predicated region
    $region9: #{lp_discriminator_forward.7} parent=5 // pred_check
      _
    $region10: #{lp_discriminator_forward.7} parent=5 // pred_check_branch
      %156 = sbr.rel (%p153) target = $region12
    $region11: #{lp_discriminator_forward.7} parent=5 // pred_region
      %s157 = ssub.s32 %s10, 1
      // Predicated region
      $region13: #{lp_discriminator_forward.7} parent=11 // pred_check
        %p158 = pneg %p73
      $region14: #{lp_discriminator_forward.7} parent=11 // pred_check_branch
        %160 = sbr.rel (%p158) target = $region16
      $region15: #{lp_discriminator_forward.7} parent=11 // pred_region
        _
      $region16: #{lp_discriminator_forward.7} parent=11 // pred_fallthru
        _
      // Predicated region
      $region17: #{lp_discriminator_forward.7} parent=11 // pred_check
        %p161 = pneg %p94
      $region18: #{lp_discriminator_forward.7} parent=11 // pred_check_branch
        %163 = sbr.rel (%p161) target = $region20
      $region19: #{lp_discriminator_forward.7} parent=11 // pred_region
        _
      $region20: #{lp_discriminator_forward.7} parent=11 // pred_fallthru
        _
      // Predicated region
      $region21: #{lp_discriminator_forward.7} parent=11 // pred_check
        %p164 = pneg %p115
      $region22: #{lp_discriminator_forward.7} parent=11 // pred_check_branch
        %166 = sbr.rel (%p164) target = $region24
      $region23: #{lp_discriminator_forward.7} parent=11 // pred_region
        _
      $region24: #{lp_discriminator_forward.7} parent=11 // pred_fallthru
        _
    $region12: #{lp_discriminator_forward.7} parent=5 // pred_fallthru
      _
    %p167 = scmp.lt.s32.totalorder %s10, 2
    // Predicated region
    $region25: #{lp_discriminator_forward.7} parent=5 // pred_check
      %p168 = pneg %p167
    $region26: #{lp_discriminator_forward.7} parent=5 // pred_check_branch
      %170 = sbr.rel (%p168) target = $region28
    $region27: #{lp_discriminator_forward.7} parent=5 // pred_region
      // Predicated region
      $region29: #{lp_discriminator_forward.7} parent=27 // pred_check
        %p171 = pneg %p46
      $region30: #{lp_discriminator_forward.7} parent=27 // pred_check_branch
        %173 = sbr.rel (%p171) target = $region32
      $region31: #{lp_discriminator_forward.7} parent=27 // pred_region
        %s174 = ssub.s32 1, %s17
        %s175 = smul.u32 %s18, %s174
        %s176 = smul.u32 32, %s175
        %p177 = scmp.lt.s32.totalorder %s176, 31
        %s178 = scalar_select %p177, %s176, 31
        %s179 = smul.addr %s178, 4
        %s180 = smul.addr %s179, 4
        %s181 = scalar_lea.vmem %s0, %s180
        %s182 = ssub.s32 1, %s17
        %s183 = smul.u32 %s18, %s182
        %s184 = smul.u32 32, %s183
      $region32: #{lp_discriminator_forward.7} parent=27 // pred_fallthru
        _
    $region28: #{lp_discriminator_forward.7} parent=5 // pred_fallthru
      _
    %p185 = scmp.le.s32.totalorder 1, %s10
    %p186 = scmp.lt.s32.totalorder %s10, 3
    %p187 = pnand %p185, %p186
    %p188 = pneg %p187
    // Predicated region
    $region33: #{lp_discriminator_forward.7} parent=5 // pred_check
      _
    $region34: #{lp_discriminator_forward.7} parent=5 // pred_check_branch
      %190 = sbr.rel (%p187) target = $region36
    $region35: #{lp_discriminator_forward.7} parent=5 // pred_region
      %s191 = ssub.s32 %s10, 1
      %s192 = ssub.s32 1, %s19
      %s193 = smul.u32 %s20, %s192
      %s194 = smul.u32 32, %s193
      %p195 = scmp.lt.s32.totalorder %s194, 31
      %s196 = scalar_select %p195, %s194, 31
      %s197 = smul.addr %s196, 4
      %s198 = smul.addr %s197, 4
      %s199 = scalar_lea.vmem %s0, %s198
      %p200 = pneg %p52
      %p201 = pneg %p49
      %p202 = pneg %p73
      %p203 = pneg %p70
      %p204 = pneg %p94
      %p205 = pneg %p91
      %p206 = pneg %p115
      %p207 = pneg %p112
      %p208 = pneg %p143
      %p209 = pneg %p140
      %s210 = smul.u32 %s20, %s19
      %s211 = smul.u32 32, %s210
      %p212 = scmp.lt.s32.totalorder %s211, 31
      %s213 = scalar_select %p212, %s211, 31
      %s214 = smul.addr %s213, 4
      %s215 = scalar_lea.vmem %s4, %s214
      %s216 = ssub.s32 1, %s19
      %s217 = smul.u32 %s20, %s216
      %s218 = smul.u32 32, %s217
      %p219 = scmp.lt.s32.totalorder %s218, 31
      %s220 = scalar_select %p219, %s218, 31
      %s221 = smul.addr %s220, 4
      %s222 = smul.addr %s221, 4
      %s223 = scalar_lea.vmem %s0, %s222
      %s224 = ssub.s32 1, %s19
      %s225 = smul.u32 %s20, %s224
      %s226 = smul.u32 32, %s225
      %s227 = smul.u32 %s20, %s19
      %s228 = smul.u32 32, %s227
      %p229 = scmp.lt.s32.totalorder %s228, 31
      %s230 = scalar_select %p229, %s228, 31
      %s231 = smul.addr %s230, 4
      %s232 = scalar_lea.vmem %s4, %s231
      %s233 = smul.u32 %s20, %s19
      %s234 = smul.u32 32, %s233
      %p235 = scmp.eq.s32.totalorder %s19, 0
      %p236 = scmp.eq.s32.totalorder %s20, 0
      %p237 = pnand %p235, %p236
      %p238 = pneg %p237
      // Predicated region
      $region37: #{lp_discriminator_forward.7} parent=35 // pred_check
        _
      $region38: #{lp_discriminator_forward.7} parent=35 // pred_check_branch
        %240 = sbr.rel (%p237) target = $region40
      $region39: #{lp_discriminator_forward.7} parent=35 // pred_region
        %241 = vst [vmem:[#allocation3] sm:$0x1] 0.0
        %242 = vst [vmem:[#allocation4] sm:$0x1] 0.0
      $region40: #{lp_discriminator_forward.7} parent=35 // pred_fallthru
        _
      // Predicated region
      $region41: #{lp_discriminator_forward.7} parent=35 // pred_check
        %p243 = pneg %p235
      $region42: #{lp_discriminator_forward.7} parent=35 // pred_check_branch
        %245 = sbr.rel (%p243) target = $region44
      $region43: #{lp_discriminator_forward.7} parent=35 // pred_region
        %v246 = vld [vmem:[%s223] sm:$0xff]
        %v247 = vld [vmem:[%s223 + $0x8] sm:$0xff]
        %v248 = vld [vmem:[%s223 + $0x10] sm:$0xff]
        %v249 = vld [vmem:[%s223 + $0x18] sm:$0xff]
        %v250 = vld [vmem:[%s223 + $0x20] sm:$0xff]
        %v251 = vld [vmem:[%s223 + $0x28] sm:$0xff]
        %v252 = vld [vmem:[%s223 + $0x30] sm:$0xff]
        %v253 = vld [vmem:[%s223 + $0x38] sm:$0xff]
        %v254 = vld [vmem:[%s223 + $0x40] sm:$0xff]
        %v255 = vld [vmem:[%s223 + $0x48] sm:$0xff]
        %v256 = vld [vmem:[%s223 + $0x50] sm:$0xff]
        %v257 = vld [vmem:[%s223 + $0x58] sm:$0xff]
        %v258 = vld [vmem:[%s223 + $0x60] sm:$0xff]
        %v259 = vld [vmem:[%s223 + $0x68] sm:$0xff]
        %v260 = vld [vmem:[%s223 + $0x70] sm:$0xff]
        %v261 = vld [vmem:[%s223 + $0x78] sm:$0xff]
        %v262 = vld [vmem:[%s223 + $0x80] sm:$0xff]
        %v263 = vld [vmem:[%s223 + $0x88] sm:$0xff]
        %v264 = vld [vmem:[%s223 + $0x90] sm:$0xff]
        %v265 = vld [vmem:[%s223 + $0x98] sm:$0xff]
        %v266 = vld [vmem:[%s223 + $0xa0] sm:$0xff]
        %v267 = vld [vmem:[%s223 + $0xa8] sm:$0xff]
        %v268 = vld [vmem:[%s223 + $0xb0] sm:$0xff]
        %v269 = vld [vmem:[%s223 + $0xb8] sm:$0xff]
        %v270 = vld [vmem:[%s223 + $0xc0] sm:$0xff]
        %v271 = vld [vmem:[%s223 + $0xc8] sm:$0xff]
        %v272 = vld [vmem:[%s223 + $0xd0] sm:$0xff]
        %v273 = vld [vmem:[%s223 + $0xd8] sm:$0xff]
        %v274 = vld [vmem:[%s223 + $0xe0] sm:$0xff]
        %v275 = vld [vmem:[%s223 + $0xe8] sm:$0xff]
        %v276 = vld [vmem:[%s223 + $0xf0] sm:$0xff]
        %v277 = vld [vmem:[%s223 + $0xf8] sm:$0xff]
        %v278 = vld [vmem:[%s223 + $0x100] sm:$0xff]
        %v279 = vld [vmem:[%s223 + $0x108] sm:$0xff]
        %v280 = vld [vmem:[%s223 + $0x110] sm:$0xff]
        %v281 = vld [vmem:[%s223 + $0x118] sm:$0xff]
        %v282 = vld [vmem:[%s223 + $0x120] sm:$0xff]
        %v283 = vld [vmem:[%s223 + $0x128] sm:$0xff]
        %v284 = vld [vmem:[%s223 + $0x130] sm:$0xff]
        %v285 = vld [vmem:[%s223 + $0x138] sm:$0xff]
        %v286 = vld [vmem:[%s223 + $0x140] sm:$0xff]
        %v287 = vld [vmem:[%s223 + $0x148] sm:$0xff]
        %v288 = vld [vmem:[%s223 + $0x150] sm:$0xff]
        %v289 = vld [vmem:[%s223 + $0x158] sm:$0xff]
        %v290 = vld [vmem:[%s223 + $0x160] sm:$0xff]
        %v291 = vld [vmem:[%s223 + $0x168] sm:$0xff]
        %v292 = vld [vmem:[%s223 + $0x170] sm:$0xff]
        %v293 = vld [vmem:[%s223 + $0x178] sm:$0xff]
        %v294 = vld [vmem:[%s223 + $0x180] sm:$0xff]
        %v295 = vld [vmem:[%s223 + $0x188] sm:$0xff]
        %v296 = vld [vmem:[%s223 + $0x190] sm:$0xff]
        %v297 = vld [vmem:[%s223 + $0x198] sm:$0xff]
        %v298 = vld [vmem:[%s223 + $0x1a0] sm:$0xff]
        %v299 = vld [vmem:[%s223 + $0x1a8] sm:$0xff]
        %v300 = vld [vmem:[%s223 + $0x1b0] sm:$0xff]
        %v301 = vld [vmem:[%s223 + $0x1b8] sm:$0xff]
        %v302 = vld [vmem:[%s223 + $0x1c0] sm:$0xff]
        %v303 = vld [vmem:[%s223 + $0x1c8] sm:$0xff]
        %v304 = vld [vmem:[%s223 + $0x1d0] sm:$0xff]
        %v305 = vld [vmem:[%s223 + $0x1d8] sm:$0xff]
        %v306 = vld [vmem:[%s223 + $0x1e0] sm:$0xff]
        %v307 = vld [vmem:[%s223 + $0x1e8] sm:$0xff]
        %v308 = vld [vmem:[%s223 + $0x1f0] sm:$0xff]
        %v309 = vld [vmem:[%s223 + $0x1f8] sm:$0xff]
        %v310 = vld [vmem:[%s1] sm:$0xf]
        %v311 = vld [vmem:[%s1 + $0x4] sm:$0xf]
        %v312 = vld [vmem:[%s1 + $0x8] sm:$0xf]
        %v313 = vld [vmem:[%s1 + $0xc] sm:$0xf]
        %v314 = vld [vmem:[%s1 + $0x10] sm:$0xf]
        %v315 = vld [vmem:[%s1 + $0x14] sm:$0xf]
        %v316 = vld [vmem:[%s1 + $0x18] sm:$0xf]
        %v317 = vld [vmem:[%s1 + $0x1c] sm:$0xf]
        %v318 = vld [vmem:[%s1 + $0x20] sm:$0xf]
        %v319 = vld [vmem:[%s1 + $0x24] sm:$0xf]
        %v320 = vld [vmem:[%s1 + $0x28] sm:$0xf]
        %v321 = vld [vmem:[%s1 + $0x2c] sm:$0xf]
        %v322 = vld [vmem:[%s1 + $0x30] sm:$0xf]
        %v323 = vld [vmem:[%s1 + $0x34] sm:$0xf]
        %v324 = vld [vmem:[%s1 + $0x38] sm:$0xf]
        %v325 = vld [vmem:[%s1 + $0x3c] sm:$0xf]
        %v326 = vld [vmem:[%s1 + $0x40] sm:$0xf]
        %v327 = vld [vmem:[%s1 + $0x44] sm:$0xf]
        %v328 = vld [vmem:[%s1 + $0x48] sm:$0xf]
        %v329 = vld [vmem:[%s1 + $0x4c] sm:$0xf]
        %v330 = vld [vmem:[%s1 + $0x50] sm:$0xf]
        %v331 = vld [vmem:[%s1 + $0x54] sm:$0xf]
        %v332 = vld [vmem:[%s1 + $0x58] sm:$0xf]
        %v333 = vld [vmem:[%s1 + $0x5c] sm:$0xf]
        %v334 = vld [vmem:[%s1 + $0x60] sm:$0xf]
        %v335 = vld [vmem:[%s1 + $0x64] sm:$0xf]
        %v336 = vld [vmem:[%s1 + $0x68] sm:$0xf]
        %v337 = vld [vmem:[%s1 + $0x6c] sm:$0xf]
        %v338 = vld [vmem:[%s1 + $0x70] sm:$0xf]
        %v339 = vld [vmem:[%s1 + $0x74] sm:$0xf]
        %v340 = vld [vmem:[%s1 + $0x78] sm:$0xf]
        %v341 = vld [vmem:[%s1 + $0x7c] sm:$0xf]
        %v342 = vld [vmem:[%s1 + $0x80] sm:$0xf]
        %v343 = vld [vmem:[%s1 + $0x84] sm:$0xf]
        %v344 = vld [vmem:[%s1 + $0x88] sm:$0xf]
        %v345 = vld [vmem:[%s1 + $0x8c] sm:$0xf]
        %v346 = vld [vmem:[%s1 + $0x90] sm:$0xf]
        %v347 = vld [vmem:[%s1 + $0x94] sm:$0xf]
        %v348 = vld [vmem:[%s1 + $0x98] sm:$0xf]
        %v349 = vld [vmem:[%s1 + $0x9c] sm:$0xf]
        %v350 = vld [vmem:[%s1 + $0xa0] sm:$0xf]
        %v351 = vld [vmem:[%s1 + $0xa4] sm:$0xf]
        %v352 = vld [vmem:[%s1 + $0xa8] sm:$0xf]
        %v353 = vld [vmem:[%s1 + $0xac] sm:$0xf]
        %v354 = vld [vmem:[%s1 + $0xb0] sm:$0xf]
        %v355 = vld [vmem:[%s1 + $0xb4] sm:$0xf]
        %v356 = vld [vmem:[%s1 + $0xb8] sm:$0xf]
        %v357 = vld [vmem:[%s1 + $0xbc] sm:$0xf]
        %v358 = vld [vmem:[%s1 + $0xc0] sm:$0xf]
        %v359 = vld [vmem:[%s1 + $0xc4] sm:$0xf]
        %v360 = vld [vmem:[%s1 + $0xc8] sm:$0xf]
        %v361 = vld [vmem:[%s1 + $0xcc] sm:$0xf]
        %v362 = vld [vmem:[%s1 + $0xd0] sm:$0xf]
        %v363 = vld [vmem:[%s1 + $0xd4] sm:$0xf]
        %v364 = vld [vmem:[%s1 + $0xd8] sm:$0xf]
        %v365 = vld [vmem:[%s1 + $0xdc] sm:$0xf]
        %v366 = vld [vmem:[%s1 + $0xe0] sm:$0xf]
        %v367 = vld [vmem:[%s1 + $0xe4] sm:$0xf]
        %v368 = vld [vmem:[%s1 + $0xe8] sm:$0xf]
        %v369 = vld [vmem:[%s1 + $0xec] sm:$0xf]
        %v370 = vld [vmem:[%s1 + $0xf0] sm:$0xf]
        %v371 = vld [vmem:[%s1 + $0xf4] sm:$0xf]
        %v372 = vld [vmem:[%s1 + $0xf8] sm:$0xf]
        %v373 = vld [vmem:[%s1 + $0xfc] sm:$0xf]
        %v438 = vunpack.c.l.b16 %v246
        %v439 = vunpack.c.h.b16 %v246
        %v440 = vunpack.c.l.b16 %v247
        %v441 = vunpack.c.h.b16 %v247
        %v442 = vunpack.c.l.b16 %v248
        %v443 = vunpack.c.h.b16 %v248
        %v444 = vunpack.c.l.b16 %v249
        %v445 = vunpack.c.h.b16 %v249
        %v446 = vunpack.c.l.b16 %v250
        %v447 = vunpack.c.h.b16 %v250
        %v448 = vunpack.c.l.b16 %v251
        %v449 = vunpack.c.h.b16 %v251
        %v450 = vunpack.c.l.b16 %v252
        %v451 = vunpack.c.h.b16 %v252
        %v452 = vunpack.c.l.b16 %v253
        %v453 = vunpack.c.h.b16 %v253
        %v454 = vunpack.c.l.b16 %v254
        %v455 = vunpack.c.h.b16 %v254
        %v456 = vunpack.c.l.b16 %v255
        %v457 = vunpack.c.h.b16 %v255
        %v458 = vunpack.c.l.b16 %v256
        %v459 = vunpack.c.h.b16 %v256
        %v460 = vunpack.c.l.b16 %v257
        %v461 = vunpack.c.h.b16 %v257
        %v462 = vunpack.c.l.b16 %v258
        %v463 = vunpack.c.h.b16 %v258
        %v464 = vunpack.c.l.b16 %v259
        %v465 = vunpack.c.h.b16 %v259
        %v466 = vunpack.c.l.b16 %v260
        %v467 = vunpack.c.h.b16 %v260
        %v468 = vunpack.c.l.b16 %v261
        %v469 = vunpack.c.h.b16 %v261
        %v470 = vunpack.c.l.b16 %v262
        %v471 = vunpack.c.h.b16 %v262
        %v472 = vunpack.c.l.b16 %v263
        %v473 = vunpack.c.h.b16 %v263
        %v474 = vunpack.c.l.b16 %v264
        %v475 = vunpack.c.h.b16 %v264
        %v476 = vunpack.c.l.b16 %v265
        %v477 = vunpack.c.h.b16 %v265
        %v478 = vunpack.c.l.b16 %v266
        %v479 = vunpack.c.h.b16 %v266
        %v480 = vunpack.c.l.b16 %v267
        %v481 = vunpack.c.h.b16 %v267
        %v482 = vunpack.c.l.b16 %v268
        %v483 = vunpack.c.h.b16 %v268
        %v484 = vunpack.c.l.b16 %v269
        %v485 = vunpack.c.h.b16 %v269
        %v486 = vunpack.c.l.b16 %v270
        %v487 = vunpack.c.h.b16 %v270
        %v488 = vunpack.c.l.b16 %v271
        %v489 = vunpack.c.h.b16 %v271
        %v490 = vunpack.c.l.b16 %v272
        %v491 = vunpack.c.h.b16 %v272
        %v492 = vunpack.c.l.b16 %v273
        %v493 = vunpack.c.h.b16 %v273
        %v494 = vunpack.c.l.b16 %v274
        %v495 = vunpack.c.h.b16 %v274
        %v496 = vunpack.c.l.b16 %v275
        %v497 = vunpack.c.h.b16 %v275
        %v498 = vunpack.c.l.b16 %v276
        %v499 = vunpack.c.h.b16 %v276
        %v500 = vunpack.c.l.b16 %v277
        %v501 = vunpack.c.h.b16 %v277
        %v502 = vunpack.c.l.b16 %v278
        %v503 = vunpack.c.h.b16 %v278
        %v504 = vunpack.c.l.b16 %v279
        %v505 = vunpack.c.h.b16 %v279
        %v506 = vunpack.c.l.b16 %v280
        %v507 = vunpack.c.h.b16 %v280
        %v508 = vunpack.c.l.b16 %v281
        %v509 = vunpack.c.h.b16 %v281
        %v510 = vunpack.c.l.b16 %v282
        %v511 = vunpack.c.h.b16 %v282
        %v512 = vunpack.c.l.b16 %v283
        %v513 = vunpack.c.h.b16 %v283
        %v514 = vunpack.c.l.b16 %v284
        %v515 = vunpack.c.h.b16 %v284
        %v516 = vunpack.c.l.b16 %v285
        %v517 = vunpack.c.h.b16 %v285
        %v518 = vunpack.c.l.b16 %v286
        %v519 = vunpack.c.h.b16 %v286
        %v520 = vunpack.c.l.b16 %v287
        %v521 = vunpack.c.h.b16 %v287
        %v522 = vunpack.c.l.b16 %v288
        %v523 = vunpack.c.h.b16 %v288
        %v524 = vunpack.c.l.b16 %v289
        %v525 = vunpack.c.h.b16 %v289
        %v526 = vunpack.c.l.b16 %v290
        %v527 = vunpack.c.h.b16 %v290
        %v528 = vunpack.c.l.b16 %v291
        %v529 = vunpack.c.h.b16 %v291
        %v530 = vunpack.c.l.b16 %v292
        %v531 = vunpack.c.h.b16 %v292
        %v532 = vunpack.c.l.b16 %v293
        %v533 = vunpack.c.h.b16 %v293
        %v534 = vunpack.c.l.b16 %v294
        %v535 = vunpack.c.h.b16 %v294
        %v536 = vunpack.c.l.b16 %v295
        %v537 = vunpack.c.h.b16 %v295
        %v538 = vunpack.c.l.b16 %v296
        %v539 = vunpack.c.h.b16 %v296
        %v540 = vunpack.c.l.b16 %v297
        %v541 = vunpack.c.h.b16 %v297
        %v542 = vunpack.c.l.b16 %v298
        %v543 = vunpack.c.h.b16 %v298
        %v544 = vunpack.c.l.b16 %v299
        %v545 = vunpack.c.h.b16 %v299
        %v546 = vunpack.c.l.b16 %v300
        %v547 = vunpack.c.h.b16 %v300
        %v548 = vunpack.c.l.b16 %v301
        %v549 = vunpack.c.h.b16 %v301
        %v550 = vunpack.c.l.b16 %v302
        %v551 = vunpack.c.h.b16 %v302
        %v552 = vunpack.c.l.b16 %v303
        %v553 = vunpack.c.h.b16 %v303
        %v554 = vunpack.c.l.b16 %v304
        %v555 = vunpack.c.h.b16 %v304
        %v556 = vunpack.c.l.b16 %v305
        %v557 = vunpack.c.h.b16 %v305
        %v558 = vunpack.c.l.b16 %v306
        %v559 = vunpack.c.h.b16 %v306
        %v560 = vunpack.c.l.b16 %v307
        %v561 = vunpack.c.h.b16 %v307
        %v562 = vunpack.c.l.b16 %v308
        %v563 = vunpack.c.h.b16 %v308
        %v564 = vunpack.c.l.b16 %v309
        %v565 = vunpack.c.h.b16 %v309
        %v566 = vpack.c.b16 %v442, %v438
        %v567 = vpack.c.b16 %v443, %v439
        %v568 = vpack.c.b16 %v444, %v440
        %v569 = vpack.c.b16 %v445, %v441
        %v570 = vpack.c.b16 %v450, %v446
        %v571 = vpack.c.b16 %v451, %v447
        %v572 = vpack.c.b16 %v452, %v448
        %v573 = vpack.c.b16 %v453, %v449
        %v574 = vpack.c.b16 %v458, %v454
        %v575 = vpack.c.b16 %v459, %v455
        %v576 = vpack.c.b16 %v460, %v456
        %v577 = vpack.c.b16 %v461, %v457
        %v578 = vpack.c.b16 %v466, %v462
        %v579 = vpack.c.b16 %v467, %v463
        %v580 = vpack.c.b16 %v468, %v464
        %v581 = vpack.c.b16 %v469, %v465
        %v582 = vpack.c.b16 %v474, %v470
        %v583 = vpack.c.b16 %v475, %v471
        %v584 = vpack.c.b16 %v476, %v472
        %v585 = vpack.c.b16 %v477, %v473
        %v586 = vpack.c.b16 %v482, %v478
        %v587 = vpack.c.b16 %v483, %v479
        %v588 = vpack.c.b16 %v484, %v480
        %v589 = vpack.c.b16 %v485, %v481
        %v590 = vpack.c.b16 %v490, %v486
        %v591 = vpack.c.b16 %v491, %v487
        %v592 = vpack.c.b16 %v492, %v488
        %v593 = vpack.c.b16 %v493, %v489
        %v594 = vpack.c.b16 %v498, %v494
        %v595 = vpack.c.b16 %v499, %v495
        %v596 = vpack.c.b16 %v500, %v496
        %v597 = vpack.c.b16 %v501, %v497
        %v598 = vpack.c.b16 %v506, %v502
        %v599 = vpack.c.b16 %v507, %v503
        %v600 = vpack.c.b16 %v508, %v504
        %v601 = vpack.c.b16 %v509, %v505
        %v602 = vpack.c.b16 %v514, %v510
        %v603 = vpack.c.b16 %v515, %v511
        %v604 = vpack.c.b16 %v516, %v512
        %v605 = vpack.c.b16 %v517, %v513
        %v606 = vpack.c.b16 %v522, %v518
        %v607 = vpack.c.b16 %v523, %v519
        %v608 = vpack.c.b16 %v524, %v520
        %v609 = vpack.c.b16 %v525, %v521
        %v610 = vpack.c.b16 %v530, %v526
        %v611 = vpack.c.b16 %v531, %v527
        %v612 = vpack.c.b16 %v532, %v528
        %v613 = vpack.c.b16 %v533, %v529
        %v614 = vpack.c.b16 %v538, %v534
        %v615 = vpack.c.b16 %v539, %v535
        %v616 = vpack.c.b16 %v540, %v536
        %v617 = vpack.c.b16 %v541, %v537
        %v618 = vpack.c.b16 %v546, %v542
        %v619 = vpack.c.b16 %v547, %v543
        %v620 = vpack.c.b16 %v548, %v544
        %v621 = vpack.c.b16 %v549, %v545
        %v622 = vpack.c.b16 %v554, %v550
        %v623 = vpack.c.b16 %v555, %v551
        %v624 = vpack.c.b16 %v556, %v552
        %v625 = vpack.c.b16 %v557, %v553
        %v626 = vpack.c.b16 %v562, %v558
        %v627 = vpack.c.b16 %v563, %v559
        %v628 = vpack.c.b16 %v564, %v560
        %v629 = vpack.c.b16 %v565, %v561
        %v758 = vunpack.c.l.b16 %v310
        %v759 = vunpack.c.l.b16 %v311
        %v760 = vunpack.c.l.b16 %v312
        %v761 = vunpack.c.l.b16 %v313
        %v762 = vunpack.c.l.b16 %v314
        %v763 = vunpack.c.l.b16 %v315
        %v764 = vunpack.c.l.b16 %v316
        %v765 = vunpack.c.l.b16 %v317
        %v766 = vunpack.c.l.b16 %v318
        %v767 = vunpack.c.l.b16 %v319
        %v768 = vunpack.c.l.b16 %v320
        %v769 = vunpack.c.l.b16 %v321
        %v770 = vunpack.c.l.b16 %v322
        %v771 = vunpack.c.l.b16 %v323
        %v772 = vunpack.c.l.b16 %v324
        %v773 = vunpack.c.l.b16 %v325
        %v774 = vunpack.c.l.b16 %v326
        %v775 = vunpack.c.l.b16 %v327
        %v776 = vunpack.c.l.b16 %v328
        %v777 = vunpack.c.l.b16 %v329
        %v778 = vunpack.c.l.b16 %v330
        %v779 = vunpack.c.l.b16 %v331
        %v780 = vunpack.c.l.b16 %v332
        %v781 = vunpack.c.l.b16 %v333
        %v782 = vunpack.c.l.b16 %v334
        %v783 = vunpack.c.l.b16 %v335
        %v784 = vunpack.c.l.b16 %v336
        %v785 = vunpack.c.l.b16 %v337
        %v786 = vunpack.c.l.b16 %v338
        %v787 = vunpack.c.l.b16 %v339
        %v788 = vunpack.c.l.b16 %v340
        %v789 = vunpack.c.l.b16 %v341
        %v790 = vunpack.c.l.b16 %v342
        %v791 = vunpack.c.l.b16 %v343
        %v792 = vunpack.c.l.b16 %v344
        %v793 = vunpack.c.l.b16 %v345
        %v794 = vunpack.c.l.b16 %v346
        %v795 = vunpack.c.l.b16 %v347
        %v796 = vunpack.c.l.b16 %v348
        %v797 = vunpack.c.l.b16 %v349
        %v798 = vunpack.c.l.b16 %v350
        %v799 = vunpack.c.l.b16 %v351
        %v800 = vunpack.c.l.b16 %v352
        %v801 = vunpack.c.l.b16 %v353
        %v802 = vunpack.c.l.b16 %v354
        %v803 = vunpack.c.l.b16 %v355
        %v804 = vunpack.c.l.b16 %v356
        %v805 = vunpack.c.l.b16 %v357
        %v806 = vunpack.c.l.b16 %v358
        %v807 = vunpack.c.l.b16 %v359
        %v808 = vunpack.c.l.b16 %v360
        %v809 = vunpack.c.l.b16 %v361
        %v810 = vunpack.c.l.b16 %v362
        %v811 = vunpack.c.l.b16 %v363
        %v812 = vunpack.c.l.b16 %v364
        %v813 = vunpack.c.l.b16 %v365
        %v814 = vunpack.c.l.b16 %v366
        %v815 = vunpack.c.l.b16 %v367
        %v816 = vunpack.c.l.b16 %v368
        %v817 = vunpack.c.l.b16 %v369
        %v818 = vunpack.c.l.b16 %v370
        %v819 = vunpack.c.l.b16 %v371
        %v820 = vunpack.c.l.b16 %v372
        %v821 = vunpack.c.l.b16 %v373
        %v822 = vpack.c.b16 %v759, %v758
        %v823 = vpack.c.b16 %v761, %v760
        %v824 = vpack.c.b16 %v763, %v762
        %v825 = vpack.c.b16 %v765, %v764
        %v826 = vpack.c.b16 %v767, %v766
        %v827 = vpack.c.b16 %v769, %v768
        %v828 = vpack.c.b16 %v771, %v770
        %v829 = vpack.c.b16 %v773, %v772
        %v830 = vpack.c.b16 %v775, %v774
        %v831 = vpack.c.b16 %v777, %v776
        %v832 = vpack.c.b16 %v779, %v778
        %v833 = vpack.c.b16 %v781, %v780
        %v834 = vpack.c.b16 %v783, %v782
        %v835 = vpack.c.b16 %v785, %v784
        %v836 = vpack.c.b16 %v787, %v786
        %v837 = vpack.c.b16 %v789, %v788
        %v838 = vpack.c.b16 %v791, %v790
        %v839 = vpack.c.b16 %v793, %v792
        %v840 = vpack.c.b16 %v795, %v794
        %v841 = vpack.c.b16 %v797, %v796
        %v842 = vpack.c.b16 %v799, %v798
        %v843 = vpack.c.b16 %v801, %v800
        %v844 = vpack.c.b16 %v803, %v802
        %v845 = vpack.c.b16 %v805, %v804
        %v846 = vpack.c.b16 %v807, %v806
        %v847 = vpack.c.b16 %v809, %v808
        %v848 = vpack.c.b16 %v811, %v810
        %v849 = vpack.c.b16 %v813, %v812
        %v850 = vpack.c.b16 %v815, %v814
        %v851 = vpack.c.b16 %v817, %v816
        %v852 = vpack.c.b16 %v819, %v818
        %v853 = vpack.c.b16 %v821, %v820
        %886 = vmatpush.bf16.msra.mxu0 %v829
        %887 = vmatpush.bf16.msra.mxu0 %v828
        %888 = vmatpush.bf16.msra.mxu0 %v827
        %889 = vmatpush.bf16.msra.mxu0 %v826
        %890 = vmatpush.bf16.msra.mxu0 %v825
        %891 = vmatpush.bf16.msra.mxu0 %v824
        %892 = vmatpush.bf16.msra.mxu0 %v823
        %893 = vmatpush.bf16.msra.mxu0 %v822
        %894 = vmatmul.bf16.gmra.mxu0 %v566
        %v895 = vpop.f32.mrf.mxu0
        %v896 = vadd.f32 0.0, %v895
        %v897 = vpop.f32.mrf.mxu0
        %v898 = vadd.f32 0.0, %v897
        %899 = vmatmul.bf16.gmra.mxu0 %v570
        %v900 = vpop.f32.mrf.mxu0
        %v901 = vadd.f32 0.0, %v900
        %v902 = vpop.f32.mrf.mxu0
        %v903 = vadd.f32 0.0, %v902
        %904 = vmatmul.bf16.gmra.mxu0 %v574
        %v905 = vpop.f32.mrf.mxu0
        %v906 = vadd.f32 0.0, %v905
        %v907 = vpop.f32.mrf.mxu0
        %v908 = vadd.f32 0.0, %v907
        %909 = vmatmul.bf16.gmra.mxu0 %v578
        %v910 = vpop.f32.mrf.mxu0
        %v911 = vadd.f32 0.0, %v910
        %v912 = vpop.f32.mrf.mxu0
        %v913 = vadd.f32 0.0, %v912
        %914 = vmatmul.bf16.gmra.mxu0 %v582
        %v915 = vpop.f32.mrf.mxu0
        %v916 = vadd.f32 0.0, %v915
        %v917 = vpop.f32.mrf.mxu0
        %v918 = vadd.f32 0.0, %v917
        %919 = vmatmul.bf16.gmra.mxu0 %v586
        %v920 = vpop.f32.mrf.mxu0
        %v921 = vadd.f32 0.0, %v920
        %v922 = vpop.f32.mrf.mxu0
        %v923 = vadd.f32 0.0, %v922
        %924 = vmatmul.bf16.gmra.mxu0 %v590
        %v925 = vpop.f32.mrf.mxu0
        %v926 = vadd.f32 0.0, %v925
        %v927 = vpop.f32.mrf.mxu0
        %v928 = vadd.f32 0.0, %v927
        %929 = vmatmul.bf16.gmra.mxu0 %v594
        %v930 = vpop.f32.mrf.mxu0
        %v931 = vadd.f32 0.0, %v930
        %v932 = vpop.f32.mrf.mxu0
        %v933 = vadd.f32 0.0, %v932
        %934 = vmatmul.bf16.gmra.mxu0 %v598
        %v935 = vpop.f32.mrf.mxu0
        %v936 = vadd.f32 0.0, %v935
        %v937 = vpop.f32.mrf.mxu0
        %v938 = vadd.f32 0.0, %v937
        %939 = vmatmul.bf16.gmra.mxu0 %v602
        %v940 = vpop.f32.mrf.mxu0
        %v941 = vadd.f32 0.0, %v940
        %v942 = vpop.f32.mrf.mxu0
        %v943 = vadd.f32 0.0, %v942
        %944 = vmatmul.bf16.gmra.mxu0 %v606
        %v945 = vpop.f32.mrf.mxu0
        %v946 = vadd.f32 0.0, %v945
        %v947 = vpop.f32.mrf.mxu0
        %v948 = vadd.f32 0.0, %v947
        %949 = vmatmul.bf16.gmra.mxu0 %v610
        %v950 = vpop.f32.mrf.mxu0
        %v951 = vadd.f32 0.0, %v950
        %v952 = vpop.f32.mrf.mxu0
        %v953 = vadd.f32 0.0, %v952
        %954 = vmatmul.bf16.gmra.mxu0 %v614
        %v955 = vpop.f32.mrf.mxu0
        %v956 = vadd.f32 0.0, %v955
        %v957 = vpop.f32.mrf.mxu0
        %v958 = vadd.f32 0.0, %v957
        %959 = vmatmul.bf16.gmra.mxu0 %v618
        %v960 = vpop.f32.mrf.mxu0
        %v961 = vadd.f32 0.0, %v960
        %v962 = vpop.f32.mrf.mxu0
        %v963 = vadd.f32 0.0, %v962
        %964 = vmatmul.bf16.gmra.mxu0 %v622
        %v965 = vpop.f32.mrf.mxu0
        %v966 = vadd.f32 0.0, %v965
        %v967 = vpop.f32.mrf.mxu0
        %v968 = vadd.f32 0.0, %v967
        %969 = vmatmul.bf16.gmra.mxu0 %v626
        %v970 = vpop.f32.mrf.mxu0
        %v971 = vadd.f32 0.0, %v970
        %v972 = vpop.f32.mrf.mxu0
        %v973 = vadd.f32 0.0, %v972
        %974 = vdwg.mxu0
        %975 = vmatpush.bf16.msra.mxu0 %v837
        %976 = vmatpush.bf16.msra.mxu0 %v836
        %977 = vmatpush.bf16.msra.mxu0 %v835
        %978 = vmatpush.bf16.msra.mxu0 %v834
        %979 = vmatpush.bf16.msra.mxu0 %v833
        %980 = vmatpush.bf16.msra.mxu0 %v832
        %981 = vmatpush.bf16.msra.mxu0 %v831
        %982 = vmatpush.bf16.msra.mxu0 %v830
        %983 = vmatmul.bf16.gmra.mxu0 %v567
        %v984 = vpop.f32.mrf.mxu0
        %v985 = vadd.f32 %v896, %v984
        %v986 = vpop.f32.mrf.mxu0
        %v987 = vadd.f32 %v898, %v986
        %988 = vmatmul.bf16.gmra.mxu0 %v571
        %v989 = vpop.f32.mrf.mxu0
        %v990 = vadd.f32 %v901, %v989
        %v991 = vpop.f32.mrf.mxu0
        %v992 = vadd.f32 %v903, %v991
        %993 = vmatmul.bf16.gmra.mxu0 %v575
        %v994 = vpop.f32.mrf.mxu0
        %v995 = vadd.f32 %v906, %v994
        %v996 = vpop.f32.mrf.mxu0
        %v997 = vadd.f32 %v908, %v996
        %998 = vmatmul.bf16.gmra.mxu0 %v579
        %v999 = vpop.f32.mrf.mxu0
        %v1000 = vadd.f32 %v911, %v999
        %v1001 = vpop.f32.mrf.mxu0
        %v1002 = vadd.f32 %v913, %v1001
        %1003 = vmatmul.bf16.gmra.mxu0 %v583
        %v1004 = vpop.f32.mrf.mxu0
        %v1005 = vadd.f32 %v916, %v1004
        %v1006 = vpop.f32.mrf.mxu0
        %v1007 = vadd.f32 %v918, %v1006
        %1008 = vmatmul.bf16.gmra.mxu0 %v587
        %v1009 = vpop.f32.mrf.mxu0
        %v1010 = vadd.f32 %v921, %v1009
        %v1011 = vpop.f32.mrf.mxu0
        %v1012 = vadd.f32 %v923, %v1011
        %1013 = vmatmul.bf16.gmra.mxu0 %v591
        %v1014 = vpop.f32.mrf.mxu0
        %v1015 = vadd.f32 %v926, %v1014
        %v1016 = vpop.f32.mrf.mxu0
        %v1017 = vadd.f32 %v928, %v1016
        %1018 = vmatmul.bf16.gmra.mxu0 %v595
        %v1019 = vpop.f32.mrf.mxu0
        %v1020 = vadd.f32 %v931, %v1019
        %v1021 = vpop.f32.mrf.mxu0
        %v1022 = vadd.f32 %v933, %v1021
        %1023 = vmatmul.bf16.gmra.mxu0 %v599
        %v1024 = vpop.f32.mrf.mxu0
        %v1025 = vadd.f32 %v936, %v1024
        %v1026 = vpop.f32.mrf.mxu0
        %v1027 = vadd.f32 %v938, %v1026
        %1028 = vmatmul.bf16.gmra.mxu0 %v603
        %v1029 = vpop.f32.mrf.mxu0
        %v1030 = vadd.f32 %v941, %v1029
        %v1031 = vpop.f32.mrf.mxu0
        %v1032 = vadd.f32 %v943, %v1031
        %1033 = vmatmul.bf16.gmra.mxu0 %v607
        %v1034 = vpop.f32.mrf.mxu0
        %v1035 = vadd.f32 %v946, %v1034
        %v1036 = vpop.f32.mrf.mxu0
        %v1037 = vadd.f32 %v948, %v1036
        %1038 = vmatmul.bf16.gmra.mxu0 %v611
        %v1039 = vpop.f32.mrf.mxu0
        %v1040 = vadd.f32 %v951, %v1039
        %v1041 = vpop.f32.mrf.mxu0
        %v1042 = vadd.f32 %v953, %v1041
        %1043 = vmatmul.bf16.gmra.mxu0 %v615
        %v1044 = vpop.f32.mrf.mxu0
        %v1045 = vadd.f32 %v956, %v1044
        %v1046 = vpop.f32.mrf.mxu0
        %v1047 = vadd.f32 %v958, %v1046
        %1048 = vmatmul.bf16.gmra.mxu0 %v619
        %v1049 = vpop.f32.mrf.mxu0
        %v1050 = vadd.f32 %v961, %v1049
        %v1051 = vpop.f32.mrf.mxu0
        %v1052 = vadd.f32 %v963, %v1051
        %1053 = vmatmul.bf16.gmra.mxu0 %v623
        %v1054 = vpop.f32.mrf.mxu0
        %v1055 = vadd.f32 %v966, %v1054
        %v1056 = vpop.f32.mrf.mxu0
        %v1057 = vadd.f32 %v968, %v1056
        %1058 = vmatmul.bf16.gmra.mxu0 %v627
        %v1059 = vpop.f32.mrf.mxu0
        %v1060 = vadd.f32 %v971, %v1059
        %v1061 = vpop.f32.mrf.mxu0
        %v1062 = vadd.f32 %v973, %v1061
        %1063 = vdwg.mxu0
        %1064 = vmatpush.bf16.msra.mxu0 %v845
        %1065 = vmatpush.bf16.msra.mxu0 %v844
        %1066 = vmatpush.bf16.msra.mxu0 %v843
        %1067 = vmatpush.bf16.msra.mxu0 %v842
        %1068 = vmatpush.bf16.msra.mxu0 %v841
        %1069 = vmatpush.bf16.msra.mxu0 %v840
        %1070 = vmatpush.bf16.msra.mxu0 %v839
        %1071 = vmatpush.bf16.msra.mxu0 %v838
        %1072 = vmatmul.bf16.gmra.mxu0 %v568
        %v1073 = vpop.f32.mrf.mxu0
        %v1074 = vadd.f32 %v985, %v1073
        %v1075 = vpop.f32.mrf.mxu0
        %v1076 = vadd.f32 %v987, %v1075
        %1077 = vmatmul.bf16.gmra.mxu0 %v572
        %v1078 = vpop.f32.mrf.mxu0
        %v1079 = vadd.f32 %v990, %v1078
        %v1080 = vpop.f32.mrf.mxu0
        %v1081 = vadd.f32 %v992, %v1080
        %1082 = vmatmul.bf16.gmra.mxu0 %v576
        %v1083 = vpop.f32.mrf.mxu0
        %v1084 = vadd.f32 %v995, %v1083
        %v1085 = vpop.f32.mrf.mxu0
        %v1086 = vadd.f32 %v997, %v1085
        %1087 = vmatmul.bf16.gmra.mxu0 %v580
        %v1088 = vpop.f32.mrf.mxu0
        %v1089 = vadd.f32 %v1000, %v1088
        %v1090 = vpop.f32.mrf.mxu0
        %v1091 = vadd.f32 %v1002, %v1090
        %1092 = vmatmul.bf16.gmra.mxu0 %v584
        %v1093 = vpop.f32.mrf.mxu0
        %v1094 = vadd.f32 %v1005, %v1093
        %v1095 = vpop.f32.mrf.mxu0
        %v1096 = vadd.f32 %v1007, %v1095
        %1097 = vmatmul.bf16.gmra.mxu0 %v588
        %v1098 = vpop.f32.mrf.mxu0
        %v1099 = vadd.f32 %v1010, %v1098
        %v1100 = vpop.f32.mrf.mxu0
        %v1101 = vadd.f32 %v1012, %v1100
        %1102 = vmatmul.bf16.gmra.mxu0 %v592
        %v1103 = vpop.f32.mrf.mxu0
        %v1104 = vadd.f32 %v1015, %v1103
        %v1105 = vpop.f32.mrf.mxu0
        %v1106 = vadd.f32 %v1017, %v1105
        %1107 = vmatmul.bf16.gmra.mxu0 %v596
        %v1108 = vpop.f32.mrf.mxu0
        %v1109 = vadd.f32 %v1020, %v1108
        %v1110 = vpop.f32.mrf.mxu0
        %v1111 = vadd.f32 %v1022, %v1110
        %1112 = vmatmul.bf16.gmra.mxu0 %v600
        %v1113 = vpop.f32.mrf.mxu0
        %v1114 = vadd.f32 %v1025, %v1113
        %v1115 = vpop.f32.mrf.mxu0
        %v1116 = vadd.f32 %v1027, %v1115
        %1117 = vmatmul.bf16.gmra.mxu0 %v604
        %v1118 = vpop.f32.mrf.mxu0
        %v1119 = vadd.f32 %v1030, %v1118
        %v1120 = vpop.f32.mrf.mxu0
        %v1121 = vadd.f32 %v1032, %v1120
        %1122 = vmatmul.bf16.gmra.mxu0 %v608
        %v1123 = vpop.f32.mrf.mxu0
        %v1124 = vadd.f32 %v1035, %v1123
        %v1125 = vpop.f32.mrf.mxu0
        %v1126 = vadd.f32 %v1037, %v1125
        %1127 = vmatmul.bf16.gmra.mxu0 %v612
        %v1128 = vpop.f32.mrf.mxu0
        %v1129 = vadd.f32 %v1040, %v1128
        %v1130 = vpop.f32.mrf.mxu0
        %v1131 = vadd.f32 %v1042, %v1130
        %1132 = vmatmul.bf16.gmra.mxu0 %v616
        %v1133 = vpop.f32.mrf.mxu0
        %v1134 = vadd.f32 %v1045, %v1133
        %v1135 = vpop.f32.mrf.mxu0
        %v1136 = vadd.f32 %v1047, %v1135
        %1137 = vmatmul.bf16.gmra.mxu0 %v620
        %v1138 = vpop.f32.mrf.mxu0
        %v1139 = vadd.f32 %v1050, %v1138
        %v1140 = vpop.f32.mrf.mxu0
        %v1141 = vadd.f32 %v1052, %v1140
        %1142 = vmatmul.bf16.gmra.mxu0 %v624
        %v1143 = vpop.f32.mrf.mxu0
        %v1144 = vadd.f32 %v1055, %v1143
        %v1145 = vpop.f32.mrf.mxu0
        %v1146 = vadd.f32 %v1057, %v1145
        %1147 = vmatmul.bf16.gmra.mxu0 %v628
        %v1148 = vpop.f32.mrf.mxu0
        %v1149 = vadd.f32 %v1060, %v1148
        %v1150 = vpop.f32.mrf.mxu0
        %v1151 = vadd.f32 %v1062, %v1150
        %1152 = vdwg.mxu0
        %1153 = vmatpush.bf16.msra.mxu0 %v853
        %1154 = vmatpush.bf16.msra.mxu0 %v852
        %1155 = vmatpush.bf16.msra.mxu0 %v851
        %1156 = vmatpush.bf16.msra.mxu0 %v850
        %1157 = vmatpush.bf16.msra.mxu0 %v849
        %1158 = vmatpush.bf16.msra.mxu0 %v848
        %1159 = vmatpush.bf16.msra.mxu0 %v847
        %1160 = vmatpush.bf16.msra.mxu0 %v846
        %1161 = vmatmul.bf16.gmra.mxu0 %v569
        %v1162 = vpop.f32.mrf.mxu0
        %v1163 = vadd.f32 %v1074, %v1162
        %v1164 = vpop.f32.mrf.mxu0
        %v1165 = vadd.f32 %v1076, %v1164
        %1166 = vmatmul.bf16.gmra.mxu0 %v573
        %v1167 = vpop.f32.mrf.mxu0
        %v1168 = vadd.f32 %v1079, %v1167
        %v1169 = vpop.f32.mrf.mxu0
        %v1170 = vadd.f32 %v1081, %v1169
        %1171 = vmatmul.bf16.gmra.mxu0 %v577
        %v1172 = vpop.f32.mrf.mxu0
        %v1173 = vadd.f32 %v1084, %v1172
        %v1174 = vpop.f32.mrf.mxu0
        %v1175 = vadd.f32 %v1086, %v1174
        %1176 = vmatmul.bf16.gmra.mxu0 %v581
        %v1177 = vpop.f32.mrf.mxu0
        %v1178 = vadd.f32 %v1089, %v1177
        %v1179 = vpop.f32.mrf.mxu0
        %v1180 = vadd.f32 %v1091, %v1179
        %1181 = vmatmul.bf16.gmra.mxu0 %v585
        %v1182 = vpop.f32.mrf.mxu0
        %v1183 = vadd.f32 %v1094, %v1182
        %v1184 = vpop.f32.mrf.mxu0
        %v1185 = vadd.f32 %v1096, %v1184
        %1186 = vmatmul.bf16.gmra.mxu0 %v589
        %v1187 = vpop.f32.mrf.mxu0
        %v1188 = vadd.f32 %v1099, %v1187
        %v1189 = vpop.f32.mrf.mxu0
        %v1190 = vadd.f32 %v1101, %v1189
        %1191 = vmatmul.bf16.gmra.mxu0 %v593
        %v1192 = vpop.f32.mrf.mxu0
        %v1193 = vadd.f32 %v1104, %v1192
        %v1194 = vpop.f32.mrf.mxu0
        %v1195 = vadd.f32 %v1106, %v1194
        %1196 = vmatmul.bf16.gmra.mxu0 %v597
        %v1197 = vpop.f32.mrf.mxu0
        %v1198 = vadd.f32 %v1109, %v1197
        %v1199 = vpop.f32.mrf.mxu0
        %v1200 = vadd.f32 %v1111, %v1199
        %1201 = vmatmul.bf16.gmra.mxu0 %v601
        %v1202 = vpop.f32.mrf.mxu0
        %v1203 = vadd.f32 %v1114, %v1202
        %v1204 = vpop.f32.mrf.mxu0
        %v1205 = vadd.f32 %v1116, %v1204
        %1206 = vmatmul.bf16.gmra.mxu0 %v605
        %v1207 = vpop.f32.mrf.mxu0
        %v1208 = vadd.f32 %v1119, %v1207
        %v1209 = vpop.f32.mrf.mxu0
        %v1210 = vadd.f32 %v1121, %v1209
        %1211 = vmatmul.bf16.gmra.mxu0 %v609
        %v1212 = vpop.f32.mrf.mxu0
        %v1213 = vadd.f32 %v1124, %v1212
        %v1214 = vpop.f32.mrf.mxu0
        %v1215 = vadd.f32 %v1126, %v1214
        %1216 = vmatmul.bf16.gmra.mxu0 %v613
        %v1217 = vpop.f32.mrf.mxu0
        %v1218 = vadd.f32 %v1129, %v1217
        %v1219 = vpop.f32.mrf.mxu0
        %v1220 = vadd.f32 %v1131, %v1219
        %1221 = vmatmul.bf16.gmra.mxu0 %v617
        %v1222 = vpop.f32.mrf.mxu0
        %v1223 = vadd.f32 %v1134, %v1222
        %v1224 = vpop.f32.mrf.mxu0
        %v1225 = vadd.f32 %v1136, %v1224
        %1226 = vmatmul.bf16.gmra.mxu0 %v621
        %v1227 = vpop.f32.mrf.mxu0
        %v1228 = vadd.f32 %v1139, %v1227
        %v1229 = vpop.f32.mrf.mxu0
        %v1230 = vadd.f32 %v1141, %v1229
        %1231 = vmatmul.bf16.gmra.mxu0 %v625
        %v1232 = vpop.f32.mrf.mxu0
        %v1233 = vadd.f32 %v1144, %v1232
        %v1234 = vpop.f32.mrf.mxu0
        %v1235 = vadd.f32 %v1146, %v1234
        %1236 = vmatmul.bf16.gmra.mxu0 %v629
        %v1237 = vpop.f32.mrf.mxu0
        %v1238 = vadd.f32 %v1149, %v1237
        %v1239 = vpop.f32.mrf.mxu0
        %v1240 = vadd.f32 %v1151, %v1239
        %1241 = vdwg.mxu0
        %s1242 = smul.u32 %s20, 256
        %s1243 = scalar_lea.vmem [#allocation2], %s1242
        %1244 = vst [vmem:[%s1243] sm:$0xff] %v1163
        %1245 = vst [vmem:[%s1243 + $0x8] sm:$0xff] %v1165
        %1246 = vst [vmem:[%s1243 + $0x10] sm:$0xff] %v1168
        %1247 = vst [vmem:[%s1243 + $0x18] sm:$0xff] %v1170
        %1248 = vst [vmem:[%s1243 + $0x20] sm:$0xff] %v1173
        %1249 = vst [vmem:[%s1243 + $0x28] sm:$0xff] %v1175
        %1250 = vst [vmem:[%s1243 + $0x30] sm:$0xff] %v1178
        %1251 = vst [vmem:[%s1243 + $0x38] sm:$0xff] %v1180
        %1252 = vst [vmem:[%s1243 + $0x40] sm:$0xff] %v1183
        %1253 = vst [vmem:[%s1243 + $0x48] sm:$0xff] %v1185
        %1254 = vst [vmem:[%s1243 + $0x50] sm:$0xff] %v1188
        %1255 = vst [vmem:[%s1243 + $0x58] sm:$0xff] %v1190
        %1256 = vst [vmem:[%s1243 + $0x60] sm:$0xff] %v1193
        %1257 = vst [vmem:[%s1243 + $0x68] sm:$0xff] %v1195
        %1258 = vst [vmem:[%s1243 + $0x70] sm:$0xff] %v1198
        %1259 = vst [vmem:[%s1243 + $0x78] sm:$0xff] %v1200
        %1260 = vst [vmem:[%s1243 + $0x80] sm:$0xff] %v1203
        %1261 = vst [vmem:[%s1243 + $0x88] sm:$0xff] %v1205
        %1262 = vst [vmem:[%s1243 + $0x90] sm:$0xff] %v1208
        %1263 = vst [vmem:[%s1243 + $0x98] sm:$0xff] %v1210
        %1264 = vst [vmem:[%s1243 + $0xa0] sm:$0xff] %v1213
        %1265 = vst [vmem:[%s1243 + $0xa8] sm:$0xff] %v1215
        %1266 = vst [vmem:[%s1243 + $0xb0] sm:$0xff] %v1218
        %1267 = vst [vmem:[%s1243 + $0xb8] sm:$0xff] %v1220
        %1268 = vst [vmem:[%s1243 + $0xc0] sm:$0xff] %v1223
        %1269 = vst [vmem:[%s1243 + $0xc8] sm:$0xff] %v1225
        %1270 = vst [vmem:[%s1243 + $0xd0] sm:$0xff] %v1228
        %1271 = vst [vmem:[%s1243 + $0xd8] sm:$0xff] %v1230
        %1272 = vst [vmem:[%s1243 + $0xe0] sm:$0xff] %v1233
        %1273 = vst [vmem:[%s1243 + $0xe8] sm:$0xff] %v1235
        %1274 = vst [vmem:[%s1243 + $0xf0] sm:$0xff] %v1238
        %1275 = vst [vmem:[%s1243 + $0xf8] sm:$0xff] %v1240
        %v1276 = vld [vmem:[#allocation3] sm:$0x1]
        %v1277 = vadd.f32 %v1163, %v1165
        %v1278 = vadd.f32 %v1277, %v1168
        %v1279 = vadd.f32 %v1278, %v1170
        %v1280 = vadd.f32 %v1279, %v1173
        %v1281 = vadd.f32 %v1280, %v1175
        %v1282 = vadd.f32 %v1281, %v1178
        %v1283 = vadd.f32 %v1282, %v1180
        %v1284 = vadd.f32 %v1283, %v1183
        %v1285 = vadd.f32 %v1284, %v1185
        %v1286 = vadd.f32 %v1285, %v1188
        %v1287 = vadd.f32 %v1286, %v1190
        %v1288 = vadd.f32 %v1287, %v1193
        %v1289 = vadd.f32 %v1288, %v1195
        %v1290 = vadd.f32 %v1289, %v1198
        %v1291 = vadd.f32 %v1290, %v1200
        %v1292 = vadd.f32 %v1291, %v1203
        %v1293 = vadd.f32 %v1292, %v1205
        %v1294 = vadd.f32 %v1293, %v1208
        %v1295 = vadd.f32 %v1294, %v1210
        %v1296 = vadd.f32 %v1295, %v1213
        %v1297 = vadd.f32 %v1296, %v1215
        %v1298 = vadd.f32 %v1297, %v1218
        %v1299 = vadd.f32 %v1298, %v1220
        %v1300 = vadd.f32 %v1299, %v1223
        %v1301 = vadd.f32 %v1300, %v1225
        %v1302 = vadd.f32 %v1301, %v1228
        %v1303 = vadd.f32 %v1302, %v1230
        %v1304 = vadd.f32 %v1303, %v1233
        %v1305 = vadd.f32 %v1304, %v1235
        %v1306 = vadd.f32 %v1305, %v1238
        %v1307 = vadd.f32 %v1306, %v1240
        %v1308 = vrot.slane %v1307, 4
        %v1309 = vadd.f32 %v1307, %v1308
        %v1310 = vrot.slane %v1309, 2
        %v1311 = vadd.f32 %v1309, %v1310
        %v1312 = vrot.slane %v1311, 1
        %v1313 = vadd.f32 %v1311, %v1312
        %v1314 = vadd.f32 %v1276, %v1313
        %1315 = vst [vmem:[#allocation3] sm:$0x1] %v1314
        %v1316 = vld [vmem:[#allocation4] sm:$0x1]
        %v1317 = vmul.f32 %v1163, %v1163
        %v1318 = vmul.f32 %v1165, %v1165
        %v1319 = vmul.f32 %v1168, %v1168
        %v1320 = vmul.f32 %v1170, %v1170
        %v1321 = vmul.f32 %v1173, %v1173
        %v1322 = vmul.f32 %v1175, %v1175
        %v1323 = vmul.f32 %v1178, %v1178
        %v1324 = vmul.f32 %v1180, %v1180
        %v1325 = vmul.f32 %v1183, %v1183
        %v1326 = vmul.f32 %v1185, %v1185
        %v1327 = vmul.f32 %v1188, %v1188
        %v1328 = vmul.f32 %v1190, %v1190
        %v1329 = vmul.f32 %v1193, %v1193
        %v1330 = vmul.f32 %v1195, %v1195
        %v1331 = vmul.f32 %v1198, %v1198
        %v1332 = vmul.f32 %v1200, %v1200
        %v1333 = vmul.f32 %v1203, %v1203
        %v1334 = vmul.f32 %v1205, %v1205
        %v1335 = vmul.f32 %v1208, %v1208
        %v1336 = vmul.f32 %v1210, %v1210
        %v1337 = vmul.f32 %v1213, %v1213
        %v1338 = vmul.f32 %v1215, %v1215
        %v1339 = vmul.f32 %v1218, %v1218
        %v1340 = vmul.f32 %v1220, %v1220
        %v1341 = vmul.f32 %v1223, %v1223
        %v1342 = vmul.f32 %v1225, %v1225
        %v1343 = vmul.f32 %v1228, %v1228
        %v1344 = vmul.f32 %v1230, %v1230
        %v1345 = vmul.f32 %v1233, %v1233
        %v1346 = vmul.f32 %v1235, %v1235
        %v1347 = vmul.f32 %v1238, %v1238
        %v1348 = vmul.f32 %v1240, %v1240
        %v1349 = vadd.f32 %v1317, %v1318
        %v1350 = vadd.f32 %v1349, %v1319
        %v1351 = vadd.f32 %v1350, %v1320
        %v1352 = vadd.f32 %v1351, %v1321
        %v1353 = vadd.f32 %v1352, %v1322
        %v1354 = vadd.f32 %v1353, %v1323
        %v1355 = vadd.f32 %v1354, %v1324
        %v1356 = vadd.f32 %v1355, %v1325
        %v1357 = vadd.f32 %v1356, %v1326
        %v1358 = vadd.f32 %v1357, %v1327
        %v1359 = vadd.f32 %v1358, %v1328
        %v1360 = vadd.f32 %v1359, %v1329
        %v1361 = vadd.f32 %v1360, %v1330
        %v1362 = vadd.f32 %v1361, %v1331
        %v1363 = vadd.f32 %v1362, %v1332
        %v1364 = vadd.f32 %v1363, %v1333
        %v1365 = vadd.f32 %v1364, %v1334
        %v1366 = vadd.f32 %v1365, %v1335
        %v1367 = vadd.f32 %v1366, %v1336
        %v1368 = vadd.f32 %v1367, %v1337
        %v1369 = vadd.f32 %v1368, %v1338
        %v1370 = vadd.f32 %v1369, %v1339
        %v1371 = vadd.f32 %v1370, %v1340
        %v1372 = vadd.f32 %v1371, %v1341
        %v1373 = vadd.f32 %v1372, %v1342
        %v1374 = vadd.f32 %v1373, %v1343
        %v1375 = vadd.f32 %v1374, %v1344
        %v1376 = vadd.f32 %v1375, %v1345
        %v1377 = vadd.f32 %v1376, %v1346
        %v1378 = vadd.f32 %v1377, %v1347
        %v1379 = vadd.f32 %v1378, %v1348
        %v1380 = vrot.slane %v1379, 4
        %v1381 = vadd.f32 %v1379, %v1380
        %v1382 = vrot.slane %v1381, 2
        %v1383 = vadd.f32 %v1381, %v1382
        %v1384 = vrot.slane %v1383, 1
        %v1385 = vadd.f32 %v1383, %v1384
        %v1386 = vadd.f32 %v1316, %v1385
        %1387 = vst [vmem:[#allocation4] sm:$0x1] %v1386
      $region44: #{lp_discriminator_forward.7} parent=35 // pred_fallthru
        _
      %p1388 = scmp.eq.s32.totalorder %s19, 1
      // Predicated region
      $region45: #{lp_discriminator_forward.7} parent=35 // pred_check
        %p1389 = pneg %p1388
      $region46: #{lp_discriminator_forward.7} parent=35 // pred_check_branch
        %1391 = sbr.rel (%p1389) target = $region48
      $region47: #{lp_discriminator_forward.7} parent=35 // pred_region
        %v1392 = vld [vmem:[#allocation3] sm:$0x1]
        %v1393 = vmul.f32 %v1392, 0.004132231
        %v1394 = vld [vmem:[#allocation4] sm:$0x1]
        %v1395 = vmul.f32 %v1394, 0.004132231
        %v1396 = vmul.f32 %v1393, %v1393
        %v1397 = vsub.f32 %v1395, %v1396
        %v1398 = vmax.f32 %v1397, 0.0
        %v1399 = vadd.f32 %v1398, 1e-05
        %v1400 = vrsqrt.pop %v1399
        %v1401 = vmul.f32 %v1400, %v1399
        %v1402 = vmul.f32 %v1401, %v1400
        %v1403 = vmul.f32 0.5, %v1402
        %v1404 = vsub.f32 1.5, %v1403
        %v1405 = vmul.f32 %v1400, %v1404
        %vm1406 = vweird.f32 %v1399
        %vm1407 = vweird.f32 %v1400
        %vm1408 = vmor %vm1406, %vm1407
        %v1409 = vsel %vm1408, %v1400, %v1405
        %v1410 = vld [vmem:[%s2] sm:$0x1]
        %v1411 = vmul.f32 %v1409, %v1410
        %v1412 = vld [vmem:[%s3] sm:$0x1]
        %v1413 = vmul.f32 %v1393, %v1411
        %v1414 = vsub.f32 %v1412, %v1413
        %s1415 = smul.u32 %s20, 256
        %s1416 = scalar_lea.vmem [#allocation2], %s1415
        %v1417 = vld [vmem:[%s1416] sm:$0xff]
        %v1418 = vld [vmem:[%s1416 + $0x8] sm:$0xff]
        %v1419 = vld [vmem:[%s1416 + $0x10] sm:$0xff]
        %v1420 = vld [vmem:[%s1416 + $0x18] sm:$0xff]
        %v1421 = vld [vmem:[%s1416 + $0x20] sm:$0xff]
        %v1422 = vld [vmem:[%s1416 + $0x28] sm:$0xff]
        %v1423 = vld [vmem:[%s1416 + $0x30] sm:$0xff]
        %v1424 = vld [vmem:[%s1416 + $0x38] sm:$0xff]
        %v1425 = vld [vmem:[%s1416 + $0x40] sm:$0xff]
        %v1426 = vld [vmem:[%s1416 + $0x48] sm:$0xff]
        %v1427 = vld [vmem:[%s1416 + $0x50] sm:$0xff]
        %v1428 = vld [vmem:[%s1416 + $0x58] sm:$0xff]
        %v1429 = vld [vmem:[%s1416 + $0x60] sm:$0xff]
        %v1430 = vld [vmem:[%s1416 + $0x68] sm:$0xff]
        %v1431 = vld [vmem:[%s1416 + $0x70] sm:$0xff]
        %v1432 = vld [vmem:[%s1416 + $0x78] sm:$0xff]
        %v1433 = vld [vmem:[%s1416 + $0x80] sm:$0xff]
        %v1434 = vld [vmem:[%s1416 + $0x88] sm:$0xff]
        %v1435 = vld [vmem:[%s1416 + $0x90] sm:$0xff]
        %v1436 = vld [vmem:[%s1416 + $0x98] sm:$0xff]
        %v1437 = vld [vmem:[%s1416 + $0xa0] sm:$0xff]
        %v1438 = vld [vmem:[%s1416 + $0xa8] sm:$0xff]
        %v1439 = vld [vmem:[%s1416 + $0xb0] sm:$0xff]
        %v1440 = vld [vmem:[%s1416 + $0xb8] sm:$0xff]
        %v1441 = vld [vmem:[%s1416 + $0xc0] sm:$0xff]
        %v1442 = vld [vmem:[%s1416 + $0xc8] sm:$0xff]
        %v1443 = vld [vmem:[%s1416 + $0xd0] sm:$0xff]
        %v1444 = vld [vmem:[%s1416 + $0xd8] sm:$0xff]
        %v1445 = vld [vmem:[%s1416 + $0xe0] sm:$0xff]
        %v1446 = vld [vmem:[%s1416 + $0xe8] sm:$0xff]
        %v1447 = vld [vmem:[%s1416 + $0xf0] sm:$0xff]
        %v1448 = vld [vmem:[%s1416 + $0xf8] sm:$0xff]
        %v1450 = vperm.slane %v1411, 0
        %v1452 = vmul.f32 %v1417, %v1450
        %v1453 = vmul.f32 %v1418, %v1450
        %v1454 = vmul.f32 %v1419, %v1450
        %v1455 = vmul.f32 %v1420, %v1450
        %v1456 = vmul.f32 %v1421, %v1450
        %v1457 = vmul.f32 %v1422, %v1450
        %v1458 = vmul.f32 %v1423, %v1450
        %v1459 = vmul.f32 %v1424, %v1450
        %v1460 = vmul.f32 %v1425, %v1450
        %v1461 = vmul.f32 %v1426, %v1450
        %v1462 = vmul.f32 %v1427, %v1450
        %v1463 = vmul.f32 %v1428, %v1450
        %v1464 = vmul.f32 %v1429, %v1450
        %v1465 = vmul.f32 %v1430, %v1450
        %v1466 = vmul.f32 %v1431, %v1450
        %v1467 = vmul.f32 %v1432, %v1450
        %v1468 = vmul.f32 %v1433, %v1450
        %v1469 = vmul.f32 %v1434, %v1450
        %v1470 = vmul.f32 %v1435, %v1450
        %v1471 = vmul.f32 %v1436, %v1450
        %v1472 = vmul.f32 %v1437, %v1450
        %v1473 = vmul.f32 %v1438, %v1450
        %v1474 = vmul.f32 %v1439, %v1450
        %v1475 = vmul.f32 %v1440, %v1450
        %v1476 = vmul.f32 %v1441, %v1450
        %v1477 = vmul.f32 %v1442, %v1450
        %v1478 = vmul.f32 %v1443, %v1450
        %v1479 = vmul.f32 %v1444, %v1450
        %v1480 = vmul.f32 %v1445, %v1450
        %v1481 = vmul.f32 %v1446, %v1450
        %v1482 = vmul.f32 %v1447, %v1450
        %v1483 = vmul.f32 %v1448, %v1450
        %v1485 = vperm.slane %v1414, 0
        %v1487 = vadd.f32 %v1452, %v1485
        %v1488 = vadd.f32 %v1453, %v1485
        %v1489 = vadd.f32 %v1454, %v1485
        %v1490 = vadd.f32 %v1455, %v1485
        %v1491 = vadd.f32 %v1456, %v1485
        %v1492 = vadd.f32 %v1457, %v1485
        %v1493 = vadd.f32 %v1458, %v1485
        %v1494 = vadd.f32 %v1459, %v1485
        %v1495 = vadd.f32 %v1460, %v1485
        %v1496 = vadd.f32 %v1461, %v1485
        %v1497 = vadd.f32 %v1462, %v1485
        %v1498 = vadd.f32 %v1463, %v1485
        %v1499 = vadd.f32 %v1464, %v1485
        %v1500 = vadd.f32 %v1465, %v1485
        %v1501 = vadd.f32 %v1466, %v1485
        %v1502 = vadd.f32 %v1467, %v1485
        %v1503 = vadd.f32 %v1468, %v1485
        %v1504 = vadd.f32 %v1469, %v1485
        %v1505 = vadd.f32 %v1470, %v1485
        %v1506 = vadd.f32 %v1471, %v1485
        %v1507 = vadd.f32 %v1472, %v1485
        %v1508 = vadd.f32 %v1473, %v1485
        %v1509 = vadd.f32 %v1474, %v1485
        %v1510 = vadd.f32 %v1475, %v1485
        %v1511 = vadd.f32 %v1476, %v1485
        %v1512 = vadd.f32 %v1477, %v1485
        %v1513 = vadd.f32 %v1478, %v1485
        %v1514 = vadd.f32 %v1479, %v1485
        %v1515 = vadd.f32 %v1480, %v1485
        %v1516 = vadd.f32 %v1481, %v1485
        %v1517 = vadd.f32 %v1482, %v1485
        %v1518 = vadd.f32 %v1483, %v1485
        %vm1519 = vcmp.ge.f32.partialorder %v1487, 0.0
        %vm1520 = vcmp.ge.f32.partialorder %v1488, 0.0
        %vm1521 = vcmp.ge.f32.partialorder %v1489, 0.0
        %vm1522 = vcmp.ge.f32.partialorder %v1490, 0.0
        %vm1523 = vcmp.ge.f32.partialorder %v1491, 0.0
        %vm1524 = vcmp.ge.f32.partialorder %v1492, 0.0
        %vm1525 = vcmp.ge.f32.partialorder %v1493, 0.0
        %vm1526 = vcmp.ge.f32.partialorder %v1494, 0.0
        %vm1527 = vcmp.ge.f32.partialorder %v1495, 0.0
        %vm1528 = vcmp.ge.f32.partialorder %v1496, 0.0
        %vm1529 = vcmp.ge.f32.partialorder %v1497, 0.0
        %vm1530 = vcmp.ge.f32.partialorder %v1498, 0.0
        %vm1531 = vcmp.ge.f32.partialorder %v1499, 0.0
        %vm1532 = vcmp.ge.f32.partialorder %v1500, 0.0
        %vm1533 = vcmp.ge.f32.partialorder %v1501, 0.0
        %vm1534 = vcmp.ge.f32.partialorder %v1502, 0.0
        %vm1535 = vcmp.ge.f32.partialorder %v1503, 0.0
        %vm1536 = vcmp.ge.f32.partialorder %v1504, 0.0
        %vm1537 = vcmp.ge.f32.partialorder %v1505, 0.0
        %vm1538 = vcmp.ge.f32.partialorder %v1506, 0.0
        %vm1539 = vcmp.ge.f32.partialorder %v1507, 0.0
        %vm1540 = vcmp.ge.f32.partialorder %v1508, 0.0
        %vm1541 = vcmp.ge.f32.partialorder %v1509, 0.0
        %vm1542 = vcmp.ge.f32.partialorder %v1510, 0.0
        %vm1543 = vcmp.ge.f32.partialorder %v1511, 0.0
        %vm1544 = vcmp.ge.f32.partialorder %v1512, 0.0
        %vm1545 = vcmp.ge.f32.partialorder %v1513, 0.0
        %vm1546 = vcmp.ge.f32.partialorder %v1514, 0.0
        %vm1547 = vcmp.ge.f32.partialorder %v1515, 0.0
        %vm1548 = vcmp.ge.f32.partialorder %v1516, 0.0
        %vm1549 = vcmp.ge.f32.partialorder %v1517, 0.0
        %vm1550 = vcmp.ge.f32.partialorder %v1518, 0.0
        %v1551 = vmul.f32 %v1487, 0.2
        %v1552 = vmul.f32 %v1488, 0.2
        %v1553 = vmul.f32 %v1489, 0.2
        %v1554 = vmul.f32 %v1490, 0.2
        %v1555 = vmul.f32 %v1491, 0.2
        %v1556 = vmul.f32 %v1492, 0.2
        %v1557 = vmul.f32 %v1493, 0.2
        %v1558 = vmul.f32 %v1494, 0.2
        %v1559 = vmul.f32 %v1495, 0.2
        %v1560 = vmul.f32 %v1496, 0.2
        %v1561 = vmul.f32 %v1497, 0.2
        %v1562 = vmul.f32 %v1498, 0.2
        %v1563 = vmul.f32 %v1499, 0.2
        %v1564 = vmul.f32 %v1500, 0.2
        %v1565 = vmul.f32 %v1501, 0.2
        %v1566 = vmul.f32 %v1502, 0.2
        %v1567 = vmul.f32 %v1503, 0.2
        %v1568 = vmul.f32 %v1504, 0.2
        %v1569 = vmul.f32 %v1505, 0.2
        %v1570 = vmul.f32 %v1506, 0.2
        %v1571 = vmul.f32 %v1507, 0.2
        %v1572 = vmul.f32 %v1508, 0.2
        %v1573 = vmul.f32 %v1509, 0.2
        %v1574 = vmul.f32 %v1510, 0.2
        %v1575 = vmul.f32 %v1511, 0.2
        %v1576 = vmul.f32 %v1512, 0.2
        %v1577 = vmul.f32 %v1513, 0.2
        %v1578 = vmul.f32 %v1514, 0.2
        %v1579 = vmul.f32 %v1515, 0.2
        %v1580 = vmul.f32 %v1516, 0.2
        %v1581 = vmul.f32 %v1517, 0.2
        %v1582 = vmul.f32 %v1518, 0.2
        %v1583 = vsel %vm1519, %v1487, %v1551
        %v1584 = vsel %vm1520, %v1488, %v1552
        %v1585 = vsel %vm1521, %v1489, %v1553
        %v1586 = vsel %vm1522, %v1490, %v1554
        %v1587 = vsel %vm1523, %v1491, %v1555
        %v1588 = vsel %vm1524, %v1492, %v1556
        %v1589 = vsel %vm1525, %v1493, %v1557
        %v1590 = vsel %vm1526, %v1494, %v1558
        %v1591 = vsel %vm1527, %v1495, %v1559
        %v1592 = vsel %vm1528, %v1496, %v1560
        %v1593 = vsel %vm1529, %v1497, %v1561
        %v1594 = vsel %vm1530, %v1498, %v1562
        %v1595 = vsel %vm1531, %v1499, %v1563
        %v1596 = vsel %vm1532, %v1500, %v1564
        %v1597 = vsel %vm1533, %v1501, %v1565
        %v1598 = vsel %vm1534, %v1502, %v1566
        %v1599 = vsel %vm1535, %v1503, %v1567
        %v1600 = vsel %vm1536, %v1504, %v1568
        %v1601 = vsel %vm1537, %v1505, %v1569
        %v1602 = vsel %vm1538, %v1506, %v1570
        %v1603 = vsel %vm1539, %v1507, %v1571
        %v1604 = vsel %vm1540, %v1508, %v1572
        %v1605 = vsel %vm1541, %v1509, %v1573
        %v1606 = vsel %vm1542, %v1510, %v1574
        %v1607 = vsel %vm1543, %v1511, %v1575
        %v1608 = vsel %vm1544, %v1512, %v1576
        %v1609 = vsel %vm1545, %v1513, %v1577
        %v1610 = vsel %vm1546, %v1514, %v1578
        %v1611 = vsel %vm1547, %v1515, %v1579
        %v1612 = vsel %vm1548, %v1516, %v1580
        %v1613 = vsel %vm1549, %v1517, %v1581
        %v1614 = vsel %vm1550, %v1518, %v1582
        %v1615 = vpack.c.bf16 %v1583, %v1583
        %v1616 = vpack.c.bf16 %v1584, %v1584
        %v1617 = vpack.c.bf16 %v1585, %v1585
        %v1618 = vpack.c.bf16 %v1586, %v1586
        %v1619 = vpack.c.bf16 %v1587, %v1587
        %v1620 = vpack.c.bf16 %v1588, %v1588
        %v1621 = vpack.c.bf16 %v1589, %v1589
        %v1622 = vpack.c.bf16 %v1590, %v1590
        %v1623 = vpack.c.bf16 %v1591, %v1591
        %v1624 = vpack.c.bf16 %v1592, %v1592
        %v1625 = vpack.c.bf16 %v1593, %v1593
        %v1626 = vpack.c.bf16 %v1594, %v1594
        %v1627 = vpack.c.bf16 %v1595, %v1595
        %v1628 = vpack.c.bf16 %v1596, %v1596
        %v1629 = vpack.c.bf16 %v1597, %v1597
        %v1630 = vpack.c.bf16 %v1598, %v1598
        %v1631 = vpack.c.bf16 %v1599, %v1599
        %v1632 = vpack.c.bf16 %v1600, %v1600
        %v1633 = vpack.c.bf16 %v1601, %v1601
        %v1634 = vpack.c.bf16 %v1602, %v1602
        %v1635 = vpack.c.bf16 %v1603, %v1603
        %v1636 = vpack.c.bf16 %v1604, %v1604
        %v1637 = vpack.c.bf16 %v1605, %v1605
        %v1638 = vpack.c.bf16 %v1606, %v1606
        %v1639 = vpack.c.bf16 %v1607, %v1607
        %v1640 = vpack.c.bf16 %v1608, %v1608
        %v1641 = vpack.c.bf16 %v1609, %v1609
        %v1642 = vpack.c.bf16 %v1610, %v1610
        %v1643 = vpack.c.bf16 %v1611, %v1611
        %v1644 = vpack.c.bf16 %v1612, %v1612
        %v1645 = vpack.c.bf16 %v1613, %v1613
        %v1646 = vpack.c.bf16 %v1614, %v1614
        %1647 = vst [vmem:[%s232] sm:$0xf] %v1615
        %1648 = vst [vmem:[%s232 + $0x4] sm:$0xf] %v1616
        %1649 = vst [vmem:[%s232 + $0x8] sm:$0xf] %v1617
        %1650 = vst [vmem:[%s232 + $0xc] sm:$0xf] %v1618
        %1651 = vst [vmem:[%s232 + $0x10] sm:$0xf] %v1619
        %1652 = vst [vmem:[%s232 + $0x14] sm:$0xf] %v1620
        %1653 = vst [vmem:[%s232 + $0x18] sm:$0xf] %v1621
        %1654 = vst [vmem:[%s232 + $0x1c] sm:$0xf] %v1622
        %1655 = vst [vmem:[%s232 + $0x20] sm:$0xf] %v1623
        %1656 = vst [vmem:[%s232 + $0x24] sm:$0xf] %v1624
        %1657 = vst [vmem:[%s232 + $0x28] sm:$0xf] %v1625
        %1658 = vst [vmem:[%s232 + $0x2c] sm:$0xf] %v1626
        %1659 = vst [vmem:[%s232 + $0x30] sm:$0xf] %v1627
        %1660 = vst [vmem:[%s232 + $0x34] sm:$0xf] %v1628
        %1661 = vst [vmem:[%s232 + $0x38] sm:$0xf] %v1629
        %1662 = vst [vmem:[%s232 + $0x3c] sm:$0xf] %v1630
        %1663 = vst [vmem:[%s232 + $0x40] sm:$0xf] %v1631
        %1664 = vst [vmem:[%s232 + $0x44] sm:$0xf] %v1632
        %1665 = vst [vmem:[%s232 + $0x48] sm:$0xf] %v1633
        %1666 = vst [vmem:[%s232 + $0x4c] sm:$0xf] %v1634
        %1667 = vst [vmem:[%s232 + $0x50] sm:$0xf] %v1635
        %1668 = vst [vmem:[%s232 + $0x54] sm:$0xf] %v1636
        %1669 = vst [vmem:[%s232 + $0x58] sm:$0xf] %v1637
        %1670 = vst [vmem:[%s232 + $0x5c] sm:$0xf] %v1638
        %1671 = vst [vmem:[%s232 + $0x60] sm:$0xf] %v1639
        %1672 = vst [vmem:[%s232 + $0x64] sm:$0xf] %v1640
        %1673 = vst [vmem:[%s232 + $0x68] sm:$0xf] %v1641
        %1674 = vst [vmem:[%s232 + $0x6c] sm:$0xf] %v1642
        %1675 = vst [vmem:[%s232 + $0x70] sm:$0xf] %v1643
        %1676 = vst [vmem:[%s232 + $0x74] sm:$0xf] %v1644
        %1677 = vst [vmem:[%s232 + $0x78] sm:$0xf] %v1645
        %1678 = vst [vmem:[%s232 + $0x7c] sm:$0xf] %v1646
      $region48: #{lp_discriminator_forward.7} parent=35 // pred_fallthru
        _
      %s1679 = smul.u32 %s20, %s19
      %s1680 = smul.u32 32, %s1679
      %p1681 = scmp.lt.s32.totalorder %s1680, 31
      %s1682 = scalar_select %p1681, %s1680, 31
      %s1683 = smul.addr %s1682, 4
      %s1684 = scalar_lea.vmem %s4, %s1683
      // Predicated region
      $region49: #{lp_discriminator_forward.7} parent=35 // pred_check
        %p1685 = pneg %p140
      $region50: #{lp_discriminator_forward.7} parent=35 // pred_check_branch
        %1687 = sbr.rel (%p1685) target = $region52
      $region51: #{lp_discriminator_forward.7} parent=35 // pred_region
        %s1688 = smul.u32 %s20, %s19
        %s1689 = smul.u32 32, %s1688
      $region52: #{lp_discriminator_forward.7} parent=35 // pred_fallthru
        _
    $region36: #{lp_discriminator_forward.7} parent=5 // pred_fallthru
      _
    %p1690 = scmp.le.s32.totalorder 2, %s10
    // Predicated region
    $region53: #{lp_discriminator_forward.7} parent=5 // pred_check
      %p1691 = pneg %p1690
    $region54: #{lp_discriminator_forward.7} parent=5 // pred_check_branch
      %1693 = sbr.rel (%p1691) target = $region56
    $region55: #{lp_discriminator_forward.7} parent=5 // pred_region
      %s1694 = ssub.s32 %s10, 2
      // Predicated region
      $region57: #{lp_discriminator_forward.7} parent=55 // pred_check
        %p1695 = pneg %p146
      $region58: #{lp_discriminator_forward.7} parent=55 // pred_check_branch
        %1697 = sbr.rel (%p1695) target = $region60
      $region59: #{lp_discriminator_forward.7} parent=55 // pred_region
        %s1698 = smul.u32 %s22, %s21
        %s1699 = smul.u32 32, %s1698
        %p1700 = scmp.lt.s32.totalorder %s1699, 31
        %s1701 = scalar_select %p1700, %s1699, 31
        %s1702 = smul.addr %s1701, 4
        %s1703 = scalar_lea.vmem %s4, %s1702
      $region60: #{lp_discriminator_forward.7} parent=55 // pred_fallthru
        _
    $region56: #{lp_discriminator_forward.7} parent=5 // pred_fallthru
      _
  $region6: #{lp_discriminator_forward.7} parent=0 // loop_footer
    %s14 = sadd.s32 1, %s10
  $region7: #{lp_discriminator_forward.7} parent=0 // loop_footer_branch
    %9 = sbr.rel target = $region3
  $region8: #{lp_discriminator_forward.7} parent=0 // loop_exit
    _

</llo_original>
